<compile_context>
chip_gen: v7x
topology: tpu7x:2x2x1
jax: 0.10.0
libtpu: 0.0.40
codegen_flags: <defaults>
</compile_context>

<pallas_src>
import jax
import jax.numpy as jnp
import numpy as np
from jax.experimental import pallas as pl
from jax.experimental.pallas import tpu as pltpu


def _basic_block3d_kernel(xf_ref, idn_ref, w1_ref, s1_ref, b1_ref,
                          w2_ref, s2_ref, b2_ref, out_ref,
                          acc_ref, mid_ref):
    """One batch element per grid step.

    xf_ref : (1, D+2, H+2, W*Cin)   bf16, D/H zero-padded input, W & C fused
    idn_ref: (1, D*H, W*Cin)        f32 residual (lane-dense, unpadded x)
    w1_ref : (3, 3, W*Cin, W*Cout)  bf16 banded conv1 weights (kw folded in)
    w2_ref : (3, 3, W*Cout, W*Cout) bf16 banded conv2 weights
    s*_ref, b*_ref : (1, W*Cout)    f32 folded BN scale/bias, tiled over W
    out_ref: (1, D*H, W*Cout)       f32
    acc_ref: (D*H, W*Cout)          f32 VMEM accumulator scratch
    mid_ref: (D+2, H+2, W*Cout)     bf16 VMEM scratch (D/H-padded conv1 act.)
    """
    _, DH, Lout = out_ref.shape
    _, Dp, Hp, Lin = xf_ref.shape
    D, H = Dp - 2, Hp - 2

    taps = [(kd, kh) for kd in range(3) for kh in range(3)]

    # ---- conv1: 9 MXU matmuls, K = W*Cin (kw folded into banded weights) ----
    for t, (kd, kh) in enumerate(taps):
        a = xf_ref[0, kd:kd + D, kh:kh + H, :].reshape(DH, Lin)      # bf16
        p = jnp.dot(a, w1_ref[kd, kh], preferred_element_type=jnp.float32)
        if t == 0:
            acc_ref[...] = p
        else:
            acc_ref[...] += p

    # ---- bn1 + relu (f32, lane-dense) ----
    y = jnp.maximum(acc_ref[...] * s1_ref[0] + b1_ref[0], 0.0)

    # ---- stage conv1 activation into D/H-padded bf16 scratch ----
    # Only the 4 halo faces must be zero; interior is fully overwritten below.
    zface_d = jnp.zeros((1, Hp, Lout), mid_ref.dtype)
    zface_h = jnp.zeros((Dp, 1, Lout), mid_ref.dtype)
    mid_ref[0:1, :, :] = zface_d
    mid_ref[Dp - 1:Dp, :, :] = zface_d
    mid_ref[:, 0:1, :] = zface_h
    mid_ref[:, Hp - 1:Hp, :] = zface_h
    mid_ref[1:1 + D, 1:1 + H, :] = y.reshape(D, H, Lout).astype(mid_ref.dtype)

    # ---- conv2: 9 MXU matmuls, K = W*Cout ----
    for t, (kd, kh) in enumerate(taps):
        a = mid_ref[kd:kd + D, kh:kh + H, :].reshape(DH, Lout)       # bf16
        p = jnp.dot(a, w2_ref[kd, kh], preferred_element_type=jnp.float32)
        if t == 0:
            acc_ref[...] = p
        else:
            acc_ref[...] += p

    # ---- bn2 + residual add + relu (f32) ----
    z = acc_ref[...] * s2_ref[0] + b2_ref[0] + idn_ref[0]
    out_ref[0] = jnp.maximum(z, 0.0).astype(out_ref.dtype)


def _fold_bn(gamma, beta, mean, var, eps=1e-5):
    scale = gamma / jnp.sqrt(var + eps)
    bias = beta - mean * scale
    return scale, bias


def _fold_w_band(w, W):
    """(3,3,3,Ci,Co) DHWIO weights -> (3,3,W*Ci,W*Co) block-banded matrices.

    big[kd, kh, wi*Ci+ci, wo*Co+co] = w[kd, kh, wi-wo+1, ci, co] inside the
    band (|wi - wo| <= 1), zero outside; W-boundary taps fall outside [0, W)
    and are simply absent (equivalent to zero padding along W).
    """
    kD, kH, kW, Ci, Co = w.shape
    big = jnp.zeros((kD, kH, W, Ci, W, Co), w.dtype)
    for wo in range(W):
        for kw in range(kW):
            wi = wo + kw - 1
            if 0 <= wi < W:
                big = big.at[:, :, wi, :, wo, :].set(w[:, :, kw, :, :])
    return big.reshape(kD, kH, W * Ci, W * Co)


@jax.jit
def basic_block3d(x, params):
    """x: (N, D, H, W, Cin) float32 channels-last. Returns (N, D, H, W, Cout)."""
    N, D, H, W, Cin = x.shape
    w1, w2 = params["w1"], params["w2"]
    Cout = w1.shape[-1]
    if Cin != Cout:
        # TODO(synk): stride>1 / downsample branch (projection residual).
        raise NotImplementedError("BasicBlock3D kernel requires Cin == Cout "
                                  "(stride=1, downsample=None).")

    Lin, Lout, DH = W * Cin, W * Cout, D * H

    # Folded BN params, tiled across W so they broadcast on the fused lane axis.
    s1, b1 = _fold_bn(params["gamma1"], params["beta1"],
                      params["mean1"], params["var1"])
    s2, b2 = _fold_bn(params["gamma2"], params["beta2"],
                      params["mean2"], params["var2"])
    s1t = jnp.tile(s1, W).reshape(1, Lout).astype(jnp.float32)
    b1t = jnp.tile(b1, W).reshape(1, Lout).astype(jnp.float32)
    s2t = jnp.tile(s2, W).reshape(1, Lout).astype(jnp.float32)
    b2t = jnp.tile(b2, W).reshape(1, Lout).astype(jnp.float32)

    # Banded weights (kw folded into the contraction), bf16 matmul operands.
    w1b = _fold_w_band(w1, W).astype(jnp.bfloat16)
    w2b = _fold_w_band(w2, W).astype(jnp.bfloat16)

    # D/H zero padding (Conv3d padding=1); W padding is absorbed by the band.
    xp = jnp.pad(x, ((0, 0), (1, 1), (1, 1), (0, 0), (0, 0)))
    xf = xp.reshape(N, D + 2, H + 2, Lin).astype(jnp.bfloat16)
    idn = x.reshape(N, DH, Lin).astype(jnp.float32)      # residual, lane-dense

    full_w = lambda n: (0, 0, 0, 0)
    full_sb = lambda n: (0, 0)

    out_flat = pl.pallas_call(
        _basic_block3d_kernel,
        out_shape=jax.ShapeDtypeStruct((N, DH, Lout), jnp.float32),
        grid_spec=pltpu.PrefetchScalarGridSpec(
            num_scalar_prefetch=0,
            grid=(N,),
            in_specs=[
                pl.BlockSpec((1, D + 2, H + 2, Lin), lambda n: (n, 0, 0, 0)),
                pl.BlockSpec((1, DH, Lin), lambda n: (n, 0, 0)),
                pl.BlockSpec((3, 3, Lin, Lout), full_w),
                pl.BlockSpec((1, Lout), full_sb),
                pl.BlockSpec((1, Lout), full_sb),
                pl.BlockSpec((3, 3, Lout, Lout), full_w),
                pl.BlockSpec((1, Lout), full_sb),
                pl.BlockSpec((1, Lout), full_sb),
            ],
            out_specs=pl.BlockSpec((1, DH, Lout), lambda n: (n, 0, 0)),
            scratch_shapes=[
                pltpu.VMEM((DH, Lout), jnp.float32),           # conv accumulator
                pltpu.VMEM((D + 2, H + 2, Lout), jnp.bfloat16)  # padded conv1 act
            ],
        ),
        compiler_params=pltpu.CompilerParams(
            dimension_semantics=("parallel",),
            vmem_limit_bytes=64 * 1024 * 1024),
    )(xf, idn, w1b, s1t, b1t, w2b, s2t, b2t)

    return out_flat.reshape(N, D, H, W, Cout)


def _reference(x, params, eps=1e-5):
    """Pure-JAX reference with matching precision (bf16 conv operands, f32 acc)."""
    dn = ("NDHWC", "DHWIO", "NDHWC")

    def conv_bf16(v, w):
        return jax.lax.conv_general_dilated(
            v.astype(jnp.bfloat16), w.astype(jnp.bfloat16),
            window_strides=(1, 1, 1), padding="SAME",
            dimension_numbers=dn, preferred_element_type=jnp.float32)

    s1, b1 = _fold_bn(params["gamma1"], params["beta1"],
                      params["mean1"], params["var1"], eps)
    s2, b2 = _fold_bn(params["gamma2"], params["beta2"],
                      params["mean2"], params["var2"], eps)

    y = jnp.maximum(conv_bf16(x, params["w1"]) * s1 + b1, 0.0)
    z = conv_bf16(y, params["w2"]) * s2 + b2
    return jnp.maximum(z + x, 0.0)


def _init_params(key, in_planes, planes):
    ks = jax.random.split(key, 10)
    fan1 = in_planes * 27
    fan2 = planes * 27
    return {
        "w1": jax.random.normal(ks[0], (3, 3, 3, in_planes, planes),
                                jnp.float32) * (2.0 / fan1) ** 0.5,
        "w2": jax.random.normal(ks[1], (3, 3, 3, planes, planes),
                                jnp.float32) * (2.0 / fan2) ** 0.5,
        "gamma1": jax.random.uniform(ks[2], (planes,), jnp.float32, 0.5, 1.5),
        "beta1": jax.random.normal(ks[3], (planes,), jnp.float32) * 0.1,
        "mean1": jax.random.normal(ks[4], (planes,), jnp.float32) * 0.1,
        "var1": jax.random.uniform(ks[5], (planes,), jnp.float32, 0.5, 1.5),
        "gamma2": jax.random.uniform(ks[6], (planes,), jnp.float32, 0.5, 1.5),
        "beta2": jax.random.normal(ks[7], (planes,), jnp.float32) * 0.1,
        "mean2": jax.random.normal(ks[8], (planes,), jnp.float32) * 0.1,
        "var2": jax.random.uniform(ks[9], (planes,), jnp.float32, 0.5, 1.5),
    }


if __name__ == "__main__":
    key = jax.random.PRNGKey(0)
    kx, kp = jax.random.split(key)

    N, D, H, W = 2, 8, 8, 8
    in_planes = planes = 16   # W * planes = 128 -> fully lane-dense layout

    x = jax.random.normal(kx, (N, D, H, W, in_planes), jnp.float32)
    params = _init_params(kp, in_planes, planes)

    out = jax.block_until_ready(basic_block3d(x, params))
    ref = jax.block_until_ready(_reference(x, params))

    np.testing.assert_allclose(np.asarray(out), np.asarray(ref),
                               rtol=5e-3, atol=5e-3)
    print("KERNEL_OK")
</pallas_src>

<mosaic_0001>
module attributes {stable_mosaic.version = 11 : i64} {
  func.func @_basic_block3d_kernel(%arg0: i32, %arg1: memref<1x10x10x128xbf16, #tpu.memory_space<vmem>>, %arg2: memref<1x64x128xf32, #tpu.memory_space<vmem>>, %arg3: memref<3x3x128x128xbf16, #tpu.memory_space<vmem>>, %arg4: memref<1x128xf32, #tpu.memory_space<vmem>>, %arg5: memref<1x128xf32, #tpu.memory_space<vmem>>, %arg6: memref<3x3x128x128xbf16, #tpu.memory_space<vmem>>, %arg7: memref<1x128xf32, #tpu.memory_space<vmem>>, %arg8: memref<1x128xf32, #tpu.memory_space<vmem>>, %arg9: memref<1x64x128xf32, #tpu.memory_space<vmem>>, %arg10: memref<64x128xf32, #tpu.memory_space<vmem>>, %arg11: memref<10x10x128xbf16, #tpu.memory_space<vmem>>) attributes {dimension_semantics = [#tpu.dimension_semantics<parallel>], iteration_bounds = array<i64: 2>, scalar_prefetch = 0 : i64, scratch_operands = 2 : i64, tpu.core_type = #tpu.core_type<tc>, window_params = [{transform_indices = @transform_0, window_bounds = array<i64: 1, 10, 10, 128>}, {transform_indices = @transform_1, window_bounds = array<i64: 1, 64, 128>}, {pipeline_mode = #tpu.pipeline_mode<synchronous>, transform_indices = @transform_2, window_bounds = array<i64: 3, 3, 128, 128>}, {pipeline_mode = #tpu.pipeline_mode<synchronous>, transform_indices = @transform_3, window_bounds = array<i64: 1, 128>}, {pipeline_mode = #tpu.pipeline_mode<synchronous>, transform_indices = @transform_4, window_bounds = array<i64: 1, 128>}, {pipeline_mode = #tpu.pipeline_mode<synchronous>, transform_indices = @transform_5, window_bounds = array<i64: 3, 3, 128, 128>}, {pipeline_mode = #tpu.pipeline_mode<synchronous>, transform_indices = @transform_6, window_bounds = array<i64: 1, 128>}, {pipeline_mode = #tpu.pipeline_mode<synchronous>, transform_indices = @transform_7, window_bounds = array<i64: 1, 128>}, {transform_indices = @transform_8, window_bounds = array<i64: 1, 64, 128>}]} {
    %c0 = arith.constant 0 : index
    %c0_0 = arith.constant 0 : index
    %c0_1 = arith.constant 0 : index
    %c0_2 = arith.constant 0 : index
    %0 = vector.load %arg1[%c0, %c0_0, %c0_1, %c0_2] : memref<1x10x10x128xbf16, #tpu.memory_space<vmem>>, vector<1x8x8x128xbf16>
    %1 = vector.shape_cast %0 : vector<1x8x8x128xbf16> to vector<8x8x128xbf16>
    %2 = vector.shape_cast %1 : vector<8x8x128xbf16> to vector<64x128xbf16>
    %c0_3 = arith.constant 0 : index
    %c0_4 = arith.constant 0 : index
    %c0_5 = arith.constant 0 : index
    %c0_6 = arith.constant 0 : index
    %3 = vector.load %arg3[%c0_3, %c0_4, %c0_5, %c0_6] : memref<3x3x128x128xbf16, #tpu.memory_space<vmem>>, vector<1x1x128x128xbf16>
    %4 = vector.shape_cast %3 : vector<1x1x128x128xbf16> to vector<128x128xbf16>
    %cst = arith.constant dense<0.000000e+00> : vector<64x128xf32>
    %5 = tpu.matmul %2, %4, %cst {dimension_numbers = #tpu.dot_dimension_numbers<[1], [0], [0], [1], [0, 0, 1, 1], [], []>} : vector<64x128xbf16>, vector<128x128xbf16>, vector<64x128xf32> -> vector<64x128xf32>
    %c0_7 = arith.constant 0 : index
    %c0_8 = arith.constant 0 : index
    %6 = vector.load %arg10[%c0_7, %c0_8] : memref<64x128xf32, #tpu.memory_space<vmem>>, vector<64x128xf32>
    tpu.vector_store %arg10[%c0_7, %c0_8], %5 {strides = array<i32>} : memref<64x128xf32, #tpu.memory_space<vmem>>, vector<64x128xf32>,
    %c0_9 = arith.constant 0 : index
    %c0_10 = arith.constant 0 : index
    %c1 = arith.constant 1 : index
    %c0_11 = arith.constant 0 : index
    %7 = vector.load %arg1[%c0_9, %c0_10, %c1, %c0_11] : memref<1x10x10x128xbf16, #tpu.memory_space<vmem>>, vector<1x8x8x128xbf16>
    %8 = vector.shape_cast %7 : vector<1x8x8x128xbf16> to vector<8x8x128xbf16>
    %9 = vector.shape_cast %8 : vector<8x8x128xbf16> to vector<64x128xbf16>
    %c0_12 = arith.constant 0 : index
    %c1_13 = arith.constant 1 : index
    %c0_14 = arith.constant 0 : index
    %c0_15 = arith.constant 0 : index
    %10 = vector.load %arg3[%c0_12, %c1_13, %c0_14, %c0_15] : memref<3x3x128x128xbf16, #tpu.memory_space<vmem>>, vector<1x1x128x128xbf16>
    %11 = vector.shape_cast %10 : vector<1x1x128x128xbf16> to vector<128x128xbf16>
    %cst_16 = arith.constant dense<0.000000e+00> : vector<64x128xf32>
    %12 = tpu.matmul %9, %11, %cst_16 {dimension_numbers = #tpu.dot_dimension_numbers<[1], [0], [0], [1], [0, 0, 1, 1], [], []>} : vector<64x128xbf16>, vector<128x128xbf16>, vector<64x128xf32> -> vector<64x128xf32>
    %c0_17 = arith.constant 0 : index
    %c0_18 = arith.constant 0 : index
    %13 = vector.load %arg10[%c0_17, %c0_18] : memref<64x128xf32, #tpu.memory_space<vmem>>, vector<64x128xf32>
    %14 = arith.addf %13, %12 : vector<64x128xf32>
    %c0_19 = arith.constant 0 : index
    %c0_20 = arith.constant 0 : index
    %15 = vector.load %arg10[%c0_19, %c0_20] : memref<64x128xf32, #tpu.memory_space<vmem>>, vector<64x128xf32>
    tpu.vector_store %arg10[%c0_19, %c0_20], %14 {strides = array<i32>} : memref<64x128xf32, #tpu.memory_space<vmem>>, vector<64x128xf32>,
    %c0_21 = arith.constant 0 : index
    %c0_22 = arith.constant 0 : index
    %c2 = arith.constant 2 : index
    %c0_23 = arith.constant 0 : index
    %16 = vector.load %arg1[%c0_21, %c0_22, %c2, %c0_23] : memref<1x10x10x128xbf16, #tpu.memory_space<vmem>>, vector<1x8x8x128xbf16>
    %17 = vector.shape_cast %16 : vector<1x8x8x128xbf16> to vector<8x8x128xbf16>
    %18 = vector.shape_cast %17 : vector<8x8x128xbf16> to vector<64x128xbf16>
    %c0_24 = arith.constant 0 : index
    %c2_25 = arith.constant 2 : index
    %c0_26 = arith.constant 0 : index
    %c0_27 = arith.constant 0 : index
    %19 = vector.load %arg3[%c0_24, %c2_25, %c0_26, %c0_27] : memref<3x3x128x128xbf16, #tpu.memory_space<vmem>>, vector<1x1x128x128xbf16>
    %20 = vector.shape_cast %19 : vector<1x1x128x128xbf16> to vector<128x128xbf16>
    %cst_28 = arith.constant dense<0.000000e+00> : vector<64x128xf32>
    %21 = tpu.matmul %18, %20, %cst_28 {dimension_numbers = #tpu.dot_dimension_numbers<[1], [0], [0], [1], [0, 0, 1, 1], [], []>} : vector<64x128xbf16>, vector<128x128xbf16>, vector<64x128xf32> -> vector<64x128xf32>
    %c0_29 = arith.constant 0 : index
    %c0_30 = arith.constant 0 : index
    %22 = vector.load %arg10[%c0_29, %c0_30] : memref<64x128xf32, #tpu.memory_space<vmem>>, vector<64x128xf32>
    %23 = arith.addf %22, %21 : vector<64x128xf32>
    %c0_31 = arith.constant 0 : index
    %c0_32 = arith.constant 0 : index
    %24 = vector.load %arg10[%c0_31, %c0_32] : memref<64x128xf32, #tpu.memory_space<vmem>>, vector<64x128xf32>
    tpu.vector_store %arg10[%c0_31, %c0_32], %23 {strides = array<i32>} : memref<64x128xf32, #tpu.memory_space<vmem>>, vector<64x128xf32>,
    %c0_33 = arith.constant 0 : index
    %c1_34 = arith.constant 1 : index
    %c0_35 = arith.constant 0 : index
    %c0_36 = arith.constant 0 : index
    %25 = vector.load %arg1[%c0_33, %c1_34, %c0_35, %c0_36] : memref<1x10x10x128xbf16, #tpu.memory_space<vmem>>, vector<1x8x8x128xbf16>
    %26 = vector.shape_cast %25 : vector<1x8x8x128xbf16> to vector<8x8x128xbf16>
    %27 = vector.shape_cast %26 : vector<8x8x128xbf16> to vector<64x128xbf16>
    %c1_37 = arith.constant 1 : index
    %c0_38 = arith.constant 0 : index
    %c0_39 = arith.constant 0 : index
    %c0_40 = arith.constant 0 : index
    %28 = vector.load %arg3[%c1_37, %c0_38, %c0_39, %c0_40] : memref<3x3x128x128xbf16, #tpu.memory_space<vmem>>, vector<1x1x128x128xbf16>
    %29 = vector.shape_cast %28 : vector<1x1x128x128xbf16> to vector<128x128xbf16>
    %cst_41 = arith.constant dense<0.000000e+00> : vector<64x128xf32>
    %30 = tpu.matmul %27, %29, %cst_41 {dimension_numbers = #tpu.dot_dimension_numbers<[1], [0], [0], [1], [0, 0, 1, 1], [], []>} : vector<64x128xbf16>, vector<128x128xbf16>, vector<64x128xf32> -> vector<64x128xf32>
    %c0_42 = arith.constant 0 : index
    %c0_43 = arith.constant 0 : index
    %31 = vector.load %arg10[%c0_42, %c0_43] : memref<64x128xf32, #tpu.memory_space<vmem>>, vector<64x128xf32>
    %32 = arith.addf %31, %30 : vector<64x128xf32>
    %c0_44 = arith.constant 0 : index
    %c0_45 = arith.constant 0 : index
    %33 = vector.load %arg10[%c0_44, %c0_45] : memref<64x128xf32, #tpu.memory_space<vmem>>, vector<64x128xf32>
    tpu.vector_store %arg10[%c0_44, %c0_45], %32 {strides = array<i32>} : memref<64x128xf32, #tpu.memory_space<vmem>>, vector<64x128xf32>,
    %c0_46 = arith.constant 0 : index
    %c1_47 = arith.constant 1 : index
    %c1_48 = arith.constant 1 : index
    %c0_49 = arith.constant 0 : index
    %34 = vector.load %arg1[%c0_46, %c1_47, %c1_48, %c0_49] : memref<1x10x10x128xbf16, #tpu.memory_space<vmem>>, vector<1x8x8x128xbf16>
    %35 = vector.shape_cast %34 : vector<1x8x8x128xbf16> to vector<8x8x128xbf16>
    %36 = vector.shape_cast %35 : vector<8x8x128xbf16> to vector<64x128xbf16>
    %c1_50 = arith.constant 1 : index
    %c1_51 = arith.constant 1 : index
    %c0_52 = arith.constant 0 : index
    %c0_53 = arith.constant 0 : index
    %37 = vector.load %arg3[%c1_50, %c1_51, %c0_52, %c0_53] : memref<3x3x128x128xbf16, #tpu.memory_space<vmem>>, vector<1x1x128x128xbf16>
    %38 = vector.shape_cast %37 : vector<1x1x128x128xbf16> to vector<128x128xbf16>
    %cst_54 = arith.constant dense<0.000000e+00> : vector<64x128xf32>
    %39 = tpu.matmul %36, %38, %cst_54 {dimension_numbers = #tpu.dot_dimension_numbers<[1], [0], [0], [1], [0, 0, 1, 1], [], []>} : vector<64x128xbf16>, vector<128x128xbf16>, vector<64x128xf32> -> vector<64x128xf32>
    %c0_55 = arith.constant 0 : index
    %c0_56 = arith.constant 0 : index
    %40 = vector.load %arg10[%c0_55, %c0_56] : memref<64x128xf32, #tpu.memory_space<vmem>>, vector<64x128xf32>
    %41 = arith.addf %40, %39 : vector<64x128xf32>
    %c0_57 = arith.constant 0 : index
    %c0_58 = arith.constant 0 : index
    %42 = vector.load %arg10[%c0_57, %c0_58] : memref<64x128xf32, #tpu.memory_space<vmem>>, vector<64x128xf32>
    tpu.vector_store %arg10[%c0_57, %c0_58], %41 {strides = array<i32>} : memref<64x128xf32, #tpu.memory_space<vmem>>, vector<64x128xf32>,
    %c0_59 = arith.constant 0 : index
    %c1_60 = arith.constant 1 : index
    %c2_61 = arith.constant 2 : index
    %c0_62 = arith.constant 0 : index
    %43 = vector.load %arg1[%c0_59, %c1_60, %c2_61, %c0_62] : memref<1x10x10x128xbf16, #tpu.memory_space<vmem>>, vector<1x8x8x128xbf16>
    %44 = vector.shape_cast %43 : vector<1x8x8x128xbf16> to vector<8x8x128xbf16>
    %45 = vector.shape_cast %44 : vector<8x8x128xbf16> to vector<64x128xbf16>
    %c1_63 = arith.constant 1 : index
    %c2_64 = arith.constant 2 : index
    %c0_65 = arith.constant 0 : index
    %c0_66 = arith.constant 0 : index
    %46 = vector.load %arg3[%c1_63, %c2_64, %c0_65, %c0_66] : memref<3x3x128x128xbf16, #tpu.memory_space<vmem>>, vector<1x1x128x128xbf16>
    %47 = vector.shape_cast %46 : vector<1x1x128x128xbf16> to vector<128x128xbf16>
    %cst_67 = arith.constant dense<0.000000e+00> : vector<64x128xf32>
    %48 = tpu.matmul %45, %47, %cst_67 {dimension_numbers = #tpu.dot_dimension_numbers<[1], [0], [0], [1], [0, 0, 1, 1], [], []>} : vector<64x128xbf16>, vector<128x128xbf16>, vector<64x128xf32> -> vector<64x128xf32>
    %c0_68 = arith.constant 0 : index
    %c0_69 = arith.constant 0 : index
    %49 = vector.load %arg10[%c0_68, %c0_69] : memref<64x128xf32, #tpu.memory_space<vmem>>, vector<64x128xf32>
    %50 = arith.addf %49, %48 : vector<64x128xf32>
    %c0_70 = arith.constant 0 : index
    %c0_71 = arith.constant 0 : index
    %51 = vector.load %arg10[%c0_70, %c0_71] : memref<64x128xf32, #tpu.memory_space<vmem>>, vector<64x128xf32>
    tpu.vector_store %arg10[%c0_70, %c0_71], %50 {strides = array<i32>} : memref<64x128xf32, #tpu.memory_space<vmem>>, vector<64x128xf32>,
    %c0_72 = arith.constant 0 : index
    %c2_73 = arith.constant 2 : index
    %c0_74 = arith.constant 0 : index
    %c0_75 = arith.constant 0 : index
    %52 = vector.load %arg1[%c0_72, %c2_73, %c0_74, %c0_75] : memref<1x10x10x128xbf16, #tpu.memory_space<vmem>>, vector<1x8x8x128xbf16>
    %53 = vector.shape_cast %52 : vector<1x8x8x128xbf16> to vector<8x8x128xbf16>
    %54 = vector.shape_cast %53 : vector<8x8x128xbf16> to vector<64x128xbf16>
    %c2_76 = arith.constant 2 : index
    %c0_77 = arith.constant 0 : index
    %c0_78 = arith.constant 0 : index
    %c0_79 = arith.constant 0 : index
    %55 = vector.load %arg3[%c2_76, %c0_77, %c0_78, %c0_79] : memref<3x3x128x128xbf16, #tpu.memory_space<vmem>>, vector<1x1x128x128xbf16>
    %56 = vector.shape_cast %55 : vector<1x1x128x128xbf16> to vector<128x128xbf16>
    %cst_80 = arith.constant dense<0.000000e+00> : vector<64x128xf32>
    %57 = tpu.matmul %54, %56, %cst_80 {dimension_numbers = #tpu.dot_dimension_numbers<[1], [0], [0], [1], [0, 0, 1, 1], [], []>} : vector<64x128xbf16>, vector<128x128xbf16>, vector<64x128xf32> -> vector<64x128xf32>
    %c0_81 = arith.constant 0 : index
    %c0_82 = arith.constant 0 : index
    %58 = vector.load %arg10[%c0_81, %c0_82] : memref<64x128xf32, #tpu.memory_space<vmem>>, vector<64x128xf32>
    %59 = arith.addf %58, %57 : vector<64x128xf32>
    %c0_83 = arith.constant 0 : index
    %c0_84 = arith.constant 0 : index
    %60 = vector.load %arg10[%c0_83, %c0_84] : memref<64x128xf32, #tpu.memory_space<vmem>>, vector<64x128xf32>
    tpu.vector_store %arg10[%c0_83, %c0_84], %59 {strides = array<i32>} : memref<64x128xf32, #tpu.memory_space<vmem>>, vector<64x128xf32>,
    %c0_85 = arith.constant 0 : index
    %c2_86 = arith.constant 2 : index
    %c1_87 = arith.constant 1 : index
    %c0_88 = arith.constant 0 : index
    %61 = vector.load %arg1[%c0_85, %c2_86, %c1_87, %c0_88] : memref<1x10x10x128xbf16, #tpu.memory_space<vmem>>, vector<1x8x8x128xbf16>
    %62 = vector.shape_cast %61 : vector<1x8x8x128xbf16> to vector<8x8x128xbf16>
    %63 = vector.shape_cast %62 : vector<8x8x128xbf16> to vector<64x128xbf16>
    %c2_89 = arith.constant 2 : index
    %c1_90 = arith.constant 1 : index
    %c0_91 = arith.constant 0 : index
    %c0_92 = arith.constant 0 : index
    %64 = vector.load %arg3[%c2_89, %c1_90, %c0_91, %c0_92] : memref<3x3x128x128xbf16, #tpu.memory_space<vmem>>, vector<1x1x128x128xbf16>
    %65 = vector.shape_cast %64 : vector<1x1x128x128xbf16> to vector<128x128xbf16>
    %cst_93 = arith.constant dense<0.000000e+00> : vector<64x128xf32>
    %66 = tpu.matmul %63, %65, %cst_93 {dimension_numbers = #tpu.dot_dimension_numbers<[1], [0], [0], [1], [0, 0, 1, 1], [], []>} : vector<64x128xbf16>, vector<128x128xbf16>, vector<64x128xf32> -> vector<64x128xf32>
    %c0_94 = arith.constant 0 : index
    %c0_95 = arith.constant 0 : index
    %67 = vector.load %arg10[%c0_94, %c0_95] : memref<64x128xf32, #tpu.memory_space<vmem>>, vector<64x128xf32>
    %68 = arith.addf %67, %66 : vector<64x128xf32>
    %c0_96 = arith.constant 0 : index
    %c0_97 = arith.constant 0 : index
    %69 = vector.load %arg10[%c0_96, %c0_97] : memref<64x128xf32, #tpu.memory_space<vmem>>, vector<64x128xf32>
    tpu.vector_store %arg10[%c0_96, %c0_97], %68 {strides = array<i32>} : memref<64x128xf32, #tpu.memory_space<vmem>>, vector<64x128xf32>,
    %c0_98 = arith.constant 0 : index
    %c2_99 = arith.constant 2 : index
    %c2_100 = arith.constant 2 : index
    %c0_101 = arith.constant 0 : index
    %70 = vector.load %arg1[%c0_98, %c2_99, %c2_100, %c0_101] : memref<1x10x10x128xbf16, #tpu.memory_space<vmem>>, vector<1x8x8x128xbf16>
    %71 = vector.shape_cast %70 : vector<1x8x8x128xbf16> to vector<8x8x128xbf16>
    %72 = vector.shape_cast %71 : vector<8x8x128xbf16> to vector<64x128xbf16>
    %c2_102 = arith.constant 2 : index
    %c2_103 = arith.constant 2 : index
    %c0_104 = arith.constant 0 : index
    %c0_105 = arith.constant 0 : index
    %73 = vector.load %arg3[%c2_102, %c2_103, %c0_104, %c0_105] : memref<3x3x128x128xbf16, #tpu.memory_space<vmem>>, vector<1x1x128x128xbf16>
    %74 = vector.shape_cast %73 : vector<1x1x128x128xbf16> to vector<128x128xbf16>
    %cst_106 = arith.constant dense<0.000000e+00> : vector<64x128xf32>
    %75 = tpu.matmul %72, %74, %cst_106 {dimension_numbers = #tpu.dot_dimension_numbers<[1], [0], [0], [1], [0, 0, 1, 1], [], []>} : vector<64x128xbf16>, vector<128x128xbf16>, vector<64x128xf32> -> vector<64x128xf32>
    %c0_107 = arith.constant 0 : index
    %c0_108 = arith.constant 0 : index
    %76 = vector.load %arg10[%c0_107, %c0_108] : memref<64x128xf32, #tpu.memory_space<vmem>>, vector<64x128xf32>
    %77 = arith.addf %76, %75 : vector<64x128xf32>
    %c0_109 = arith.constant 0 : index
    %c0_110 = arith.constant 0 : index
    %78 = vector.load %arg10[%c0_109, %c0_110] : memref<64x128xf32, #tpu.memory_space<vmem>>, vector<64x128xf32>
    tpu.vector_store %arg10[%c0_109, %c0_110], %77 {strides = array<i32>} : memref<64x128xf32, #tpu.memory_space<vmem>>, vector<64x128xf32>,
    %c0_111 = arith.constant 0 : index
    %c0_112 = arith.constant 0 : index
    %79 = vector.load %arg10[%c0_111, %c0_112] : memref<64x128xf32, #tpu.memory_space<vmem>>, vector<64x128xf32>
    %c0_113 = arith.constant 0 : index
    %c0_114 = arith.constant 0 : index
    %80 = vector.load %arg4[%c0_113, %c0_114] : memref<1x128xf32, #tpu.memory_space<vmem>>, vector<1x128xf32>
    %81 = vector.shape_cast %80 : vector<1x128xf32> to vector<128xf32>
    %82 = vector.shape_cast %81 : vector<128xf32> to vector<1x128xf32>
    %83 = vector.broadcast %82 : vector<1x128xf32> to vector<64x128xf32>
    %84 = arith.mulf %79, %83 : vector<64x128xf32>
    %c0_115 = arith.constant 0 : index
    %c0_116 = arith.constant 0 : index
    %85 = vector.load %arg5[%c0_115, %c0_116] : memref<1x128xf32, #tpu.memory_space<vmem>>, vector<1x128xf32>
    %86 = vector.shape_cast %85 : vector<1x128xf32> to vector<128xf32>
    %87 = vector.shape_cast %86 : vector<128xf32> to vector<1x128xf32>
    %88 = vector.broadcast %87 : vector<1x128xf32> to vector<64x128xf32>
    %89 = arith.addf %84, %88 : vector<64x128xf32>
    %cst_117 = arith.constant 0.000000e+00 : f32
    %90 = vector.broadcast %cst_117 : f32 to vector<64x128xf32>
    %91 = arith.maximumf %89, %90 : vector<64x128xf32>
    %cst_118 = arith.constant 0.000000e+00 : bf16
    %92 = vector.broadcast %cst_118 : bf16 to vector<1x10x128xbf16>
    %cst_119 = arith.constant 0.000000e+00 : bf16
    %93 = vector.broadcast %cst_119 : bf16 to vector<10x1x128xbf16>
    %c0_120 = arith.constant 0 : index
    %c0_121 = arith.constant 0 : index
    %c0_122 = arith.constant 0 : index
    %94 = vector.load %arg11[%c0_120, %c0_121, %c0_122] : memref<10x10x128xbf16, #tpu.memory_space<vmem>>, vector<1x10x128xbf16>
    tpu.vector_store %arg11[%c0_120, %c0_121, %c0_122], %92 {strides = array<i32>} : memref<10x10x128xbf16, #tpu.memory_space<vmem>>, vector<1x10x128xbf16>,
    %c9 = arith.constant 9 : index
    %c0_123 = arith.constant 0 : index
    %c0_124 = arith.constant 0 : index
    %95 = vector.load %arg11[%c9, %c0_123, %c0_124] : memref<10x10x128xbf16, #tpu.memory_space<vmem>>, vector<1x10x128xbf16>
    tpu.vector_store %arg11[%c9, %c0_123, %c0_124], %92 {strides = array<i32>} : memref<10x10x128xbf16, #tpu.memory_space<vmem>>, vector<1x10x128xbf16>,
    %c0_125 = arith.constant 0 : index
    %c0_126 = arith.constant 0 : index
    %c0_127 = arith.constant 0 : index
    %96 = vector.load %arg11[%c0_125, %c0_126, %c0_127] : memref<10x10x128xbf16, #tpu.memory_space<vmem>>, vector<10x1x128xbf16>
    tpu.vector_store %arg11[%c0_125, %c0_126, %c0_127], %93 {strides = array<i32>} : memref<10x10x128xbf16, #tpu.memory_space<vmem>>, vector<10x1x128xbf16>,
    %c0_128 = arith.constant 0 : index
    %c9_129 = arith.constant 9 : index
    %c0_130 = arith.constant 0 : index
    %97 = vector.load %arg11[%c0_128, %c9_129, %c0_130] : memref<10x10x128xbf16, #tpu.memory_space<vmem>>, vector<10x1x128xbf16>
    tpu.vector_store %arg11[%c0_128, %c9_129, %c0_130], %93 {strides = array<i32>} : memref<10x10x128xbf16, #tpu.memory_space<vmem>>, vector<10x1x128xbf16>,
    %98 = vector.shape_cast %91 : vector<64x128xf32> to vector<8x8x128xf32>
    %99 = arith.truncf %98 : vector<8x8x128xf32> to vector<8x8x128xbf16>
    %c1_131 = arith.constant 1 : index
    %c1_132 = arith.constant 1 : index
    %c0_133 = arith.constant 0 : index
    %100 = vector.load %arg11[%c1_131, %c1_132, %c0_133] : memref<10x10x128xbf16, #tpu.memory_space<vmem>>, vector<8x8x128xbf16>
    tpu.vector_store %arg11[%c1_131, %c1_132, %c0_133], %99 {strides = array<i32>} : memref<10x10x128xbf16, #tpu.memory_space<vmem>>, vector<8x8x128xbf16>,
    %c0_134 = arith.constant 0 : index
    %c0_135 = arith.constant 0 : index
    %c0_136 = arith.constant 0 : index
    %101 = vector.load %arg11[%c0_134, %c0_135, %c0_136] : memref<10x10x128xbf16, #tpu.memory_space<vmem>>, vector<8x8x128xbf16>
    %102 = vector.shape_cast %101 : vector<8x8x128xbf16> to vector<64x128xbf16>
    %c0_137 = arith.constant 0 : index
    %c0_138 = arith.constant 0 : index
    %c0_139 = arith.constant 0 : index
    %c0_140 = arith.constant 0 : index
    %103 = vector.load %arg6[%c0_137, %c0_138, %c0_139, %c0_140] : memref<3x3x128x128xbf16, #tpu.memory_space<vmem>>, vector<1x1x128x128xbf16>
    %104 = vector.shape_cast %103 : vector<1x1x128x128xbf16> to vector<128x128xbf16>
    %cst_141 = arith.constant dense<0.000000e+00> : vector<64x128xf32>
    %105 = tpu.matmul %102, %104, %cst_141 {dimension_numbers = #tpu.dot_dimension_numbers<[1], [0], [0], [1], [0, 0, 1, 1], [], []>} : vector<64x128xbf16>, vector<128x128xbf16>, vector<64x128xf32> -> vector<64x128xf32>
    %c0_142 = arith.constant 0 : index
    %c0_143 = arith.constant 0 : index
    %106 = vector.load %arg10[%c0_142, %c0_143] : memref<64x128xf32, #tpu.memory_space<vmem>>, vector<64x128xf32>
    tpu.vector_store %arg10[%c0_142, %c0_143], %105 {strides = array<i32>} : memref<64x128xf32, #tpu.memory_space<vmem>>, vector<64x128xf32>,
    %c0_144 = arith.constant 0 : index
    %c1_145 = arith.constant 1 : index
    %c0_146 = arith.constant 0 : index
    %107 = vector.load %arg11[%c0_144, %c1_145, %c0_146] : memref<10x10x128xbf16, #tpu.memory_space<vmem>>, vector<8x8x128xbf16>
    %108 = vector.shape_cast %107 : vector<8x8x128xbf16> to vector<64x128xbf16>
    %c0_147 = arith.constant 0 : index
    %c1_148 = arith.constant 1 : index
    %c0_149 = arith.constant 0 : index
    %c0_150 = arith.constant 0 : index
    %109 = vector.load %arg6[%c0_147, %c1_148, %c0_149, %c0_150] : memref<3x3x128x128xbf16, #tpu.memory_space<vmem>>, vector<1x1x128x128xbf16>
    %110 = vector.shape_cast %109 : vector<1x1x128x128xbf16> to vector<128x128xbf16>
    %cst_151 = arith.constant dense<0.000000e+00> : vector<64x128xf32>
    %111 = tpu.matmul %108, %110, %cst_151 {dimension_numbers = #tpu.dot_dimension_numbers<[1], [0], [0], [1], [0, 0, 1, 1], [], []>} : vector<64x128xbf16>, vector<128x128xbf16>, vector<64x128xf32> -> vector<64x128xf32>
    %c0_152 = arith.constant 0 : index
    %c0_153 = arith.constant 0 : index
    %112 = vector.load %arg10[%c0_152, %c0_153] : memref<64x128xf32, #tpu.memory_space<vmem>>, vector<64x128xf32>
    %113 = arith.addf %112, %111 : vector<64x128xf32>
    %c0_154 = arith.constant 0 : index
    %c0_155 = arith.constant 0 : index
    %114 = vector.load %arg10[%c0_154, %c0_155] : memref<64x128xf32, #tpu.memory_space<vmem>>, vector<64x128xf32>
    tpu.vector_store %arg10[%c0_154, %c0_155], %113 {strides = array<i32>} : memref<64x128xf32, #tpu.memory_space<vmem>>, vector<64x128xf32>,
    %c0_156 = arith.constant 0 : index
    %c2_157 = arith.constant 2 : index
    %c0_158 = arith.constant 0 : index
    %115 = vector.load %arg11[%c0_156, %c2_157, %c0_158] : memref<10x10x128xbf16, #tpu.memory_space<vmem>>, vector<8x8x128xbf16>
    %116 = vector.shape_cast %115 : vector<8x8x128xbf16> to vector<64x128xbf16>
    %c0_159 = arith.constant 0 : index
    %c2_160 = arith.constant 2 : index
    %c0_161 = arith.constant 0 : index
    %c0_162 = arith.constant 0 : index
    %117 = vector.load %arg6[%c0_159, %c2_160, %c0_161, %c0_162] : memref<3x3x128x128xbf16, #tpu.memory_space<vmem>>, vector<1x1x128x128xbf16>
    %118 = vector.shape_cast %117 : vector<1x1x128x128xbf16> to vector<128x128xbf16>
    %cst_163 = arith.constant dense<0.000000e+00> : vector<64x128xf32>
    %119 = tpu.matmul %116, %118, %cst_163 {dimension_numbers = #tpu.dot_dimension_numbers<[1], [0], [0], [1], [0, 0, 1, 1], [], []>} : vector<64x128xbf16>, vector<128x128xbf16>, vector<64x128xf32> -> vector<64x128xf32>
    %c0_164 = arith.constant 0 : index
    %c0_165 = arith.constant 0 : index
    %120 = vector.load %arg10[%c0_164, %c0_165] : memref<64x128xf32, #tpu.memory_space<vmem>>, vector<64x128xf32>
    %121 = arith.addf %120, %119 : vector<64x128xf32>
    %c0_166 = arith.constant 0 : index
    %c0_167 = arith.constant 0 : index
    %122 = vector.load %arg10[%c0_166, %c0_167] : memref<64x128xf32, #tpu.memory_space<vmem>>, vector<64x128xf32>
    tpu.vector_store %arg10[%c0_166, %c0_167], %121 {strides = array<i32>} : memref<64x128xf32, #tpu.memory_space<vmem>>, vector<64x128xf32>,
    %c1_168 = arith.constant 1 : index
    %c0_169 = arith.constant 0 : index
    %c0_170 = arith.constant 0 : index
    %123 = vector.load %arg11[%c1_168, %c0_169, %c0_170] : memref<10x10x128xbf16, #tpu.memory_space<vmem>>, vector<8x8x128xbf16>
    %124 = vector.shape_cast %123 : vector<8x8x128xbf16> to vector<64x128xbf16>
    %c1_171 = arith.constant 1 : index
    %c0_172 = arith.constant 0 : index
    %c0_173 = arith.constant 0 : index
    %c0_174 = arith.constant 0 : index
    %125 = vector.load %arg6[%c1_171, %c0_172, %c0_173, %c0_174] : memref<3x3x128x128xbf16, #tpu.memory_space<vmem>>, vector<1x1x128x128xbf16>
    %126 = vector.shape_cast %125 : vector<1x1x128x128xbf16> to vector<128x128xbf16>
    %cst_175 = arith.constant dense<0.000000e+00> : vector<64x128xf32>
    %127 = tpu.matmul %124, %126, %cst_175 {dimension_numbers = #tpu.dot_dimension_numbers<[1], [0], [0], [1], [0, 0, 1, 1], [], []>} : vector<64x128xbf16>, vector<128x128xbf16>, vector<64x128xf32> -> vector<64x128xf32>
    %c0_176 = arith.constant 0 : index
    %c0_177 = arith.constant 0 : index
    %128 = vector.load %arg10[%c0_176, %c0_177] : memref<64x128xf32, #tpu.memory_space<vmem>>, vector<64x128xf32>
    %129 = arith.addf %128, %127 : vector<64x128xf32>
    %c0_178 = arith.constant 0 : index
    %c0_179 = arith.constant 0 : index
    %130 = vector.load %arg10[%c0_178, %c0_179] : memref<64x128xf32, #tpu.memory_space<vmem>>, vector<64x128xf32>
    tpu.vector_store %arg10[%c0_178, %c0_179], %129 {strides = array<i32>} : memref<64x128xf32, #tpu.memory_space<vmem>>, vector<64x128xf32>,
    %c1_180 = arith.constant 1 : index
    %c1_181 = arith.constant 1 : index
    %c0_182 = arith.constant 0 : index
    %131 = vector.load %arg11[%c1_180, %c1_181, %c0_182] : memref<10x10x128xbf16, #tpu.memory_space<vmem>>, vector<8x8x128xbf16>
    %132 = vector.shape_cast %131 : vector<8x8x128xbf16> to vector<64x128xbf16>
    %c1_183 = arith.constant 1 : index
    %c1_184 = arith.constant 1 : index
    %c0_185 = arith.constant 0 : index
    %c0_186 = arith.constant 0 : index
    %133 = vector.load %arg6[%c1_183, %c1_184, %c0_185, %c0_186] : memref<3x3x128x128xbf16, #tpu.memory_space<vmem>>, vector<1x1x128x128xbf16>
    %134 = vector.shape_cast %133 : vector<1x1x128x128xbf16> to vector<128x128xbf16>
    %cst_187 = arith.constant dense<0.000000e+00> : vector<64x128xf32>
    %135 = tpu.matmul %132, %134, %cst_187 {dimension_numbers = #tpu.dot_dimension_numbers<[1], [0], [0], [1], [0, 0, 1, 1], [], []>} : vector<64x128xbf16>, vector<128x128xbf16>, vector<64x128xf32> -> vector<64x128xf32>
    %c0_188 = arith.constant 0 : index
    %c0_189 = arith.constant 0 : index
    %136 = vector.load %arg10[%c0_188, %c0_189] : memref<64x128xf32, #tpu.memory_space<vmem>>, vector<64x128xf32>
    %137 = arith.addf %136, %135 : vector<64x128xf32>
    %c0_190 = arith.constant 0 : index
    %c0_191 = arith.constant 0 : index
    %138 = vector.load %arg10[%c0_190, %c0_191] : memref<64x128xf32, #tpu.memory_space<vmem>>, vector<64x128xf32>
    tpu.vector_store %arg10[%c0_190, %c0_191], %137 {strides = array<i32>} : memref<64x128xf32, #tpu.memory_space<vmem>>, vector<64x128xf32>,
    %c1_192 = arith.constant 1 : index
    %c2_193 = arith.constant 2 : index
    %c0_194 = arith.constant 0 : index
    %139 = vector.load %arg11[%c1_192, %c2_193, %c0_194] : memref<10x10x128xbf16, #tpu.memory_space<vmem>>, vector<8x8x128xbf16>
    %140 = vector.shape_cast %139 : vector<8x8x128xbf16> to vector<64x128xbf16>
    %c1_195 = arith.constant 1 : index
    %c2_196 = arith.constant 2 : index
    %c0_197 = arith.constant 0 : index
    %c0_198 = arith.constant 0 : index
    %141 = vector.load %arg6[%c1_195, %c2_196, %c0_197, %c0_198] : memref<3x3x128x128xbf16, #tpu.memory_space<vmem>>, vector<1x1x128x128xbf16>
    %142 = vector.shape_cast %141 : vector<1x1x128x128xbf16> to vector<128x128xbf16>
    %cst_199 = arith.constant dense<0.000000e+00> : vector<64x128xf32>
    %143 = tpu.matmul %140, %142, %cst_199 {dimension_numbers = #tpu.dot_dimension_numbers<[1], [0], [0], [1], [0, 0, 1, 1], [], []>} : vector<64x128xbf16>, vector<128x128xbf16>, vector<64x128xf32> -> vector<64x128xf32>
    %c0_200 = arith.constant 0 : index
    %c0_201 = arith.constant 0 : index
    %144 = vector.load %arg10[%c0_200, %c0_201] : memref<64x128xf32, #tpu.memory_space<vmem>>, vector<64x128xf32>
    %145 = arith.addf %144, %143 : vector<64x128xf32>
    %c0_202 = arith.constant 0 : index
    %c0_203 = arith.constant 0 : index
    %146 = vector.load %arg10[%c0_202, %c0_203] : memref<64x128xf32, #tpu.memory_space<vmem>>, vector<64x128xf32>
    tpu.vector_store %arg10[%c0_202, %c0_203], %145 {strides = array<i32>} : memref<64x128xf32, #tpu.memory_space<vmem>>, vector<64x128xf32>,
    %c2_204 = arith.constant 2 : index
    %c0_205 = arith.constant 0 : index
    %c0_206 = arith.constant 0 : index
    %147 = vector.load %arg11[%c2_204, %c0_205, %c0_206] : memref<10x10x128xbf16, #tpu.memory_space<vmem>>, vector<8x8x128xbf16>
    %148 = vector.shape_cast %147 : vector<8x8x128xbf16> to vector<64x128xbf16>
    %c2_207 = arith.constant 2 : index
    %c0_208 = arith.constant 0 : index
    %c0_209 = arith.constant 0 : index
    %c0_210 = arith.constant 0 : index
    %149 = vector.load %arg6[%c2_207, %c0_208, %c0_209, %c0_210] : memref<3x3x128x128xbf16, #tpu.memory_space<vmem>>, vector<1x1x128x128xbf16>
    %150 = vector.shape_cast %149 : vector<1x1x128x128xbf16> to vector<128x128xbf16>
    %cst_211 = arith.constant dense<0.000000e+00> : vector<64x128xf32>
    %151 = tpu.matmul %148, %150, %cst_211 {dimension_numbers = #tpu.dot_dimension_numbers<[1], [0], [0], [1], [0, 0, 1, 1], [], []>} : vector<64x128xbf16>, vector<128x128xbf16>, vector<64x128xf32> -> vector<64x128xf32>
    %c0_212 = arith.constant 0 : index
    %c0_213 = arith.constant 0 : index
    %152 = vector.load %arg10[%c0_212, %c0_213] : memref<64x128xf32, #tpu.memory_space<vmem>>, vector<64x128xf32>
    %153 = arith.addf %152, %151 : vector<64x128xf32>
    %c0_214 = arith.constant 0 : index
    %c0_215 = arith.constant 0 : index
    %154 = vector.load %arg10[%c0_214, %c0_215] : memref<64x128xf32, #tpu.memory_space<vmem>>, vector<64x128xf32>
    tpu.vector_store %arg10[%c0_214, %c0_215], %153 {strides = array<i32>} : memref<64x128xf32, #tpu.memory_space<vmem>>, vector<64x128xf32>,
    %c2_216 = arith.constant 2 : index
    %c1_217 = arith.constant 1 : index
    %c0_218 = arith.constant 0 : index
    %155 = vector.load %arg11[%c2_216, %c1_217, %c0_218] : memref<10x10x128xbf16, #tpu.memory_space<vmem>>, vector<8x8x128xbf16>
    %156 = vector.shape_cast %155 : vector<8x8x128xbf16> to vector<64x128xbf16>
    %c2_219 = arith.constant 2 : index
    %c1_220 = arith.constant 1 : index
    %c0_221 = arith.constant 0 : index
    %c0_222 = arith.constant 0 : index
    %157 = vector.load %arg6[%c2_219, %c1_220, %c0_221, %c0_222] : memref<3x3x128x128xbf16, #tpu.memory_space<vmem>>, vector<1x1x128x128xbf16>
    %158 = vector.shape_cast %157 : vector<1x1x128x128xbf16> to vector<128x128xbf16>
    %cst_223 = arith.constant dense<0.000000e+00> : vector<64x128xf32>
    %159 = tpu.matmul %156, %158, %cst_223 {dimension_numbers = #tpu.dot_dimension_numbers<[1], [0], [0], [1], [0, 0, 1, 1], [], []>} : vector<64x128xbf16>, vector<128x128xbf16>, vector<64x128xf32> -> vector<64x128xf32>
    %c0_224 = arith.constant 0 : index
    %c0_225 = arith.constant 0 : index
    %160 = vector.load %arg10[%c0_224, %c0_225] : memref<64x128xf32, #tpu.memory_space<vmem>>, vector<64x128xf32>
    %161 = arith.addf %160, %159 : vector<64x128xf32>
    %c0_226 = arith.constant 0 : index
    %c0_227 = arith.constant 0 : index
    %162 = vector.load %arg10[%c0_226, %c0_227] : memref<64x128xf32, #tpu.memory_space<vmem>>, vector<64x128xf32>
    tpu.vector_store %arg10[%c0_226, %c0_227], %161 {strides = array<i32>} : memref<64x128xf32, #tpu.memory_space<vmem>>, vector<64x128xf32>,
    %c2_228 = arith.constant 2 : index
    %c2_229 = arith.constant 2 : index
    %c0_230 = arith.constant 0 : index
    %163 = vector.load %arg11[%c2_228, %c2_229, %c0_230] : memref<10x10x128xbf16, #tpu.memory_space<vmem>>, vector<8x8x128xbf16>
    %164 = vector.shape_cast %163 : vector<8x8x128xbf16> to vector<64x128xbf16>
    %c2_231 = arith.constant 2 : index
    %c2_232 = arith.constant 2 : index
    %c0_233 = arith.constant 0 : index
    %c0_234 = arith.constant 0 : index
    %165 = vector.load %arg6[%c2_231, %c2_232, %c0_233, %c0_234] : memref<3x3x128x128xbf16, #tpu.memory_space<vmem>>, vector<1x1x128x128xbf16>
    %166 = vector.shape_cast %165 : vector<1x1x128x128xbf16> to vector<128x128xbf16>
    %cst_235 = arith.constant dense<0.000000e+00> : vector<64x128xf32>
    %167 = tpu.matmul %164, %166, %cst_235 {dimension_numbers = #tpu.dot_dimension_numbers<[1], [0], [0], [1], [0, 0, 1, 1], [], []>} : vector<64x128xbf16>, vector<128x128xbf16>, vector<64x128xf32> -> vector<64x128xf32>
    %c0_236 = arith.constant 0 : index
    %c0_237 = arith.constant 0 : index
    %168 = vector.load %arg10[%c0_236, %c0_237] : memref<64x128xf32, #tpu.memory_space<vmem>>, vector<64x128xf32>
    %169 = arith.addf %168, %167 : vector<64x128xf32>
    %c0_238 = arith.constant 0 : index
    %c0_239 = arith.constant 0 : index
    %170 = vector.load %arg10[%c0_238, %c0_239] : memref<64x128xf32, #tpu.memory_space<vmem>>, vector<64x128xf32>
    tpu.vector_store %arg10[%c0_238, %c0_239], %169 {strides = array<i32>} : memref<64x128xf32, #tpu.memory_space<vmem>>, vector<64x128xf32>,
    %c0_240 = arith.constant 0 : index
    %c0_241 = arith.constant 0 : index
    %171 = vector.load %arg10[%c0_240, %c0_241] : memref<64x128xf32, #tpu.memory_space<vmem>>, vector<64x128xf32>
    %c0_242 = arith.constant 0 : index
    %c0_243 = arith.constant 0 : index
    %172 = vector.load %arg7[%c0_242, %c0_243] : memref<1x128xf32, #tpu.memory_space<vmem>>, vector<1x128xf32>
    %173 = vector.shape_cast %172 : vector<1x128xf32> to vector<128xf32>
    %174 = vector.shape_cast %173 : vector<128xf32> to vector<1x128xf32>
    %175 = vector.broadcast %174 : vector<1x128xf32> to vector<64x128xf32>
    %176 = arith.mulf %171, %175 : vector<64x128xf32>
    %c0_244 = arith.constant 0 : index
    %c0_245 = arith.constant 0 : index
    %177 = vector.load %arg8[%c0_244, %c0_245] : memref<1x128xf32, #tpu.memory_space<vmem>>, vector<1x128xf32>
    %178 = vector.shape_cast %177 : vector<1x128xf32> to vector<128xf32>
    %179 = vector.shape_cast %178 : vector<128xf32> to vector<1x128xf32>
    %180 = vector.broadcast %179 : vector<1x128xf32> to vector<64x128xf32>
    %181 = arith.addf %176, %180 : vector<64x128xf32>
    %c0_246 = arith.constant 0 : index
    %c0_247 = arith.constant 0 : index
    %c0_248 = arith.constant 0 : index
    %182 = vector.load %arg2[%c0_246, %c0_247, %c0_248] : memref<1x64x128xf32, #tpu.memory_space<vmem>>, vector<1x64x128xf32>
    %183 = vector.shape_cast %182 : vector<1x64x128xf32> to vector<64x128xf32>
    %184 = arith.addf %181, %183 : vector<64x128xf32>
    %cst_249 = arith.constant 0.000000e+00 : f32
    %185 = vector.broadcast %cst_249 : f32 to vector<64x128xf32>
    %186 = arith.maximumf %184, %185 : vector<64x128xf32>
    %c0_250 = arith.constant 0 : index
    %c0_251 = arith.constant 0 : index
    %c0_252 = arith.constant 0 : index
    %187 = vector.load %arg9[%c0_250, %c0_251, %c0_252] : memref<1x64x128xf32, #tpu.memory_space<vmem>>, vector<1x64x128xf32>
    %188 = vector.shape_cast %187 : vector<1x64x128xf32> to vector<64x128xf32>
    %189 = vector.shape_cast %186 : vector<64x128xf32> to vector<1x64x128xf32>
    tpu.vector_store %arg9[%c0_250, %c0_251, %c0_252], %189 {strides = array<i32>} : memref<1x64x128xf32, #tpu.memory_space<vmem>>, vector<1x64x128xf32>,
    return
  }
  func.func @transform_0(%arg0: i32) -> (i32, i32, i32, i32) {
    %c0_i32 = arith.constant 0 : i32
    %c0_i32_0 = arith.constant 0 : i32
    %c0_i32_1 = arith.constant 0 : i32
    %c0_i32_2 = arith.constant 0 : i32
    return %arg0, %c0_i32, %c0_i32_0, %c0_i32_1 : i32, i32, i32, i32
  }
  func.func @transform_1(%arg0: i32) -> (i32, i32, i32) {
    %c0_i32 = arith.constant 0 : i32
    %c0_i32_0 = arith.constant 0 : i32
    %c0_i32_1 = arith.constant 0 : i32
    return %arg0, %c0_i32, %c0_i32_0 : i32, i32, i32
  }
  func.func @transform_2(%arg0: i32) -> (i32, i32, i32, i32) {
    %c0_i32 = arith.constant 0 : i32
    %c0_i32_0 = arith.constant 0 : i32
    %c0_i32_1 = arith.constant 0 : i32
    %c0_i32_2 = arith.constant 0 : i32
    %c0_i32_3 = arith.constant 0 : i32
    return %c0_i32, %c0_i32_0, %c0_i32_1, %c0_i32_2 : i32, i32, i32, i32
  }
  func.func @transform_3(%arg0: i32) -> (i32, i32) {
    %c0_i32 = arith.constant 0 : i32
    %c0_i32_0 = arith.constant 0 : i32
    %c0_i32_1 = arith.constant 0 : i32
    return %c0_i32, %c0_i32_0 : i32, i32
  }
  func.func @transform_4(%arg0: i32) -> (i32, i32) {
    %c0_i32 = arith.constant 0 : i32
    %c0_i32_0 = arith.constant 0 : i32
    %c0_i32_1 = arith.constant 0 : i32
    return %c0_i32, %c0_i32_0 : i32, i32
  }
  func.func @transform_5(%arg0: i32) -> (i32, i32, i32, i32) {
    %c0_i32 = arith.constant 0 : i32
    %c0_i32_0 = arith.constant 0 : i32
    %c0_i32_1 = arith.constant 0 : i32
    %c0_i32_2 = arith.constant 0 : i32
    %c0_i32_3 = arith.constant 0 : i32
    return %c0_i32, %c0_i32_0, %c0_i32_1, %c0_i32_2 : i32, i32, i32, i32
  }
  func.func @transform_6(%arg0: i32) -> (i32, i32) {
    %c0_i32 = arith.constant 0 : i32
    %c0_i32_0 = arith.constant 0 : i32
    %c0_i32_1 = arith.constant 0 : i32
    return %c0_i32, %c0_i32_0 : i32, i32
  }
  func.func @transform_7(%arg0: i32) -> (i32, i32) {
    %c0_i32 = arith.constant 0 : i32
    %c0_i32_0 = arith.constant 0 : i32
    %c0_i32_1 = arith.constant 0 : i32
    return %c0_i32, %c0_i32_0 : i32, i32
  }
  func.func @transform_8(%arg0: i32) -> (i32, i32, i32) {
    %c0_i32 = arith.constant 0 : i32
    %c0_i32_0 = arith.constant 0 : i32
    %c0_i32_1 = arith.constant 0 : i32
    return %arg0, %c0_i32, %c0_i32_0 : i32, i32, i32
  }
}

</mosaic_0001>

<llo_original>
// kernel: tile.23
$region0: #{tile.23}
  #allocation0 [shape = 's32[1]{0}', space=sflag, size = 0x4, scoped, tag = 'scoped memory for tile.23']
  %s0 = inlined_call_operand.vmem [shape: f32[16], index: 0, kind: input, shape index: {}]
  %s1 = inlined_call_operand.vmem [shape: f32[8,16], index: 1, kind: output, shape index: {}]
  // Predicated region
  $region2: #{tile.23} parent=0 // pred_check
    _
  $region3: #{tile.23} parent=0 // pred_check_branch
    %3 = sbr.rel (0) target = $region5
  $region4: #{tile.23} parent=0 // pred_region
    _
  $region5: #{tile.23} parent=0 // pred_fallthru
    _
  %v4 = vld [vmem:[%s0] ss:$0 sm:$0xff]
  %5 = vst [vmem:[%s1] sm:$0xff] %v4

// kernel: tile.24
$region0: #{tile.24}
  %s0 = inlined_call_operand.vmem [shape: f32[8,16], index: 0, kind: input, shape index: {}]
  %s1 = inlined_call_operand.hbm [shape: f32[1,128], index: 1, kind: output, shape index: {}]
  $region1: #{tile.24} parent=0
    #allocation0 [shape = 'u8[512]{0}', space=vmem, size = 0x400, scoped, tag = 'operand span for operand 1']
    #allocation1 [shape = 's32[1]{0}', space=sflag, size = 0x4, scoped, tag = 'scoped memory for tile.24']
    #allocation2 [shape = 'u8[4096]{0}', space=vmem, size = 0x1000, scoped, tag = 'scoped mem for output reshape']
    %2 = vsyncpa [#allocation1], 0
    %v3 = vld [vmem:[%s0] sm:$0x1]
    %vm4 = vcmask 130048
    %5 = vst.msk [vmem:[#allocation2] sm:$0x1] %vm4, %v3
    %s6 = scalar_lea.vmem %s0, 7
    %v7 = vld [vmem:[%s6] sm:$0x1]
    %8 = vrot.lane.b32.xlu0 %v7, 112
    %v9 = vpop.permute.xlu0 %8
    %vm10 = vcmask 1048448
    %11 = vst.msk [vmem:[#allocation2] sm:$0x1] %vm10, %v9
    %s12 = scalar_lea.vmem %s0, 6
    %v13 = vld [vmem:[%s12] sm:$0x1]
    %14 = vrot.lane.b32.xlu0 %v13, 96
    %v15 = vpop.permute.xlu0 %14
    %vm16 = vcmask 917248
    %17 = vst.msk [vmem:[#allocation2] sm:$0x1] %vm16, %v15
    %s18 = scalar_lea.vmem %s0, 5
    %v19 = vld [vmem:[%s18] sm:$0x1]
    %20 = vrot.lane.b32.xlu0 %v19, 80
    %v21 = vpop.permute.xlu0 %20
    %vm22 = vcmask 786048
    %23 = vst.msk [vmem:[#allocation2] sm:$0x1] %vm22, %v21
    %s24 = scalar_lea.vmem %s0, 4
    %v25 = vld [vmem:[%s24] sm:$0x1]
    %26 = vrot.lane.b32.xlu0 %v25, 64
    %v27 = vpop.permute.xlu0 %26
    %vm28 = vcmask 654848
    %29 = vst.msk [vmem:[#allocation2] sm:$0x1] %vm28, %v27
    %s30 = scalar_lea.vmem %s0, 3
    %v31 = vld [vmem:[%s30] sm:$0x1]
    %32 = vrot.lane.b32.xlu0 %v31, 48
    %v33 = vpop.permute.xlu0 %32
    %vm34 = vcmask 523648
    %35 = vst.msk [vmem:[#allocation2] sm:$0x1] %vm34, %v33
    %s36 = scalar_lea.vmem %s0, 2
    %v37 = vld [vmem:[%s36] sm:$0x1]
    %38 = vrot.lane.b32.xlu0 %v37, 32
    %v39 = vpop.permute.xlu0 %38
    %vm40 = vcmask 392448
    %41 = vst.msk [vmem:[#allocation2] sm:$0x1] %vm40, %v39
    %s42 = scalar_lea.vmem %s0, 1
    %v43 = vld [vmem:[%s42] sm:$0x1]
    %44 = vrot.lane.b32.xlu0 %v43, 16
    %v45 = vpop.permute.xlu0 %44
    %vm46 = vcmask 261248
    %47 = vst.msk [vmem:[#allocation2] sm:$0x1] %vm46, %v45
    %s49 = sshllo.u32 0, 1
    %v51 = vld [vmem:[#allocation2] sm:%s49]
    %s52 = sshllo.u32 0, 1
    %53 = vst [vmem:[#allocation0] sm:%s52] %v51
    %s55 = ssub.s32 16, 16
    %56 = vsyncadd [#allocation1], %s55
    %s58 = sshll.u32 [#allocation0], 4
    %s59 = int_to_ptr.vmem [resolvable:$true] %s58
    %61 = dma.vmem_to_hbm [thread:$0]  %s59, 16, %s1, [#allocation1]
    %62 = dma.done [#allocation1], 16
    %63 = vsyncpa [#allocation1], 1

// kernel: basic_block3d.1
$region0: #{basic_block3d.1}
  #allocation0 [shape = 'u32[]', space=smem, size = 0x4, offset = 0x4, fixed_abs, tag = 'smem constant byte address 0x4 - core index']
  #allocation1 [shape = 'u32[144,128]{1,0:T(1,128)}', space=vmem, size = 0x12000, scoped, tag = 'internal scratch']
  #allocation2 [shape = 'f32[64,128]{1,0:T(8,128)}', space=vmem, size = 0x8000, scoped, tag = 'scratch operand']
  #allocation3 [shape = 'bf16[10,10,128]{2,1,0:T(8,128)(2,1)}', space=vmem, size = 0xa000, scoped, tag = 'scratch operand']
  %s0 = inlined_call_operand.hbm [shape: bf16[2,10,10,128], index: 0, kind: input, shape index: {}]
  %s1 = inlined_call_operand.hbm [shape: f32[2,64,128], index: 1, kind: input, shape index: {}]
  %s2 = inlined_call_operand.hbm [shape: bf16[3,3,128,128], index: 2, kind: input, shape index: {}]
  %s3 = inlined_call_operand.hbm [shape: f32[1,128], index: 3, kind: input, shape index: {}]
  %s4 = inlined_call_operand.hbm [shape: f32[1,128], index: 4, kind: input, shape index: {}]
  %s5 = inlined_call_operand.hbm [shape: bf16[3,3,128,128], index: 5, kind: input, shape index: {}]
  %s6 = inlined_call_operand.hbm [shape: f32[1,128], index: 6, kind: input, shape index: {}]
  %s7 = inlined_call_operand.hbm [shape: f32[1,128], index: 7, kind: input, shape index: {}]
  %s8 = inlined_call_operand.hbm [shape: f32[2,64,128], index: 8, kind: output, shape index: {}]
  %s9 = sld [smem:[#allocation0]]
  $region97: #{basic_block3d.1} parent=0
    _
  %s11 = ssub.s32 1, %s9
  %s12 = scalar_select 0, %s11, %s9
  $region1: #{basic_block3d.1} parent=0
    #allocation4 [shape = 'u8[81920]{0}', space=vmem, size = 0x14000, scoped, tag = 'input window, operand 0']
    #allocation5 [shape = 's32[2]{0}', space=sflag, size = 0x8, scoped, tag = 'scoped memory for basic_block3d.1']
    #allocation6 [shape = 's32[2]{0}', space=sflag, size = 0x8, scoped, tag = 'scoped memory for basic_block3d.1']
    #allocation7 [shape = 'u8[65536]{0}', space=vmem, size = 0x10000, scoped, tag = 'input window, operand 1']
    #allocation8 [shape = 's32[2]{0}', space=sflag, size = 0x8, scoped, tag = 'scoped memory for basic_block3d.1']
    #allocation9 [shape = 'u8[294912]{0}', space=vmem, size = 0x48000, scoped, tag = 'input window, operand 2, single buffered']
    #allocation10 [shape = 'u8[512]{0}', space=vmem, size = 0x400, scoped, tag = 'input window, operand 3, single buffered']
    #allocation11 [shape = 's32[1]{0}', space=sflag, size = 0x4, scoped, tag = 'scoped memory for basic_block3d.1']
    #allocation12 [shape = 'u8[512]{0}', space=vmem, size = 0x400, scoped, tag = 'input window, operand 4, single buffered']
    #allocation13 [shape = 'u8[294912]{0}', space=vmem, size = 0x48000, scoped, tag = 'input window, operand 5, single buffered']
    #allocation14 [shape = 's32[1]{0}', space=sflag, size = 0x4, scoped, tag = 'scoped memory for basic_block3d.1']
    #allocation15 [shape = 'u8[512]{0}', space=vmem, size = 0x400, scoped, tag = 'input window, operand 6, single buffered']
    #allocation16 [shape = 'u8[512]{0}', space=vmem, size = 0x400, scoped, tag = 'input window, operand 7, single buffered']
    #allocation17 [shape = 's32[1]{0}', space=sflag, size = 0x4, scoped, tag = 'scoped memory for basic_block3d.1']
    #allocation18 [shape = 'u8[65536]{0}', space=vmem, size = 0x10000, scoped, tag = 'output window, operand 0']
    %13 = vsyncpa [#allocation5], 0
    %s14 = scalar_lea.sflag [#allocation5], 1
    %15 = vsyncpa %s14, 0
    %16 = vsyncpa [#allocation8], 0
    %s17 = scalar_lea.sflag [#allocation8], 1
    %18 = vsyncpa %s17, 0
    %19 = vsyncpa [#allocation11], 0
    %20 = vsyncpa [#allocation14], 0
    %21 = vsyncpa [#allocation17], 0
    %22 = vsyncpa [#allocation6], 0
    %s23 = scalar_lea.sflag [#allocation6], 1
    %24 = vsyncpa %s23, 0
    loop: start=0, step=1, limit=4
    $region2: #{basic_block3d.1} parent=1 // loop_pre_header
      _
    $region3: #{basic_block3d.1} parent=1 // loop_header
      %s26 = sphi 0, %s30
      %p27 = scmp.ge.s32.totalorder %s26, 4
      %s36 = sphi 0, %s38
      %s39 = sphi 0, %s36
      %s40 = sphi 0, %s39
      %s56 = sphi 0, %s40
      %s62 = sphi 0, %s64
      %s65 = sphi 0, %s62
      %s66 = sphi 0, %s65
      %s82 = sphi 0, %s66
      %s86 = sphi 0, %s86
      %s88 = sphi 0, %s86
      %s89 = sphi 0, %s88
      %s103 = sphi 0, %s89
      %s107 = sphi 0, %s107
      %s109 = sphi 0, %s107
      %s110 = sphi 0, %s109
      %s124 = sphi 0, %s110
      %s128 = sphi 0, %s128
      %s130 = sphi 0, %s128
      %s131 = sphi 0, %s130
      %s145 = sphi 0, %s131
      %s149 = sphi 0, %s149
      %s151 = sphi 0, %s149
      %s152 = sphi 0, %s151
      %s166 = sphi 0, %s152
      %s170 = sphi 0, %s170
      %s172 = sphi 0, %s170
      %s173 = sphi 0, %s172
      %s187 = sphi 0, %s173
      %s191 = sphi 0, %s191
      %s193 = sphi 0, %s191
      %s194 = sphi 0, %s193
      %s208 = sphi 0, %s194
      %s214 = sphi 0, %s216
      %s217 = sphi 0, %s214
      %s218 = sphi 0, %s217
      %s234 = sphi 0, %s218
    $region4: #{basic_block3d.1} parent=1 // loop_header_branch
      %29 = sbr.rel (%p27) target = $region8
    $region5: #{basic_block3d.1} parent=1 // loop_body
      %s31 = ssub.s32 %s26, 1
      %s32 = ssub.s32 %s26, 2
      %s33 = sadd.s32 %s26, 1
      %s34 = ssub.s32 %s26, %s33
      %p35 = scmp.eq.s32.totalorder %s34, 0
      %s37 = sadd.s32 %s36, 1
      %s38 = scalar_select %p35, %s36, %s37
      %p41 = pneg %p35
      %p42 = scmp.eq.s32.totalorder %s26, 1
      %p43 = por %p41, %p42
      %p44 = scmp.ne.s32.totalorder %s36, %s39
      %p45 = scmp.eq.s32.totalorder %s26, 0
      %p46 = por %p44, %p45
      %p47 = scmp.ne.s32.totalorder %s36, %s39
      %p48 = scmp.eq.s32.totalorder %s31, 1
      %p49 = por %p47, %p48
      %p50 = scmp.ne.s32.totalorder %s39, %s40
      %p51 = scmp.eq.s32.totalorder %s31, 0
      %p52 = por %p50, %p51
      %p53 = scmp.ne.s32.totalorder %s39, %s40
      %p54 = scmp.eq.s32.totalorder %s32, 1
      %p55 = por %p53, %p54
      %p57 = scmp.ne.s32.totalorder %s40, %s56
      %p58 = scmp.eq.s32.totalorder %s32, 0
      %p59 = por %p57, %p58
      %s60 = ssub.s32 %s26, %s33
      %p61 = scmp.eq.s32.totalorder %s60, 0
      %s63 = sadd.s32 %s62, 1
      %s64 = scalar_select %p61, %s62, %s63
      %p67 = pneg %p61
      %p68 = scmp.eq.s32.totalorder %s26, 1
      %p69 = por %p67, %p68
      %p70 = scmp.ne.s32.totalorder %s62, %s65
      %p71 = scmp.eq.s32.totalorder %s26, 0
      %p72 = por %p70, %p71
      %p73 = scmp.ne.s32.totalorder %s62, %s65
      %p74 = scmp.eq.s32.totalorder %s31, 1
      %p75 = por %p73, %p74
      %p76 = scmp.ne.s32.totalorder %s65, %s66
      %p77 = scmp.eq.s32.totalorder %s31, 0
      %p78 = por %p76, %p77
      %p79 = scmp.ne.s32.totalorder %s65, %s66
      %p80 = scmp.eq.s32.totalorder %s32, 1
      %p81 = por %p79, %p80
      %p83 = scmp.ne.s32.totalorder %s66, %s82
      %p84 = scmp.eq.s32.totalorder %s32, 0
      %p85 = por %p83, %p84
      %s87 = sadd.s32 %s86, 1
      %p90 = scmp.eq.s32.totalorder %s26, 1
      %p91 = scmp.ne.s32.totalorder %s86, %s88
      %p92 = scmp.eq.s32.totalorder %s26, 0
      %p93 = por %p91, %p92
      %p94 = scmp.ne.s32.totalorder %s86, %s88
      %p95 = scmp.eq.s32.totalorder %s31, 1
      %p96 = por %p94, %p95
      %p97 = scmp.ne.s32.totalorder %s88, %s89
      %p98 = scmp.eq.s32.totalorder %s31, 0
      %p99 = por %p97, %p98
      %p100 = scmp.ne.s32.totalorder %s88, %s89
      %p101 = scmp.eq.s32.totalorder %s32, 1
      %p102 = por %p100, %p101
      %p104 = scmp.ne.s32.totalorder %s89, %s103
      %p105 = scmp.eq.s32.totalorder %s32, 0
      %p106 = por %p104, %p105
      %s108 = sadd.s32 %s107, 1
      %p111 = scmp.eq.s32.totalorder %s26, 1
      %p112 = scmp.ne.s32.totalorder %s107, %s109
      %p113 = scmp.eq.s32.totalorder %s26, 0
      %p114 = por %p112, %p113
      %p115 = scmp.ne.s32.totalorder %s107, %s109
      %p116 = scmp.eq.s32.totalorder %s31, 1
      %p117 = por %p115, %p116
      %p118 = scmp.ne.s32.totalorder %s109, %s110
      %p119 = scmp.eq.s32.totalorder %s31, 0
      %p120 = por %p118, %p119
      %p121 = scmp.ne.s32.totalorder %s109, %s110
      %p122 = scmp.eq.s32.totalorder %s32, 1
      %p123 = por %p121, %p122
      %p125 = scmp.ne.s32.totalorder %s110, %s124
      %p126 = scmp.eq.s32.totalorder %s32, 0
      %p127 = por %p125, %p126
      %s129 = sadd.s32 %s128, 1
      %p132 = scmp.eq.s32.totalorder %s26, 1
      %p133 = scmp.ne.s32.totalorder %s128, %s130
      %p134 = scmp.eq.s32.totalorder %s26, 0
      %p135 = por %p133, %p134
      %p136 = scmp.ne.s32.totalorder %s128, %s130
      %p137 = scmp.eq.s32.totalorder %s31, 1
      %p138 = por %p136, %p137
      %p139 = scmp.ne.s32.totalorder %s130, %s131
      %p140 = scmp.eq.s32.totalorder %s31, 0
      %p141 = por %p139, %p140
      %p142 = scmp.ne.s32.totalorder %s130, %s131
      %p143 = scmp.eq.s32.totalorder %s32, 1
      %p144 = por %p142, %p143
      %p146 = scmp.ne.s32.totalorder %s131, %s145
      %p147 = scmp.eq.s32.totalorder %s32, 0
      %p148 = por %p146, %p147
      %s150 = sadd.s32 %s149, 1
      %p153 = scmp.eq.s32.totalorder %s26, 1
      %p154 = scmp.ne.s32.totalorder %s149, %s151
      %p155 = scmp.eq.s32.totalorder %s26, 0
      %p156 = por %p154, %p155
      %p157 = scmp.ne.s32.totalorder %s149, %s151
      %p158 = scmp.eq.s32.totalorder %s31, 1
      %p159 = por %p157, %p158
      %p160 = scmp.ne.s32.totalorder %s151, %s152
      %p161 = scmp.eq.s32.totalorder %s31, 0
      %p162 = por %p160, %p161
      %p163 = scmp.ne.s32.totalorder %s151, %s152
      %p164 = scmp.eq.s32.totalorder %s32, 1
      %p165 = por %p163, %p164
      %p167 = scmp.ne.s32.totalorder %s152, %s166
      %p168 = scmp.eq.s32.totalorder %s32, 0
      %p169 = por %p167, %p168
      %s171 = sadd.s32 %s170, 1
      %p174 = scmp.eq.s32.totalorder %s26, 1
      %p175 = scmp.ne.s32.totalorder %s170, %s172
      %p176 = scmp.eq.s32.totalorder %s26, 0
      %p177 = por %p175, %p176
      %p178 = scmp.ne.s32.totalorder %s170, %s172
      %p179 = scmp.eq.s32.totalorder %s31, 1
      %p180 = por %p178, %p179
      %p181 = scmp.ne.s32.totalorder %s172, %s173
      %p182 = scmp.eq.s32.totalorder %s31, 0
      %p183 = por %p181, %p182
      %p184 = scmp.ne.s32.totalorder %s172, %s173
      %p185 = scmp.eq.s32.totalorder %s32, 1
      %p186 = por %p184, %p185
      %p188 = scmp.ne.s32.totalorder %s173, %s187
      %p189 = scmp.eq.s32.totalorder %s32, 0
      %p190 = por %p188, %p189
      %s192 = sadd.s32 %s191, 1
      %p195 = scmp.eq.s32.totalorder %s26, 1
      %p196 = scmp.ne.s32.totalorder %s191, %s193
      %p197 = scmp.eq.s32.totalorder %s26, 0
      %p198 = por %p196, %p197
      %p199 = scmp.ne.s32.totalorder %s191, %s193
      %p200 = scmp.eq.s32.totalorder %s31, 1
      %p201 = por %p199, %p200
      %p202 = scmp.ne.s32.totalorder %s193, %s194
      %p203 = scmp.eq.s32.totalorder %s31, 0
      %p204 = por %p202, %p203
      %p205 = scmp.ne.s32.totalorder %s193, %s194
      %p206 = scmp.eq.s32.totalorder %s32, 1
      %p207 = por %p205, %p206
      %p209 = scmp.ne.s32.totalorder %s194, %s208
      %p210 = scmp.eq.s32.totalorder %s32, 0
      %p211 = por %p209, %p210
      %s212 = ssub.s32 %s26, %s33
      %p213 = scmp.eq.s32.totalorder %s212, 0
      %s215 = sadd.s32 %s214, 1
      %s216 = scalar_select %p213, %s214, %s215
      %p219 = pneg %p213
      %p220 = scmp.eq.s32.totalorder %s26, 1
      %p221 = por %p219, %p220
      %p222 = scmp.ne.s32.totalorder %s214, %s217
      %p223 = scmp.eq.s32.totalorder %s26, 0
      %p224 = por %p222, %p223
      %p225 = scmp.ne.s32.totalorder %s214, %s217
      %p226 = scmp.eq.s32.totalorder %s31, 1
      %p227 = por %p225, %p226
      %p228 = scmp.ne.s32.totalorder %s217, %s218
      %p229 = scmp.eq.s32.totalorder %s31, 0
      %p230 = por %p228, %p229
      %p231 = scmp.ne.s32.totalorder %s217, %s218
      %p232 = scmp.eq.s32.totalorder %s32, 1
      %p233 = por %p231, %p232
      %p235 = scmp.ne.s32.totalorder %s218, %s234
      %p236 = scmp.eq.s32.totalorder %s32, 0
      %p237 = por %p235, %p236
      %p238 = scmp.le.s32.totalorder 1, %s26
      %p239 = scmp.lt.s32.totalorder %s26, 3
      %p240 = pnand %p238, %p239
      %p241 = pneg %p240
      // Predicated region
      $region9: #{basic_block3d.1} parent=5 // pred_check
        _
      $region10: #{basic_block3d.1} parent=5 // pred_check_branch
        %243 = sbr.rel (%p240) target = $region12
      $region11: #{basic_block3d.1} parent=5 // pred_region
        %s244 = ssub.s32 %s26, 1
        // Predicated region
        $region13: #{basic_block3d.1} parent=11 // pred_check
          %p245 = pneg %p99
        $region14: #{basic_block3d.1} parent=11 // pred_check_branch
          %247 = sbr.rel (%p245) target = $region16
        $region15: #{basic_block3d.1} parent=11 // pred_region
          %s249 = ssub.s32 9216, 9216
          %250 = vsyncadd [#allocation8], %s249
          %s251 = sshll.u32 [#allocation9], 4
          %s252 = int_to_ptr.vmem [resolvable:$true] %s251
          %257 = dma.hbm_to_vmem [thread:$0]  %s2, 9216, %s252, [#allocation8], 64, 64, 4
        $region16: #{basic_block3d.1} parent=11 // pred_fallthru
          _
        // Predicated region
        $region17: #{basic_block3d.1} parent=11 // pred_check
          %p258 = pneg %p120
        $region18: #{basic_block3d.1} parent=11 // pred_check_branch
          %260 = sbr.rel (%p258) target = $region20
        $region19: #{basic_block3d.1} parent=11 // pred_region
          %s262 = ssub.s32 16, 16
          %263 = vsyncadd [#allocation11], %s262
          %s265 = sshll.u32 [#allocation10], 4
          %s266 = int_to_ptr.vmem [resolvable:$true] %s265
          %268 = dma.hbm_to_vmem [thread:$0]  %s3, 16, %s266, [#allocation11]
        $region20: #{basic_block3d.1} parent=11 // pred_fallthru
          _
        // Predicated region
        $region21: #{basic_block3d.1} parent=11 // pred_check
          %p269 = pneg %p141
        $region22: #{basic_block3d.1} parent=11 // pred_check_branch
          %271 = sbr.rel (%p269) target = $region24
        $region23: #{basic_block3d.1} parent=11 // pred_region
          %s273 = ssub.s32 16, 16
          %274 = vsyncadd [#allocation11], %s273
          %s276 = sshll.u32 [#allocation12], 4
          %s277 = int_to_ptr.vmem [resolvable:$true] %s276
          %279 = dma.hbm_to_vmem [thread:$0]  %s4, 16, %s277, [#allocation11]
        $region24: #{basic_block3d.1} parent=11 // pred_fallthru
          _
        // Predicated region
        $region25: #{basic_block3d.1} parent=11 // pred_check
          %p280 = pneg %p162
        $region26: #{basic_block3d.1} parent=11 // pred_check_branch
          %282 = sbr.rel (%p280) target = $region28
        $region27: #{basic_block3d.1} parent=11 // pred_region
          %s284 = ssub.s32 9216, 9216
          %285 = vsyncadd [#allocation14], %s284
          %s286 = sshll.u32 [#allocation13], 4
          %s287 = int_to_ptr.vmem [resolvable:$true] %s286
          %292 = dma.hbm_to_vmem [thread:$0]  %s5, 9216, %s287, [#allocation14], 64, 64, 4
        $region28: #{basic_block3d.1} parent=11 // pred_fallthru
          _
        // Predicated region
        $region29: #{basic_block3d.1} parent=11 // pred_check
          %p293 = pneg %p183
        $region30: #{basic_block3d.1} parent=11 // pred_check_branch
          %295 = sbr.rel (%p293) target = $region32
        $region31: #{basic_block3d.1} parent=11 // pred_region
          %s297 = ssub.s32 16, 16
          %298 = vsyncadd [#allocation14], %s297
          %s300 = sshll.u32 [#allocation15], 4
          %s301 = int_to_ptr.vmem [resolvable:$true] %s300
          %303 = dma.hbm_to_vmem [thread:$0]  %s6, 16, %s301, [#allocation14]
        $region32: #{basic_block3d.1} parent=11 // pred_fallthru
          _
        // Predicated region
        $region33: #{basic_block3d.1} parent=11 // pred_check
          %p304 = pneg %p204
        $region34: #{basic_block3d.1} parent=11 // pred_check_branch
          %306 = sbr.rel (%p304) target = $region36
        $region35: #{basic_block3d.1} parent=11 // pred_region
          %s308 = ssub.s32 16, 16
          %309 = vsyncadd [#allocation17], %s308
          %s311 = sshll.u32 [#allocation16], 4
          %s312 = int_to_ptr.vmem [resolvable:$true] %s311
          %314 = dma.hbm_to_vmem [thread:$0]  %s7, 16, %s312, [#allocation17]
        $region36: #{basic_block3d.1} parent=11 // pred_fallthru
          _
      $region12: #{basic_block3d.1} parent=5 // pred_fallthru
        _
      %p315 = scmp.lt.s32.totalorder %s26, 2
      // Predicated region
      $region37: #{basic_block3d.1} parent=5 // pred_check
        %p316 = pneg %p315
      $region38: #{basic_block3d.1} parent=5 // pred_check_branch
        %318 = sbr.rel (%p316) target = $region40
      $region39: #{basic_block3d.1} parent=5 // pred_region
        // Predicated region
        $region41: #{basic_block3d.1} parent=39 // pred_check
          %p319 = pneg %p46
        $region42: #{basic_block3d.1} parent=39 // pred_check_branch
          %321 = sbr.rel (%p319) target = $region44
        $region43: #{basic_block3d.1} parent=39 // pred_region
          %s322 = sand.u32 %s36, 1
          %s323 = scalar_lea.sflag [#allocation5], %s322
          %s324 = sand.u32 %s36, 1
          %s325 = smul.addr %s324, 80
          %s326 = scalar_lea.vmem [#allocation4], %s325
          %s328 = ssub.s32 1280, 1280
          %329 = vsyncadd %s323, %s328
          %s330 = smul.addr %s26, 20
          %s331 = smul.addr %s330, 64
          %s332 = scalar_lea.hbm %s0, %s331
          %s333 = sshll.u32 %s326, 4
          %s334 = int_to_ptr.vmem [resolvable:$true] %s333
          %339 = dma.hbm_to_vmem [thread:$0]  %s332, 1280, %s334, %s323, 64, 64, 4
        $region44: #{basic_block3d.1} parent=39 // pred_fallthru
          _
        // Predicated region
        $region45: #{basic_block3d.1} parent=39 // pred_check
          %p340 = pneg %p72
        $region46: #{basic_block3d.1} parent=39 // pred_check_branch
          %342 = sbr.rel (%p340) target = $region48
        $region47: #{basic_block3d.1} parent=39 // pred_region
          %s343 = sand.u32 %s26, 1
          %s344 = scalar_lea.sflag [#allocation8], %s343
          %s345 = sand.u32 %s62, 1
          %s346 = smul.addr %s345, 64
          %s347 = scalar_lea.vmem [#allocation7], %s346
          %s349 = ssub.s32 1024, 1024
          %350 = vsyncadd %s344, %s349
          %s351 = smul.addr %s26, 8
          %s352 = smul.addr %s351, 128
          %s353 = scalar_lea.hbm %s1, %s352
          %s354 = sshll.u32 %s347, 4
          %s355 = int_to_ptr.vmem [resolvable:$true] %s354
          %360 = dma.hbm_to_vmem [thread:$0]  %s353, 1024, %s355, %s344, 128, 128, 8
        $region48: #{basic_block3d.1} parent=39 // pred_fallthru
          _
      $region40: #{basic_block3d.1} parent=5 // pred_fallthru
        _
      %p361 = scmp.le.s32.totalorder 1, %s26
      %p362 = scmp.lt.s32.totalorder %s26, 3
      %p363 = pnand %p361, %p362
      %p364 = pneg %p363
      // Predicated region
      $region49: #{basic_block3d.1} parent=5 // pred_check
        _
      $region50: #{basic_block3d.1} parent=5 // pred_check_branch
        %366 = sbr.rel (%p363) target = $region52
      $region51: #{basic_block3d.1} parent=5 // pred_region
        %s367 = ssub.s32 %s26, 1
        %s368 = sand.u32 %s39, 1
        %s369 = scalar_lea.sflag [#allocation5], %s368
        %s370 = sand.u32 %s39, 1
        %s371 = smul.addr %s370, 80
        %s372 = scalar_lea.vmem [#allocation4], %s371
        // Predicated region
        $region53: #{basic_block3d.1} parent=51 // pred_check
          %p373 = pneg %p52
        $region54: #{basic_block3d.1} parent=51 // pred_check_branch
          %375 = sbr.rel (%p373) target = $region56
        $region55: #{basic_block3d.1} parent=51 // pred_region
          %376 = dma.done %s369, 1280
        $region56: #{basic_block3d.1} parent=51 // pred_fallthru
          _
        %s377 = sand.u32 %s31, 1
        %s378 = scalar_lea.sflag [#allocation8], %s377
        %s379 = sand.u32 %s65, 1
        %s380 = smul.addr %s379, 64
        %s381 = scalar_lea.vmem [#allocation7], %s380
        // Predicated region
        $region57: #{basic_block3d.1} parent=51 // pred_check
          %p382 = pneg %p78
        $region58: #{basic_block3d.1} parent=51 // pred_check_branch
          %384 = sbr.rel (%p382) target = $region60
        $region59: #{basic_block3d.1} parent=51 // pred_region
          %385 = dma.done %s378, 1024
        $region60: #{basic_block3d.1} parent=51 // pred_fallthru
          _
        // Predicated region
        $region61: #{basic_block3d.1} parent=51 // pred_check
          %p386 = pneg %p99
        $region62: #{basic_block3d.1} parent=51 // pred_check_branch
          %388 = sbr.rel (%p386) target = $region64
        $region63: #{basic_block3d.1} parent=51 // pred_region
          %389 = dma.done [#allocation8], 9216
        $region64: #{basic_block3d.1} parent=51 // pred_fallthru
          _
        // Predicated region
        $region65: #{basic_block3d.1} parent=51 // pred_check
          %p390 = pneg %p120
        $region66: #{basic_block3d.1} parent=51 // pred_check_branch
          %392 = sbr.rel (%p390) target = $region68
        $region67: #{basic_block3d.1} parent=51 // pred_region
          %393 = dma.done [#allocation11], 16
        $region68: #{basic_block3d.1} parent=51 // pred_fallthru
          _
        // Predicated region
        $region69: #{basic_block3d.1} parent=51 // pred_check
          %p394 = pneg %p141
        $region70: #{basic_block3d.1} parent=51 // pred_check_branch
          %396 = sbr.rel (%p394) target = $region72
        $region71: #{basic_block3d.1} parent=51 // pred_region
          %397 = dma.done [#allocation11], 16
        $region72: #{basic_block3d.1} parent=51 // pred_fallthru
          _
        // Predicated region
        $region73: #{basic_block3d.1} parent=51 // pred_check
          %p398 = pneg %p162
        $region74: #{basic_block3d.1} parent=51 // pred_check_branch
          %400 = sbr.rel (%p398) target = $region76
        $region75: #{basic_block3d.1} parent=51 // pred_region
          %401 = dma.done [#allocation14], 9216
        $region76: #{basic_block3d.1} parent=51 // pred_fallthru
          _
        // Predicated region
        $region77: #{basic_block3d.1} parent=51 // pred_check
          %p402 = pneg %p183
        $region78: #{basic_block3d.1} parent=51 // pred_check_branch
          %404 = sbr.rel (%p402) target = $region80
        $region79: #{basic_block3d.1} parent=51 // pred_region
          %405 = dma.done [#allocation14], 16
        $region80: #{basic_block3d.1} parent=51 // pred_fallthru
          _
        // Predicated region
        $region81: #{basic_block3d.1} parent=51 // pred_check
          %p406 = pneg %p204
        $region82: #{basic_block3d.1} parent=51 // pred_check_branch
          %408 = sbr.rel (%p406) target = $region84
        $region83: #{basic_block3d.1} parent=51 // pred_region
          %409 = dma.done [#allocation17], 16
        $region84: #{basic_block3d.1} parent=51 // pred_fallthru
          _
        %s410 = sand.u32 %s39, 1
        %s411 = scalar_lea.sflag [#allocation5], %s410
        %s412 = sand.u32 %s39, 1
        %s413 = smul.addr %s412, 80
        %s414 = scalar_lea.vmem [#allocation4], %s413
        %p415 = pneg %p52
        %p416 = pneg %p49
        %s417 = sand.u32 %s31, 1
        %s418 = scalar_lea.sflag [#allocation8], %s417
        %s419 = sand.u32 %s65, 1
        %s420 = smul.addr %s419, 64
        %s421 = scalar_lea.vmem [#allocation7], %s420
        %p422 = pneg %p78
        %p423 = pneg %p75
        %p424 = pneg %p99
        %p425 = pneg %p96
        %p426 = pneg %p120
        %p427 = pneg %p117
        %p428 = pneg %p141
        %p429 = pneg %p138
        %p430 = pneg %p162
        %p431 = pneg %p159
        %p432 = pneg %p183
        %p433 = pneg %p180
        %p434 = pneg %p204
        %p435 = pneg %p201
        %p436 = pneg %p230
        %p437 = pneg %p227
        %s438 = sand.u32 %s217, 1
        %s439 = scalar_lea.sflag [#allocation6], %s438
        %s440 = sand.u32 %s217, 1
        %s441 = smul.addr %s440, 64
        %s442 = scalar_lea.vmem [#allocation18], %s441
        %v444 = vld [vmem:[%s372] sm:$0xf]
        %v445 = vld [vmem:[%s372 + $0x8] sm:$0xf]
        %v446 = vld [vmem:[%s372 + $0x10] sm:$0xf]
        %v447 = vld [vmem:[%s372 + $0x18] sm:$0xf]
        %v448 = vld [vmem:[%s372 + $0x20] sm:$0xf]
        %v449 = vld [vmem:[%s372 + $0x28] sm:$0xf]
        %v450 = vld [vmem:[%s372 + $0x30] sm:$0xf]
        %v451 = vld [vmem:[%s372 + $0x38] sm:$0xf]
        %v452 = vld [vmem:[#allocation9] sm:$0xf]
        %v453 = vld [vmem:[#allocation9 + $0x4] sm:$0xf]
        %v454 = vld [vmem:[#allocation9 + $0x8] sm:$0xf]
        %v455 = vld [vmem:[#allocation9 + $0xc] sm:$0xf]
        %v456 = vld [vmem:[#allocation9 + $0x10] sm:$0xf]
        %v457 = vld [vmem:[#allocation9 + $0x14] sm:$0xf]
        %v458 = vld [vmem:[#allocation9 + $0x18] sm:$0xf]
        %v459 = vld [vmem:[#allocation9 + $0x1c] sm:$0xf]
        %v460 = vld [vmem:[#allocation9 + $0x20] sm:$0xf]
        %v461 = vld [vmem:[#allocation9 + $0x24] sm:$0xf]
        %v462 = vld [vmem:[#allocation9 + $0x28] sm:$0xf]
        %v463 = vld [vmem:[#allocation9 + $0x2c] sm:$0xf]
        %v464 = vld [vmem:[#allocation9 + $0x30] sm:$0xf]
        %v465 = vld [vmem:[#allocation9 + $0x34] sm:$0xf]
        %v466 = vld [vmem:[#allocation9 + $0x38] sm:$0xf]
        %v467 = vld [vmem:[#allocation9 + $0x3c] sm:$0xf]
        %v476 = vunpack.c.l.b16 %v444
        %v477 = vunpack.c.l.b16 %v445
        %v478 = vunpack.c.l.b16 %v446
        %v479 = vunpack.c.l.b16 %v447
        %v480 = vunpack.c.l.b16 %v448
        %v481 = vunpack.c.l.b16 %v449
        %v482 = vunpack.c.l.b16 %v450
        %v483 = vunpack.c.l.b16 %v451
        %v484 = vpack.c.b16 %v477, %v476
        %v485 = vpack.c.b16 %v479, %v478
        %v486 = vpack.c.b16 %v481, %v480
        %v487 = vpack.c.b16 %v483, %v482
        %v508 = vunpack.c.l.b16 %v452
        %v509 = vunpack.c.l.b16 %v453
        %v510 = vunpack.c.l.b16 %v454
        %v511 = vunpack.c.l.b16 %v455
        %v512 = vunpack.c.l.b16 %v456
        %v513 = vunpack.c.l.b16 %v457
        %v514 = vunpack.c.l.b16 %v458
        %v515 = vunpack.c.l.b16 %v459
        %v516 = vunpack.c.l.b16 %v460
        %v517 = vunpack.c.l.b16 %v461
        %v518 = vunpack.c.l.b16 %v462
        %v519 = vunpack.c.l.b16 %v463
        %v520 = vunpack.c.l.b16 %v464
        %v521 = vunpack.c.l.b16 %v465
        %v522 = vunpack.c.l.b16 %v466
        %v523 = vunpack.c.l.b16 %v467
        %v524 = vpack.c.b16 %v509, %v508
        %v525 = vpack.c.b16 %v511, %v510
        %v526 = vpack.c.b16 %v513, %v512
        %v527 = vpack.c.b16 %v515, %v514
        %v528 = vpack.c.b16 %v517, %v516
        %v529 = vpack.c.b16 %v519, %v518
        %v530 = vpack.c.b16 %v521, %v520
        %v531 = vpack.c.b16 %v523, %v522
        %540 = vmatprep.subr.bf16.mxu0 0
        %541 = vmatpush1.bf16.msra.mxu0 %v524
        %542 = vmatprep.subr.bf16.mxu0 0
        %543 = vmatpush1.bf16.msra.mxu0 %v525
        %544 = vmatprep.subr.bf16.mxu0 0
        %545 = vmatpush1.bf16.msra.mxu0 %v526
        %546 = vmatprep.subr.bf16.mxu0 0
        %547 = vmatpush1.bf16.msra.mxu0 %v527
        %548 = vmatprep.subr.bf16.mxu0 0
        %549 = vmatpush1.bf16.msra.mxu0 %v528
        %550 = vmatprep.subr.bf16.mxu0 0
        %551 = vmatpush1.bf16.msra.mxu0 %v529
        %552 = vmatprep.subr.bf16.mxu0 0
        %553 = vmatpush1.bf16.msra.mxu0 %v530
        %554 = vmatprep.subr.bf16.mxu0 0
        %555 = vmatpush1.bf16.msra.mxu0 %v531
        %556 = vmatprep.subr.bf16.mxu0 0
        %557 = vmatpush1.bf16.msra.mxu0 0
        %558 = vmatprep.subr.bf16.mxu0 0
        %559 = vmatpush1.bf16.msra.mxu0 0
        %560 = vmatprep.subr.bf16.mxu0 0
        %561 = vmatpush1.bf16.msra.mxu0 0
        %562 = vmatprep.subr.bf16.mxu0 0
        %563 = vmatpush1.bf16.msra.mxu0 0
        %564 = vmatprep.subr.bf16.mxu0 0
        %565 = vmatpush1.bf16.msra.mxu0 0
        %566 = vmatprep.subr.bf16.mxu0 0
        %567 = vmatpush1.bf16.msra.mxu0 0
        %568 = vmatprep.subr.bf16.mxu0 0
        %569 = vmatpush1.bf16.msra.mxu0 0
        %570 = vmatprep.subr.bf16.mxu0 0
        %571 = vmatpush1.bf16.msra.mxu0 0
        %572 = vmatprep.mubr.bf16.mxu0 0
        %573 = vmatmul.mubr.bf16.gmra.mrb[0].mxu0 %v484
        %v574 = vpop.f32.mrb[0].mxu0
        %v575 = vadd.f32 0.0, %v574
        %v576 = vpop.f32.mrb[0].mxu0
        %v577 = vpop.f32.mrb[0].mxu0
        %v578 = vadd.f32 0.0, %v577
        %v579 = vpop.f32.mrb[0].mxu0
        %580 = vmatprep.mubr.bf16.mxu0 0
        %581 = vmatmul.mubr.bf16.gmra.mrb[0].mxu0 %v485
        %v582 = vpop.f32.mrb[0].mxu0
        %v583 = vadd.f32 0.0, %v582
        %v584 = vpop.f32.mrb[0].mxu0
        %v585 = vpop.f32.mrb[0].mxu0
        %v586 = vadd.f32 0.0, %v585
        %v587 = vpop.f32.mrb[0].mxu0
        %588 = vmatprep.mubr.bf16.mxu0 0
        %589 = vmatmul.mubr.bf16.gmra.mrb[0].mxu0 %v486
        %v590 = vpop.f32.mrb[0].mxu0
        %v591 = vadd.f32 0.0, %v590
        %v592 = vpop.f32.mrb[0].mxu0
        %v593 = vpop.f32.mrb[0].mxu0
        %v594 = vadd.f32 0.0, %v593
        %v595 = vpop.f32.mrb[0].mxu0
        %596 = vmatprep.mubr.bf16.mxu0 0
        %597 = vmatmul.mubr.bf16.gmra.mrb[0].mxu0 %v487
        %v598 = vpop.f32.mrb[0].mxu0
        %v599 = vadd.f32 0.0, %v598
        %v600 = vpop.f32.mrb[0].mxu0
        %v601 = vpop.f32.mrb[0].mxu0
        %v602 = vadd.f32 0.0, %v601
        %v603 = vpop.f32.mrb[0].mxu0
        %604 = vdwg.mxu0
        %605 = vst [vmem:[#allocation2] sm:$0xff] %v575
        %606 = vst [vmem:[#allocation2 + $0x8] sm:$0xff] %v578
        %607 = vst [vmem:[#allocation2 + $0x10] sm:$0xff] %v583
        %608 = vst [vmem:[#allocation2 + $0x18] sm:$0xff] %v586
        %609 = vst [vmem:[#allocation2 + $0x20] sm:$0xff] %v591
        %610 = vst [vmem:[#allocation2 + $0x28] sm:$0xff] %v594
        %611 = vst [vmem:[#allocation2 + $0x30] sm:$0xff] %v599
        %612 = vst [vmem:[#allocation2 + $0x38] sm:$0xff] %v602
        %v613 = vld [vmem:[%s372] sm:$0xf]
        %v614 = vld [vmem:[%s372 + $0x4] sm:$0x1]
        %v615 = vld [vmem:[%s372 + $0x8] sm:$0xf]
        %v616 = vld [vmem:[%s372 + $0xc] sm:$0x1]
        %v617 = vld [vmem:[%s372 + $0x10] sm:$0xf]
        %v618 = vld [vmem:[%s372 + $0x14] sm:$0x1]
        %v619 = vld [vmem:[%s372 + $0x18] sm:$0xf]
        %v620 = vld [vmem:[%s372 + $0x1c] sm:$0x1]
        %v621 = vld [vmem:[%s372 + $0x20] sm:$0xf]
        %v622 = vld [vmem:[%s372 + $0x24] sm:$0x1]
        %v623 = vld [vmem:[%s372 + $0x28] sm:$0xf]
        %v624 = vld [vmem:[%s372 + $0x2c] sm:$0x1]
        %v625 = vld [vmem:[%s372 + $0x30] sm:$0xf]
        %v626 = vld [vmem:[%s372 + $0x34] sm:$0x1]
        %v627 = vld [vmem:[%s372 + $0x38] sm:$0xf]
        %v628 = vld [vmem:[%s372 + $0x3c] sm:$0x1]
        %vm629 = vsmask.f32 3328
        %vm630 = vsmask.f32 7440
        %vm631 = vmor %vm629, %vm630
        %v633 = vshrl.u32 %v613, 16
        %v635 = vrot.slane %v633, 4
        %v636 = vshll.u32 %v613, 16
        %v638 = vrot.slane %v636, 5
        %v639 = vor.u32 %v635, %v638
        %v640 = vrot.slane %v639, 4
        %v642 = vshll.u32 %v614, 16
        %v644 = vrot.slane %v642, 5
        %v645 = vsel %vm631, %v640, %v644
        %v647 = vshrl.u32 %v615, 16
        %v649 = vrot.slane %v647, 4
        %v650 = vshll.u32 %v615, 16
        %v652 = vrot.slane %v650, 5
        %v653 = vor.u32 %v649, %v652
        %v654 = vrot.slane %v653, 4
        %v656 = vshll.u32 %v616, 16
        %v658 = vrot.slane %v656, 5
        %v659 = vsel %vm631, %v654, %v658
        %v661 = vshrl.u32 %v617, 16
        %v663 = vrot.slane %v661, 4
        %v664 = vshll.u32 %v617, 16
        %v666 = vrot.slane %v664, 5
        %v667 = vor.u32 %v663, %v666
        %v668 = vrot.slane %v667, 4
        %v670 = vshll.u32 %v618, 16
        %v672 = vrot.slane %v670, 5
        %v673 = vsel %vm631, %v668, %v672
        %v675 = vshrl.u32 %v619, 16
        %v677 = vrot.slane %v675, 4
        %v678 = vshll.u32 %v619, 16
        %v680 = vrot.slane %v678, 5
        %v681 = vor.u32 %v677, %v680
        %v682 = vrot.slane %v681, 4
        %v684 = vshll.u32 %v620, 16
        %v686 = vrot.slane %v684, 5
        %v687 = vsel %vm631, %v682, %v686
        %v689 = vshrl.u32 %v621, 16
        %v691 = vrot.slane %v689, 4
        %v692 = vshll.u32 %v621, 16
        %v694 = vrot.slane %v692, 5
        %v695 = vor.u32 %v691, %v694
        %v696 = vrot.slane %v695, 4
        %v698 = vshll.u32 %v622, 16
        %v700 = vrot.slane %v698, 5
        %v701 = vsel %vm631, %v696, %v700
        %v703 = vshrl.u32 %v623, 16
        %v705 = vrot.slane %v703, 4
        %v706 = vshll.u32 %v623, 16
        %v708 = vrot.slane %v706, 5
        %v709 = vor.u32 %v705, %v708
        %v710 = vrot.slane %v709, 4
        %v712 = vshll.u32 %v624, 16
        %v714 = vrot.slane %v712, 5
        %v715 = vsel %vm631, %v710, %v714
        %v717 = vshrl.u32 %v625, 16
        %v719 = vrot.slane %v717, 4
        %v720 = vshll.u32 %v625, 16
        %v722 = vrot.slane %v720, 5
        %v723 = vor.u32 %v719, %v722
        %v724 = vrot.slane %v723, 4
        %v726 = vshll.u32 %v626, 16
        %v728 = vrot.slane %v726, 5
        %v729 = vsel %vm631, %v724, %v728
        %v731 = vshrl.u32 %v627, 16
        %v733 = vrot.slane %v731, 4
        %v734 = vshll.u32 %v627, 16
        %v736 = vrot.slane %v734, 5
        %v737 = vor.u32 %v733, %v736
        %v738 = vrot.slane %v737, 4
        %v740 = vshll.u32 %v628, 16
        %v742 = vrot.slane %v740, 5
        %v743 = vsel %vm631, %v738, %v742
        %s744 = scalar_lea.vmem [#allocation9], 64
        %v745 = vld [vmem:[%s744] sm:$0xf]
        %v746 = vld [vmem:[%s744 + $0x4] sm:$0xf]
        %v747 = vld [vmem:[%s744 + $0x8] sm:$0xf]
        %v748 = vld [vmem:[%s744 + $0xc] sm:$0xf]
        %v749 = vld [vmem:[%s744 + $0x10] sm:$0xf]
        %v750 = vld [vmem:[%s744 + $0x14] sm:$0xf]
        %v751 = vld [vmem:[%s744 + $0x18] sm:$0xf]
        %v752 = vld [vmem:[%s744 + $0x1c] sm:$0xf]
        %v753 = vld [vmem:[%s744 + $0x20] sm:$0xf]
        %v754 = vld [vmem:[%s744 + $0x24] sm:$0xf]
        %v755 = vld [vmem:[%s744 + $0x28] sm:$0xf]
        %v756 = vld [vmem:[%s744 + $0x2c] sm:$0xf]
        %v757 = vld [vmem:[%s744 + $0x30] sm:$0xf]
        %v758 = vld [vmem:[%s744 + $0x34] sm:$0xf]
        %v759 = vld [vmem:[%s744 + $0x38] sm:$0xf]
        %v760 = vld [vmem:[%s744 + $0x3c] sm:$0xf]
        %v761 = vunpack.c.l.b16 %v645
        %v762 = vunpack.c.l.b16 %v659
        %v763 = vunpack.c.l.b16 %v673
        %v764 = vunpack.c.l.b16 %v687
        %v765 = vunpack.c.l.b16 %v701
        %v766 = vunpack.c.l.b16 %v715
        %v767 = vunpack.c.l.b16 %v729
        %v768 = vunpack.c.l.b16 %v743
        %v769 = vpack.c.b16 %v762, %v761
        %v770 = vpack.c.b16 %v764, %v763
        %v771 = vpack.c.b16 %v766, %v765
        %v772 = vpack.c.b16 %v768, %v767
        %v793 = vunpack.c.l.b16 %v745
        %v794 = vunpack.c.l.b16 %v746
        %v795 = vunpack.c.l.b16 %v747
        %v796 = vunpack.c.l.b16 %v748
        %v797 = vunpack.c.l.b16 %v749
        %v798 = vunpack.c.l.b16 %v750
        %v799 = vunpack.c.l.b16 %v751
        %v800 = vunpack.c.l.b16 %v752
        %v801 = vunpack.c.l.b16 %v753
        %v802 = vunpack.c.l.b16 %v754
        %v803 = vunpack.c.l.b16 %v755
        %v804 = vunpack.c.l.b16 %v756
        %v805 = vunpack.c.l.b16 %v757
        %v806 = vunpack.c.l.b16 %v758
        %v807 = vunpack.c.l.b16 %v759
        %v808 = vunpack.c.l.b16 %v760
        %v809 = vpack.c.b16 %v794, %v793
        %v810 = vpack.c.b16 %v796, %v795
        %v811 = vpack.c.b16 %v798, %v797
        %v812 = vpack.c.b16 %v800, %v799
        %v813 = vpack.c.b16 %v802, %v801
        %v814 = vpack.c.b16 %v804, %v803
        %v815 = vpack.c.b16 %v806, %v805
        %v816 = vpack.c.b16 %v808, %v807
        %825 = vmatprep.subr.bf16.mxu0 0
        %826 = vmatpush1.bf16.msra.mxu0 %v809
        %827 = vmatprep.subr.bf16.mxu0 0
        %828 = vmatpush1.bf16.msra.mxu0 %v810
        %829 = vmatprep.subr.bf16.mxu0 0
        %830 = vmatpush1.bf16.msra.mxu0 %v811
        %831 = vmatprep.subr.bf16.mxu0 0
        %832 = vmatpush1.bf16.msra.mxu0 %v812
        %833 = vmatprep.subr.bf16.mxu0 0
        %834 = vmatpush1.bf16.msra.mxu0 %v813
        %835 = vmatprep.subr.bf16.mxu0 0
        %836 = vmatpush1.bf16.msra.mxu0 %v814
        %837 = vmatprep.subr.bf16.mxu0 0
        %838 = vmatpush1.bf16.msra.mxu0 %v815
        %839 = vmatprep.subr.bf16.mxu0 0
        %840 = vmatpush1.bf16.msra.mxu0 %v816
        %841 = vmatprep.subr.bf16.mxu0 0
        %842 = vmatpush1.bf16.msra.mxu0 0
        %843 = vmatprep.subr.bf16.mxu0 0
        %844 = vmatpush1.bf16.msra.mxu0 0
        %845 = vmatprep.subr.bf16.mxu0 0
        %846 = vmatpush1.bf16.msra.mxu0 0
        %847 = vmatprep.subr.bf16.mxu0 0
        %848 = vmatpush1.bf16.msra.mxu0 0
        %849 = vmatprep.subr.bf16.mxu0 0
        %850 = vmatpush1.bf16.msra.mxu0 0
        %851 = vmatprep.subr.bf16.mxu0 0
        %852 = vmatpush1.bf16.msra.mxu0 0
        %853 = vmatprep.subr.bf16.mxu0 0
        %854 = vmatpush1.bf16.msra.mxu0 0
        %855 = vmatprep.subr.bf16.mxu0 0
        %856 = vmatpush1.bf16.msra.mxu0 0
        %857 = vmatprep.mubr.bf16.mxu0 0
        %858 = vmatmul.mubr.bf16.gmra.mrb[0].mxu0 %v769
        %v859 = vpop.f32.mrb[0].mxu0
        %v860 = vadd.f32 0.0, %v859
        %v861 = vpop.f32.mrb[0].mxu0
        %v862 = vpop.f32.mrb[0].mxu0
        %v863 = vadd.f32 0.0, %v862
        %v864 = vpop.f32.mrb[0].mxu0
        %865 = vmatprep.mubr.bf16.mxu0 0
        %866 = vmatmul.mubr.bf16.gmra.mrb[0].mxu0 %v770
        %v867 = vpop.f32.mrb[0].mxu0
        %v868 = vadd.f32 0.0, %v867
        %v869 = vpop.f32.mrb[0].mxu0
        %v870 = vpop.f32.mrb[0].mxu0
        %v871 = vadd.f32 0.0, %v870
        %v872 = vpop.f32.mrb[0].mxu0
        %873 = vmatprep.mubr.bf16.mxu0 0
        %874 = vmatmul.mubr.bf16.gmra.mrb[0].mxu0 %v771
        %v875 = vpop.f32.mrb[0].mxu0
        %v876 = vadd.f32 0.0, %v875
        %v877 = vpop.f32.mrb[0].mxu0
        %v878 = vpop.f32.mrb[0].mxu0
        %v879 = vadd.f32 0.0, %v878
        %v880 = vpop.f32.mrb[0].mxu0
        %881 = vmatprep.mubr.bf16.mxu0 0
        %882 = vmatmul.mubr.bf16.gmra.mrb[0].mxu0 %v772
        %v883 = vpop.f32.mrb[0].mxu0
        %v884 = vadd.f32 0.0, %v883
        %v885 = vpop.f32.mrb[0].mxu0
        %v886 = vpop.f32.mrb[0].mxu0
        %v887 = vadd.f32 0.0, %v886
        %v888 = vpop.f32.mrb[0].mxu0
        %889 = vdwg.mxu0
        %v890 = vld [vmem:[#allocation2] sm:$0xff]
        %v891 = vld [vmem:[#allocation2 + $0x8] sm:$0xff]
        %v892 = vld [vmem:[#allocation2 + $0x10] sm:$0xff]
        %v893 = vld [vmem:[#allocation2 + $0x18] sm:$0xff]
        %v894 = vld [vmem:[#allocation2 + $0x20] sm:$0xff]
        %v895 = vld [vmem:[#allocation2 + $0x28] sm:$0xff]
        %v896 = vld [vmem:[#allocation2 + $0x30] sm:$0xff]
        %v897 = vld [vmem:[#allocation2 + $0x38] sm:$0xff]
        %v898 = vadd.f32 %v890, %v860
        %v899 = vadd.f32 %v891, %v863
        %v900 = vadd.f32 %v892, %v868
        %v901 = vadd.f32 %v893, %v871
        %v902 = vadd.f32 %v894, %v876
        %v903 = vadd.f32 %v895, %v879
        %v904 = vadd.f32 %v896, %v884
        %v905 = vadd.f32 %v897, %v887
        %906 = vst [vmem:[#allocation2] sm:$0xff] %v898
        %907 = vst [vmem:[#allocation2 + $0x8] sm:$0xff] %v899
        %908 = vst [vmem:[#allocation2 + $0x10] sm:$0xff] %v900
        %909 = vst [vmem:[#allocation2 + $0x18] sm:$0xff] %v901
        %910 = vst [vmem:[#allocation2 + $0x20] sm:$0xff] %v902
        %911 = vst [vmem:[#allocation2 + $0x28] sm:$0xff] %v903
        %912 = vst [vmem:[#allocation2 + $0x30] sm:$0xff] %v904
        %913 = vst [vmem:[#allocation2 + $0x38] sm:$0xff] %v905
        %v914 = vld [vmem:[%s372] sm:$0xe]
        %v915 = vld [vmem:[%s372 + $0x4] sm:$0x1]
        %v916 = vld [vmem:[%s372 + $0x8] sm:$0xe]
        %v917 = vld [vmem:[%s372 + $0xc] sm:$0x1]
        %v918 = vld [vmem:[%s372 + $0x10] sm:$0xe]
        %v919 = vld [vmem:[%s372 + $0x14] sm:$0x1]
        %v920 = vld [vmem:[%s372 + $0x18] sm:$0xe]
        %v921 = vld [vmem:[%s372 + $0x1c] sm:$0x1]
        %v922 = vld [vmem:[%s372 + $0x20] sm:$0xe]
        %v923 = vld [vmem:[%s372 + $0x24] sm:$0x1]
        %v924 = vld [vmem:[%s372 + $0x28] sm:$0xe]
        %v925 = vld [vmem:[%s372 + $0x2c] sm:$0x1]
        %v926 = vld [vmem:[%s372 + $0x30] sm:$0xe]
        %v927 = vld [vmem:[%s372 + $0x34] sm:$0x1]
        %v928 = vld [vmem:[%s372 + $0x38] sm:$0xe]
        %v929 = vld [vmem:[%s372 + $0x3c] sm:$0x1]
        %vm946 = vcmask 1042432
        %vm947 = vcmask 1046532
        %vm948 = vmor %vm946, %vm947
        %v949 = vrot.slane %v914, 5
        %v950 = vrot.slane %v949, 4
        %v951 = vrot.slane %v915, 5
        %v952 = vsel %vm948, %v950, %v951
        %v953 = vrot.slane %v916, 5
        %v954 = vrot.slane %v953, 4
        %v955 = vrot.slane %v917, 5
        %v956 = vsel %vm948, %v954, %v955
        %v957 = vrot.slane %v918, 5
        %v958 = vrot.slane %v957, 4
        %v959 = vrot.slane %v919, 5
        %v960 = vsel %vm948, %v958, %v959
        %v961 = vrot.slane %v920, 5
        %v962 = vrot.slane %v961, 4
        %v963 = vrot.slane %v921, 5
        %v964 = vsel %vm948, %v962, %v963
        %v965 = vrot.slane %v922, 5
        %v966 = vrot.slane %v965, 4
        %v967 = vrot.slane %v923, 5
        %v968 = vsel %vm948, %v966, %v967
        %v969 = vrot.slane %v924, 5
        %v970 = vrot.slane %v969, 4
        %v971 = vrot.slane %v925, 5
        %v972 = vsel %vm948, %v970, %v971
        %v973 = vrot.slane %v926, 5
        %v974 = vrot.slane %v973, 4
        %v975 = vrot.slane %v927, 5
        %v976 = vsel %vm948, %v974, %v975
        %v977 = vrot.slane %v928, 5
        %v978 = vrot.slane %v977, 4
        %v979 = vrot.slane %v929, 5
        %v980 = vsel %vm948, %v978, %v979
        %s981 = scalar_lea.vmem [#allocation9], 128
        %v982 = vld [vmem:[%s981] sm:$0xf]
        %v983 = vld [vmem:[%s981 + $0x4] sm:$0xf]
        %v984 = vld [vmem:[%s981 + $0x8] sm:$0xf]
        %v985 = vld [vmem:[%s981 + $0xc] sm:$0xf]
        %v986 = vld [vmem:[%s981 + $0x10] sm:$0xf]
        %v987 = vld [vmem:[%s981 + $0x14] sm:$0xf]
        %v988 = vld [vmem:[%s981 + $0x18] sm:$0xf]
        %v989 = vld [vmem:[%s981 + $0x1c] sm:$0xf]
        %v990 = vld [vmem:[%s981 + $0x20] sm:$0xf]
        %v991 = vld [vmem:[%s981 + $0x24] sm:$0xf]
        %v992 = vld [vmem:[%s981 + $0x28] sm:$0xf]
        %v993 = vld [vmem:[%s981 + $0x2c] sm:$0xf]
        %v994 = vld [vmem:[%s981 + $0x30] sm:$0xf]
        %v995 = vld [vmem:[%s981 + $0x34] sm:$0xf]
        %v996 = vld [vmem:[%s981 + $0x38] sm:$0xf]
        %v997 = vld [vmem:[%s981 + $0x3c] sm:$0xf]
        %v998 = vunpack.c.l.b16 %v952
        %v999 = vunpack.c.l.b16 %v956
        %v1000 = vunpack.c.l.b16 %v960
        %v1001 = vunpack.c.l.b16 %v964
        %v1002 = vunpack.c.l.b16 %v968
        %v1003 = vunpack.c.l.b16 %v972
        %v1004 = vunpack.c.l.b16 %v976
        %v1005 = vunpack.c.l.b16 %v980
        %v1006 = vpack.c.b16 %v999, %v998
        %v1007 = vpack.c.b16 %v1001, %v1000
        %v1008 = vpack.c.b16 %v1003, %v1002
        %v1009 = vpack.c.b16 %v1005, %v1004
        %v1030 = vunpack.c.l.b16 %v982
        %v1031 = vunpack.c.l.b16 %v983
        %v1032 = vunpack.c.l.b16 %v984
        %v1033 = vunpack.c.l.b16 %v985
        %v1034 = vunpack.c.l.b16 %v986
        %v1035 = vunpack.c.l.b16 %v987
        %v1036 = vunpack.c.l.b16 %v988
        %v1037 = vunpack.c.l.b16 %v989
        %v1038 = vunpack.c.l.b16 %v990
        %v1039 = vunpack.c.l.b16 %v991
        %v1040 = vunpack.c.l.b16 %v992
        %v1041 = vunpack.c.l.b16 %v993
        %v1042 = vunpack.c.l.b16 %v994
        %v1043 = vunpack.c.l.b16 %v995
        %v1044 = vunpack.c.l.b16 %v996
        %v1045 = vunpack.c.l.b16 %v997
        %v1046 = vpack.c.b16 %v1031, %v1030
        %v1047 = vpack.c.b16 %v1033, %v1032
        %v1048 = vpack.c.b16 %v1035, %v1034
        %v1049 = vpack.c.b16 %v1037, %v1036
        %v1050 = vpack.c.b16 %v1039, %v1038
        %v1051 = vpack.c.b16 %v1041, %v1040
        %v1052 = vpack.c.b16 %v1043, %v1042
        %v1053 = vpack.c.b16 %v1045, %v1044
        %1062 = vmatprep.subr.bf16.mxu0 0
        %1063 = vmatpush1.bf16.msra.mxu0 %v1046
        %1064 = vmatprep.subr.bf16.mxu0 0
        %1065 = vmatpush1.bf16.msra.mxu0 %v1047
        %1066 = vmatprep.subr.bf16.mxu0 0
        %1067 = vmatpush1.bf16.msra.mxu0 %v1048
        %1068 = vmatprep.subr.bf16.mxu0 0
        %1069 = vmatpush1.bf16.msra.mxu0 %v1049
        %1070 = vmatprep.subr.bf16.mxu0 0
        %1071 = vmatpush1.bf16.msra.mxu0 %v1050
        %1072 = vmatprep.subr.bf16.mxu0 0
        %1073 = vmatpush1.bf16.msra.mxu0 %v1051
        %1074 = vmatprep.subr.bf16.mxu0 0
        %1075 = vmatpush1.bf16.msra.mxu0 %v1052
        %1076 = vmatprep.subr.bf16.mxu0 0
        %1077 = vmatpush1.bf16.msra.mxu0 %v1053
        %1078 = vmatprep.subr.bf16.mxu0 0
        %1079 = vmatpush1.bf16.msra.mxu0 0
        %1080 = vmatprep.subr.bf16.mxu0 0
        %1081 = vmatpush1.bf16.msra.mxu0 0
        %1082 = vmatprep.subr.bf16.mxu0 0
        %1083 = vmatpush1.bf16.msra.mxu0 0
        %1084 = vmatprep.subr.bf16.mxu0 0
        %1085 = vmatpush1.bf16.msra.mxu0 0
        %1086 = vmatprep.subr.bf16.mxu0 0
        %1087 = vmatpush1.bf16.msra.mxu0 0
        %1088 = vmatprep.subr.bf16.mxu0 0
        %1089 = vmatpush1.bf16.msra.mxu0 0
        %1090 = vmatprep.subr.bf16.mxu0 0
        %1091 = vmatpush1.bf16.msra.mxu0 0
        %1092 = vmatprep.subr.bf16.mxu0 0
        %1093 = vmatpush1.bf16.msra.mxu0 0
        %1094 = vmatprep.mubr.bf16.mxu0 0
        %1095 = vmatmul.mubr.bf16.gmra.mrb[0].mxu0 %v1006
        %v1096 = vpop.f32.mrb[0].mxu0
        %v1097 = vadd.f32 0.0, %v1096
        %v1098 = vpop.f32.mrb[0].mxu0
        %v1099 = vpop.f32.mrb[0].mxu0
        %v1100 = vadd.f32 0.0, %v1099
        %v1101 = vpop.f32.mrb[0].mxu0
        %1102 = vmatprep.mubr.bf16.mxu0 0
        %1103 = vmatmul.mubr.bf16.gmra.mrb[0].mxu0 %v1007
        %v1104 = vpop.f32.mrb[0].mxu0
        %v1105 = vadd.f32 0.0, %v1104
        %v1106 = vpop.f32.mrb[0].mxu0
        %v1107 = vpop.f32.mrb[0].mxu0
        %v1108 = vadd.f32 0.0, %v1107
        %v1109 = vpop.f32.mrb[0].mxu0
        %1110 = vmatprep.mubr.bf16.mxu0 0
        %1111 = vmatmul.mubr.bf16.gmra.mrb[0].mxu0 %v1008
        %v1112 = vpop.f32.mrb[0].mxu0
        %v1113 = vadd.f32 0.0, %v1112
        %v1114 = vpop.f32.mrb[0].mxu0
        %v1115 = vpop.f32.mrb[0].mxu0
        %v1116 = vadd.f32 0.0, %v1115
        %v1117 = vpop.f32.mrb[0].mxu0
        %1118 = vmatprep.mubr.bf16.mxu0 0
        %1119 = vmatmul.mubr.bf16.gmra.mrb[0].mxu0 %v1009
        %v1120 = vpop.f32.mrb[0].mxu0
        %v1121 = vadd.f32 0.0, %v1120
        %v1122 = vpop.f32.mrb[0].mxu0
        %v1123 = vpop.f32.mrb[0].mxu0
        %v1124 = vadd.f32 0.0, %v1123
        %v1125 = vpop.f32.mrb[0].mxu0
        %1126 = vdwg.mxu0
        %v1127 = vld [vmem:[#allocation2] sm:$0xff]
        %v1128 = vld [vmem:[#allocation2 + $0x8] sm:$0xff]
        %v1129 = vld [vmem:[#allocation2 + $0x10] sm:$0xff]
        %v1130 = vld [vmem:[#allocation2 + $0x18] sm:$0xff]
        %v1131 = vld [vmem:[#allocation2 + $0x20] sm:$0xff]
        %v1132 = vld [vmem:[#allocation2 + $0x28] sm:$0xff]
        %v1133 = vld [vmem:[#allocation2 + $0x30] sm:$0xff]
        %v1134 = vld [vmem:[#allocation2 + $0x38] sm:$0xff]
        %v1135 = vadd.f32 %v1127, %v1097
        %v1136 = vadd.f32 %v1128, %v1100
        %v1137 = vadd.f32 %v1129, %v1105
        %v1138 = vadd.f32 %v1130, %v1108
        %v1139 = vadd.f32 %v1131, %v1113
        %v1140 = vadd.f32 %v1132, %v1116
        %v1141 = vadd.f32 %v1133, %v1121
        %v1142 = vadd.f32 %v1134, %v1124
        %1143 = vst [vmem:[#allocation2] sm:$0xff] %v1135
        %1144 = vst [vmem:[#allocation2 + $0x8] sm:$0xff] %v1136
        %1145 = vst [vmem:[#allocation2 + $0x10] sm:$0xff] %v1137
        %1146 = vst [vmem:[#allocation2 + $0x18] sm:$0xff] %v1138
        %1147 = vst [vmem:[#allocation2 + $0x20] sm:$0xff] %v1139
        %1148 = vst [vmem:[#allocation2 + $0x28] sm:$0xff] %v1140
        %1149 = vst [vmem:[#allocation2 + $0x30] sm:$0xff] %v1141
        %1150 = vst [vmem:[#allocation2 + $0x38] sm:$0xff] %v1142
        %s1151 = scalar_lea.vmem %s372, 8 [#allocation4]
        %v1152 = vld [vmem:[%s1151] sm:$0xf]
        %v1153 = vld [vmem:[%s1151 + $0x8] sm:$0xf]
        %v1154 = vld [vmem:[%s1151 + $0x10] sm:$0xf]
        %v1155 = vld [vmem:[%s1151 + $0x18] sm:$0xf]
        %v1156 = vld [vmem:[%s1151 + $0x20] sm:$0xf]
        %v1157 = vld [vmem:[%s1151 + $0x28] sm:$0xf]
        %v1158 = vld [vmem:[%s1151 + $0x30] sm:$0xf]
        %v1159 = vld [vmem:[%s1151 + $0x38] sm:$0xf]
        %s1160 = scalar_lea.vmem [#allocation9], 192
        %v1161 = vld [vmem:[%s1160] sm:$0xf]
        %v1162 = vld [vmem:[%s1160 + $0x4] sm:$0xf]
        %v1163 = vld [vmem:[%s1160 + $0x8] sm:$0xf]
        %v1164 = vld [vmem:[%s1160 + $0xc] sm:$0xf]
        %v1165 = vld [vmem:[%s1160 + $0x10] sm:$0xf]
        %v1166 = vld [vmem:[%s1160 + $0x14] sm:$0xf]
        %v1167 = vld [vmem:[%s1160 + $0x18] sm:$0xf]
        %v1168 = vld [vmem:[%s1160 + $0x1c] sm:$0xf]
        %v1169 = vld [vmem:[%s1160 + $0x20] sm:$0xf]
        %v1170 = vld [vmem:[%s1160 + $0x24] sm:$0xf]
        %v1171 = vld [vmem:[%s1160 + $0x28] sm:$0xf]
        %v1172 = vld [vmem:[%s1160 + $0x2c] sm:$0xf]
        %v1173 = vld [vmem:[%s1160 + $0x30] sm:$0xf]
        %v1174 = vld [vmem:[%s1160 + $0x34] sm:$0xf]
        %v1175 = vld [vmem:[%s1160 + $0x38] sm:$0xf]
        %v1176 = vld [vmem:[%s1160 + $0x3c] sm:$0xf]
        %v1185 = vunpack.c.l.b16 %v1152
        %v1186 = vunpack.c.l.b16 %v1153
        %v1187 = vunpack.c.l.b16 %v1154
        %v1188 = vunpack.c.l.b16 %v1155
        %v1189 = vunpack.c.l.b16 %v1156
        %v1190 = vunpack.c.l.b16 %v1157
        %v1191 = vunpack.c.l.b16 %v1158
        %v1192 = vunpack.c.l.b16 %v1159
        %v1193 = vpack.c.b16 %v1186, %v1185
        %v1194 = vpack.c.b16 %v1188, %v1187
        %v1195 = vpack.c.b16 %v1190, %v1189
        %v1196 = vpack.c.b16 %v1192, %v1191
        %v1217 = vunpack.c.l.b16 %v1161
        %v1218 = vunpack.c.l.b16 %v1162
        %v1219 = vunpack.c.l.b16 %v1163
        %v1220 = vunpack.c.l.b16 %v1164
        %v1221 = vunpack.c.l.b16 %v1165
        %v1222 = vunpack.c.l.b16 %v1166
        %v1223 = vunpack.c.l.b16 %v1167
        %v1224 = vunpack.c.l.b16 %v1168
        %v1225 = vunpack.c.l.b16 %v1169
        %v1226 = vunpack.c.l.b16 %v1170
        %v1227 = vunpack.c.l.b16 %v1171
        %v1228 = vunpack.c.l.b16 %v1172
        %v1229 = vunpack.c.l.b16 %v1173
        %v1230 = vunpack.c.l.b16 %v1174
        %v1231 = vunpack.c.l.b16 %v1175
        %v1232 = vunpack.c.l.b16 %v1176
        %v1233 = vpack.c.b16 %v1218, %v1217
        %v1234 = vpack.c.b16 %v1220, %v1219
        %v1235 = vpack.c.b16 %v1222, %v1221
        %v1236 = vpack.c.b16 %v1224, %v1223
        %v1237 = vpack.c.b16 %v1226, %v1225
        %v1238 = vpack.c.b16 %v1228, %v1227
        %v1239 = vpack.c.b16 %v1230, %v1229
        %v1240 = vpack.c.b16 %v1232, %v1231
        %1249 = vmatprep.subr.bf16.mxu0 0
        %1250 = vmatpush1.bf16.msra.mxu0 %v1233
        %1251 = vmatprep.subr.bf16.mxu0 0
        %1252 = vmatpush1.bf16.msra.mxu0 %v1234
        %1253 = vmatprep.subr.bf16.mxu0 0
        %1254 = vmatpush1.bf16.msra.mxu0 %v1235
        %1255 = vmatprep.subr.bf16.mxu0 0
        %1256 = vmatpush1.bf16.msra.mxu0 %v1236
        %1257 = vmatprep.subr.bf16.mxu0 0
        %1258 = vmatpush1.bf16.msra.mxu0 %v1237
        %1259 = vmatprep.subr.bf16.mxu0 0
        %1260 = vmatpush1.bf16.msra.mxu0 %v1238
        %1261 = vmatprep.subr.bf16.mxu0 0
        %1262 = vmatpush1.bf16.msra.mxu0 %v1239
        %1263 = vmatprep.subr.bf16.mxu0 0
        %1264 = vmatpush1.bf16.msra.mxu0 %v1240
        %1265 = vmatprep.subr.bf16.mxu0 0
        %1266 = vmatpush1.bf16.msra.mxu0 0
        %1267 = vmatprep.subr.bf16.mxu0 0
        %1268 = vmatpush1.bf16.msra.mxu0 0
        %1269 = vmatprep.subr.bf16.mxu0 0
        %1270 = vmatpush1.bf16.msra.mxu0 0
        %1271 = vmatprep.subr.bf16.mxu0 0
        %1272 = vmatpush1.bf16.msra.mxu0 0
        %1273 = vmatprep.subr.bf16.mxu0 0
        %1274 = vmatpush1.bf16.msra.mxu0 0
        %1275 = vmatprep.subr.bf16.mxu0 0
        %1276 = vmatpush1.bf16.msra.mxu0 0
        %1277 = vmatprep.subr.bf16.mxu0 0
        %1278 = vmatpush1.bf16.msra.mxu0 0
        %1279 = vmatprep.subr.bf16.mxu0 0
        %1280 = vmatpush1.bf16.msra.mxu0 0
        %1281 = vmatprep.mubr.bf16.mxu0 0
        %1282 = vmatmul.mubr.bf16.gmra.mrb[0].mxu0 %v1193
        %v1283 = vpop.f32.mrb[0].mxu0
        %v1284 = vadd.f32 0.0, %v1283
        %v1285 = vpop.f32.mrb[0].mxu0
        %v1286 = vpop.f32.mrb[0].mxu0
        %v1287 = vadd.f32 0.0, %v1286
        %v1288 = vpop.f32.mrb[0].mxu0
        %1289 = vmatprep.mubr.bf16.mxu0 0
        %1290 = vmatmul.mubr.bf16.gmra.mrb[0].mxu0 %v1194
        %v1291 = vpop.f32.mrb[0].mxu0
        %v1292 = vadd.f32 0.0, %v1291
        %v1293 = vpop.f32.mrb[0].mxu0
        %v1294 = vpop.f32.mrb[0].mxu0
        %v1295 = vadd.f32 0.0, %v1294
        %v1296 = vpop.f32.mrb[0].mxu0
        %1297 = vmatprep.mubr.bf16.mxu0 0
        %1298 = vmatmul.mubr.bf16.gmra.mrb[0].mxu0 %v1195
        %v1299 = vpop.f32.mrb[0].mxu0
        %v1300 = vadd.f32 0.0, %v1299
        %v1301 = vpop.f32.mrb[0].mxu0
        %v1302 = vpop.f32.mrb[0].mxu0
        %v1303 = vadd.f32 0.0, %v1302
        %v1304 = vpop.f32.mrb[0].mxu0
        %1305 = vmatprep.mubr.bf16.mxu0 0
        %1306 = vmatmul.mubr.bf16.gmra.mrb[0].mxu0 %v1196
        %v1307 = vpop.f32.mrb[0].mxu0
        %v1308 = vadd.f32 0.0, %v1307
        %v1309 = vpop.f32.mrb[0].mxu0
        %v1310 = vpop.f32.mrb[0].mxu0
        %v1311 = vadd.f32 0.0, %v1310
        %v1312 = vpop.f32.mrb[0].mxu0
        %1313 = vdwg.mxu0
        %v1314 = vld [vmem:[#allocation2] sm:$0xff]
        %v1315 = vld [vmem:[#allocation2 + $0x8] sm:$0xff]
        %v1316 = vld [vmem:[#allocation2 + $0x10] sm:$0xff]
        %v1317 = vld [vmem:[#allocation2 + $0x18] sm:$0xff]
        %v1318 = vld [vmem:[#allocation2 + $0x20] sm:$0xff]
        %v1319 = vld [vmem:[#allocation2 + $0x28] sm:$0xff]
        %v1320 = vld [vmem:[#allocation2 + $0x30] sm:$0xff]
        %v1321 = vld [vmem:[#allocation2 + $0x38] sm:$0xff]
        %v1322 = vadd.f32 %v1314, %v1284
        %v1323 = vadd.f32 %v1315, %v1287
        %v1324 = vadd.f32 %v1316, %v1292
        %v1325 = vadd.f32 %v1317, %v1295
        %v1326 = vadd.f32 %v1318, %v1300
        %v1327 = vadd.f32 %v1319, %v1303
        %v1328 = vadd.f32 %v1320, %v1308
        %v1329 = vadd.f32 %v1321, %v1311
        %1330 = vst [vmem:[#allocation2] sm:$0xff] %v1322
        %1331 = vst [vmem:[#allocation2 + $0x8] sm:$0xff] %v1323
        %1332 = vst [vmem:[#allocation2 + $0x10] sm:$0xff] %v1324
        %1333 = vst [vmem:[#allocation2 + $0x18] sm:$0xff] %v1325
        %1334 = vst [vmem:[#allocation2 + $0x20] sm:$0xff] %v1326
        %1335 = vst [vmem:[#allocation2 + $0x28] sm:$0xff] %v1327
        %1336 = vst [vmem:[#allocation2 + $0x30] sm:$0xff] %v1328
        %1337 = vst [vmem:[#allocation2 + $0x38] sm:$0xff] %v1329
        %v1338 = vld [vmem:[%s1151] sm:$0xf]
        %v1339 = vld [vmem:[%s1151 + $0x4] sm:$0x1]
        %v1340 = vld [vmem:[%s1151 + $0x8] sm:$0xf]
        %v1341 = vld [vmem:[%s1151 + $0xc] sm:$0x1]
        %v1342 = vld [vmem:[%s1151 + $0x10] sm:$0xf]
        %v1343 = vld [vmem:[%s1151 + $0x14] sm:$0x1]
        %v1344 = vld [vmem:[%s1151 + $0x18] sm:$0xf]
        %v1345 = vld [vmem:[%s1151 + $0x1c] sm:$0x1]
        %v1346 = vld [vmem:[%s1151 + $0x20] sm:$0xf]
        %v1347 = vld [vmem:[%s1151 + $0x24] sm:$0x1]
        %v1348 = vld [vmem:[%s1151 + $0x28] sm:$0xf]
        %v1349 = vld [vmem:[%s1151 + $0x2c] sm:$0x1]
        %v1350 = vld [vmem:[%s1151 + $0x30] sm:$0xf]
        %v1351 = vld [vmem:[%s1151 + $0x34] sm:$0x1]
        %v1352 = vld [vmem:[%s1151 + $0x38] sm:$0xf]
        %v1353 = vld [vmem:[%s1151 + $0x3c] sm:$0x1]
        %v1355 = vshrl.u32 %v1338, 16
        %v1357 = vrot.slane %v1355, 4
        %v1358 = vshll.u32 %v1338, 16
        %v1360 = vrot.slane %v1358, 5
        %v1361 = vor.u32 %v1357, %v1360
        %v1362 = vrot.slane %v1361, 4
        %v1364 = vshll.u32 %v1339, 16
        %v1366 = vrot.slane %v1364, 5
        %v1367 = vsel %vm631, %v1362, %v1366
        %v1369 = vshrl.u32 %v1340, 16
        %v1371 = vrot.slane %v1369, 4
        %v1372 = vshll.u32 %v1340, 16
        %v1374 = vrot.slane %v1372, 5
        %v1375 = vor.u32 %v1371, %v1374
        %v1376 = vrot.slane %v1375, 4
        %v1378 = vshll.u32 %v1341, 16
        %v1380 = vrot.slane %v1378, 5
        %v1381 = vsel %vm631, %v1376, %v1380
        %v1383 = vshrl.u32 %v1342, 16
        %v1385 = vrot.slane %v1383, 4
        %v1386 = vshll.u32 %v1342, 16
        %v1388 = vrot.slane %v1386, 5
        %v1389 = vor.u32 %v1385, %v1388
        %v1390 = vrot.slane %v1389, 4
        %v1392 = vshll.u32 %v1343, 16
        %v1394 = vrot.slane %v1392, 5
        %v1395 = vsel %vm631, %v1390, %v1394
        %v1397 = vshrl.u32 %v1344, 16
        %v1399 = vrot.slane %v1397, 4
        %v1400 = vshll.u32 %v1344, 16
        %v1402 = vrot.slane %v1400, 5
        %v1403 = vor.u32 %v1399, %v1402
        %v1404 = vrot.slane %v1403, 4
        %v1406 = vshll.u32 %v1345, 16
        %v1408 = vrot.slane %v1406, 5
        %v1409 = vsel %vm631, %v1404, %v1408
        %v1411 = vshrl.u32 %v1346, 16
        %v1413 = vrot.slane %v1411, 4
        %v1414 = vshll.u32 %v1346, 16
        %v1416 = vrot.slane %v1414, 5
        %v1417 = vor.u32 %v1413, %v1416
        %v1418 = vrot.slane %v1417, 4
        %v1420 = vshll.u32 %v1347, 16
        %v1422 = vrot.slane %v1420, 5
        %v1423 = vsel %vm631, %v1418, %v1422
        %v1425 = vshrl.u32 %v1348, 16
        %v1427 = vrot.slane %v1425, 4
        %v1428 = vshll.u32 %v1348, 16
        %v1430 = vrot.slane %v1428, 5
        %v1431 = vor.u32 %v1427, %v1430
        %v1432 = vrot.slane %v1431, 4
        %v1434 = vshll.u32 %v1349, 16
        %v1436 = vrot.slane %v1434, 5
        %v1437 = vsel %vm631, %v1432, %v1436
        %v1439 = vshrl.u32 %v1350, 16
        %v1441 = vrot.slane %v1439, 4
        %v1442 = vshll.u32 %v1350, 16
        %v1444 = vrot.slane %v1442, 5
        %v1445 = vor.u32 %v1441, %v1444
        %v1446 = vrot.slane %v1445, 4
        %v1448 = vshll.u32 %v1351, 16
        %v1450 = vrot.slane %v1448, 5
        %v1451 = vsel %vm631, %v1446, %v1450
        %v1453 = vshrl.u32 %v1352, 16
        %v1455 = vrot.slane %v1453, 4
        %v1456 = vshll.u32 %v1352, 16
        %v1458 = vrot.slane %v1456, 5
        %v1459 = vor.u32 %v1455, %v1458
        %v1460 = vrot.slane %v1459, 4
        %v1462 = vshll.u32 %v1353, 16
        %v1464 = vrot.slane %v1462, 5
        %v1465 = vsel %vm631, %v1460, %v1464
        %s1466 = scalar_lea.vmem [#allocation9], 256
        %v1467 = vld [vmem:[%s1466] sm:$0xf]
        %v1468 = vld [vmem:[%s1466 + $0x4] sm:$0xf]
        %v1469 = vld [vmem:[%s1466 + $0x8] sm:$0xf]
        %v1470 = vld [vmem:[%s1466 + $0xc] sm:$0xf]
        %v1471 = vld [vmem:[%s1466 + $0x10] sm:$0xf]
        %v1472 = vld [vmem:[%s1466 + $0x14] sm:$0xf]
        %v1473 = vld [vmem:[%s1466 + $0x18] sm:$0xf]
        %v1474 = vld [vmem:[%s1466 + $0x1c] sm:$0xf]
        %v1475 = vld [vmem:[%s1466 + $0x20] sm:$0xf]
        %v1476 = vld [vmem:[%s1466 + $0x24] sm:$0xf]
        %v1477 = vld [vmem:[%s1466 + $0x28] sm:$0xf]
        %v1478 = vld [vmem:[%s1466 + $0x2c] sm:$0xf]
        %v1479 = vld [vmem:[%s1466 + $0x30] sm:$0xf]
        %v1480 = vld [vmem:[%s1466 + $0x34] sm:$0xf]
        %v1481 = vld [vmem:[%s1466 + $0x38] sm:$0xf]
        %v1482 = vld [vmem:[%s1466 + $0x3c] sm:$0xf]
        %v1483 = vunpack.c.l.b16 %v1367
        %v1484 = vunpack.c.l.b16 %v1381
        %v1485 = vunpack.c.l.b16 %v1395
        %v1486 = vunpack.c.l.b16 %v1409
        %v1487 = vunpack.c.l.b16 %v1423
        %v1488 = vunpack.c.l.b16 %v1437
        %v1489 = vunpack.c.l.b16 %v1451
        %v1490 = vunpack.c.l.b16 %v1465
        %v1491 = vpack.c.b16 %v1484, %v1483
        %v1492 = vpack.c.b16 %v1486, %v1485
        %v1493 = vpack.c.b16 %v1488, %v1487
        %v1494 = vpack.c.b16 %v1490, %v1489
        %v1515 = vunpack.c.l.b16 %v1467
        %v1516 = vunpack.c.l.b16 %v1468
        %v1517 = vunpack.c.l.b16 %v1469
        %v1518 = vunpack.c.l.b16 %v1470
        %v1519 = vunpack.c.l.b16 %v1471
        %v1520 = vunpack.c.l.b16 %v1472
        %v1521 = vunpack.c.l.b16 %v1473
        %v1522 = vunpack.c.l.b16 %v1474
        %v1523 = vunpack.c.l.b16 %v1475
        %v1524 = vunpack.c.l.b16 %v1476
        %v1525 = vunpack.c.l.b16 %v1477
        %v1526 = vunpack.c.l.b16 %v1478
        %v1527 = vunpack.c.l.b16 %v1479
        %v1528 = vunpack.c.l.b16 %v1480
        %v1529 = vunpack.c.l.b16 %v1481
        %v1530 = vunpack.c.l.b16 %v1482
        %v1531 = vpack.c.b16 %v1516, %v1515
        %v1532 = vpack.c.b16 %v1518, %v1517
        %v1533 = vpack.c.b16 %v1520, %v1519
        %v1534 = vpack.c.b16 %v1522, %v1521
        %v1535 = vpack.c.b16 %v1524, %v1523
        %v1536 = vpack.c.b16 %v1526, %v1525
        %v1537 = vpack.c.b16 %v1528, %v1527
        %v1538 = vpack.c.b16 %v1530, %v1529
        %1547 = vmatprep.subr.bf16.mxu0 0
        %1548 = vmatpush1.bf16.msra.mxu0 %v1531
        %1549 = vmatprep.subr.bf16.mxu0 0
        %1550 = vmatpush1.bf16.msra.mxu0 %v1532
        %1551 = vmatprep.subr.bf16.mxu0 0
        %1552 = vmatpush1.bf16.msra.mxu0 %v1533
        %1553 = vmatprep.subr.bf16.mxu0 0
        %1554 = vmatpush1.bf16.msra.mxu0 %v1534
        %1555 = vmatprep.subr.bf16.mxu0 0
        %1556 = vmatpush1.bf16.msra.mxu0 %v1535
        %1557 = vmatprep.subr.bf16.mxu0 0
        %1558 = vmatpush1.bf16.msra.mxu0 %v1536
        %1559 = vmatprep.subr.bf16.mxu0 0
        %1560 = vmatpush1.bf16.msra.mxu0 %v1537
        %1561 = vmatprep.subr.bf16.mxu0 0
        %1562 = vmatpush1.bf16.msra.mxu0 %v1538
        %1563 = vmatprep.subr.bf16.mxu0 0
        %1564 = vmatpush1.bf16.msra.mxu0 0
        %1565 = vmatprep.subr.bf16.mxu0 0
        %1566 = vmatpush1.bf16.msra.mxu0 0
        %1567 = vmatprep.subr.bf16.mxu0 0
        %1568 = vmatpush1.bf16.msra.mxu0 0
        %1569 = vmatprep.subr.bf16.mxu0 0
        %1570 = vmatpush1.bf16.msra.mxu0 0
        %1571 = vmatprep.subr.bf16.mxu0 0
        %1572 = vmatpush1.bf16.msra.mxu0 0
        %1573 = vmatprep.subr.bf16.mxu0 0
        %1574 = vmatpush1.bf16.msra.mxu0 0
        %1575 = vmatprep.subr.bf16.mxu0 0
        %1576 = vmatpush1.bf16.msra.mxu0 0
        %1577 = vmatprep.subr.bf16.mxu0 0
        %1578 = vmatpush1.bf16.msra.mxu0 0
        %1579 = vmatprep.mubr.bf16.mxu0 0
        %1580 = vmatmul.mubr.bf16.gmra.mrb[0].mxu0 %v1491
        %v1581 = vpop.f32.mrb[0].mxu0
        %v1582 = vadd.f32 0.0, %v1581
        %v1583 = vpop.f32.mrb[0].mxu0
        %v1584 = vpop.f32.mrb[0].mxu0
        %v1585 = vadd.f32 0.0, %v1584
        %v1586 = vpop.f32.mrb[0].mxu0
        %1587 = vmatprep.mubr.bf16.mxu0 0
        %1588 = vmatmul.mubr.bf16.gmra.mrb[0].mxu0 %v1492
        %v1589 = vpop.f32.mrb[0].mxu0
        %v1590 = vadd.f32 0.0, %v1589
        %v1591 = vpop.f32.mrb[0].mxu0
        %v1592 = vpop.f32.mrb[0].mxu0
        %v1593 = vadd.f32 0.0, %v1592
        %v1594 = vpop.f32.mrb[0].mxu0
        %1595 = vmatprep.mubr.bf16.mxu0 0
        %1596 = vmatmul.mubr.bf16.gmra.mrb[0].mxu0 %v1493
        %v1597 = vpop.f32.mrb[0].mxu0
        %v1598 = vadd.f32 0.0, %v1597
        %v1599 = vpop.f32.mrb[0].mxu0
        %v1600 = vpop.f32.mrb[0].mxu0
        %v1601 = vadd.f32 0.0, %v1600
        %v1602 = vpop.f32.mrb[0].mxu0
        %1603 = vmatprep.mubr.bf16.mxu0 0
        %1604 = vmatmul.mubr.bf16.gmra.mrb[0].mxu0 %v1494
        %v1605 = vpop.f32.mrb[0].mxu0
        %v1606 = vadd.f32 0.0, %v1605
        %v1607 = vpop.f32.mrb[0].mxu0
        %v1608 = vpop.f32.mrb[0].mxu0
        %v1609 = vadd.f32 0.0, %v1608
        %v1610 = vpop.f32.mrb[0].mxu0
        %1611 = vdwg.mxu0
        %v1612 = vld [vmem:[#allocation2] sm:$0xff]
        %v1613 = vld [vmem:[#allocation2 + $0x8] sm:$0xff]
        %v1614 = vld [vmem:[#allocation2 + $0x10] sm:$0xff]
        %v1615 = vld [vmem:[#allocation2 + $0x18] sm:$0xff]
        %v1616 = vld [vmem:[#allocation2 + $0x20] sm:$0xff]
        %v1617 = vld [vmem:[#allocation2 + $0x28] sm:$0xff]
        %v1618 = vld [vmem:[#allocation2 + $0x30] sm:$0xff]
        %v1619 = vld [vmem:[#allocation2 + $0x38] sm:$0xff]
        %v1620 = vadd.f32 %v1612, %v1582
        %v1621 = vadd.f32 %v1613, %v1585
        %v1622 = vadd.f32 %v1614, %v1590
        %v1623 = vadd.f32 %v1615, %v1593
        %v1624 = vadd.f32 %v1616, %v1598
        %v1625 = vadd.f32 %v1617, %v1601
        %v1626 = vadd.f32 %v1618, %v1606
        %v1627 = vadd.f32 %v1619, %v1609
        %1628 = vst [vmem:[#allocation2] sm:$0xff] %v1620
        %1629 = vst [vmem:[#allocation2 + $0x8] sm:$0xff] %v1621
        %1630 = vst [vmem:[#allocation2 + $0x10] sm:$0xff] %v1622
        %1631 = vst [vmem:[#allocation2 + $0x18] sm:$0xff] %v1623
        %1632 = vst [vmem:[#allocation2 + $0x20] sm:$0xff] %v1624
        %1633 = vst [vmem:[#allocation2 + $0x28] sm:$0xff] %v1625
        %1634 = vst [vmem:[#allocation2 + $0x30] sm:$0xff] %v1626
        %1635 = vst [vmem:[#allocation2 + $0x38] sm:$0xff] %v1627
        %v1636 = vld [vmem:[%s1151] sm:$0xe]
        %v1637 = vld [vmem:[%s1151 + $0x4] sm:$0x1]
        %v1638 = vld [vmem:[%s1151 + $0x8] sm:$0xe]
        %v1639 = vld [vmem:[%s1151 + $0xc] sm:$0x1]
        %v1640 = vld [vmem:[%s1151 + $0x10] sm:$0xe]
        %v1641 = vld [vmem:[%s1151 + $0x14] sm:$0x1]
        %v1642 = vld [vmem:[%s1151 + $0x18] sm:$0xe]
        %v1643 = vld [vmem:[%s1151 + $0x1c] sm:$0x1]
        %v1644 = vld [vmem:[%s1151 + $0x20] sm:$0xe]
        %v1645 = vld [vmem:[%s1151 + $0x24] sm:$0x1]
        %v1646 = vld [vmem:[%s1151 + $0x28] sm:$0xe]
        %v1647 = vld [vmem:[%s1151 + $0x2c] sm:$0x1]
        %v1648 = vld [vmem:[%s1151 + $0x30] sm:$0xe]
        %v1649 = vld [vmem:[%s1151 + $0x34] sm:$0x1]
        %v1650 = vld [vmem:[%s1151 + $0x38] sm:$0xe]
        %v1651 = vld [vmem:[%s1151 + $0x3c] sm:$0x1]
        %v1668 = vrot.slane %v1636, 5
        %v1669 = vrot.slane %v1668, 4
        %v1670 = vrot.slane %v1637, 5
        %v1671 = vsel %vm948, %v1669, %v1670
        %v1672 = vrot.slane %v1638, 5
        %v1673 = vrot.slane %v1672, 4
        %v1674 = vrot.slane %v1639, 5
        %v1675 = vsel %vm948, %v1673, %v1674
        %v1676 = vrot.slane %v1640, 5
        %v1677 = vrot.slane %v1676, 4
        %v1678 = vrot.slane %v1641, 5
        %v1679 = vsel %vm948, %v1677, %v1678
        %v1680 = vrot.slane %v1642, 5
        %v1681 = vrot.slane %v1680, 4
        %v1682 = vrot.slane %v1643, 5
        %v1683 = vsel %vm948, %v1681, %v1682
        %v1684 = vrot.slane %v1644, 5
        %v1685 = vrot.slane %v1684, 4
        %v1686 = vrot.slane %v1645, 5
        %v1687 = vsel %vm948, %v1685, %v1686
        %v1688 = vrot.slane %v1646, 5
        %v1689 = vrot.slane %v1688, 4
        %v1690 = vrot.slane %v1647, 5
        %v1691 = vsel %vm948, %v1689, %v1690
        %v1692 = vrot.slane %v1648, 5
        %v1693 = vrot.slane %v1692, 4
        %v1694 = vrot.slane %v1649, 5
        %v1695 = vsel %vm948, %v1693, %v1694
        %v1696 = vrot.slane %v1650, 5
        %v1697 = vrot.slane %v1696, 4
        %v1698 = vrot.slane %v1651, 5
        %v1699 = vsel %vm948, %v1697, %v1698
        %s1700 = scalar_lea.vmem [#allocation9], 320
        %v1701 = vld [vmem:[%s1700] sm:$0xf]
        %v1702 = vld [vmem:[%s1700 + $0x4] sm:$0xf]
        %v1703 = vld [vmem:[%s1700 + $0x8] sm:$0xf]
        %v1704 = vld [vmem:[%s1700 + $0xc] sm:$0xf]
        %v1705 = vld [vmem:[%s1700 + $0x10] sm:$0xf]
        %v1706 = vld [vmem:[%s1700 + $0x14] sm:$0xf]
        %v1707 = vld [vmem:[%s1700 + $0x18] sm:$0xf]
        %v1708 = vld [vmem:[%s1700 + $0x1c] sm:$0xf]
        %v1709 = vld [vmem:[%s1700 + $0x20] sm:$0xf]
        %v1710 = vld [vmem:[%s1700 + $0x24] sm:$0xf]
        %v1711 = vld [vmem:[%s1700 + $0x28] sm:$0xf]
        %v1712 = vld [vmem:[%s1700 + $0x2c] sm:$0xf]
        %v1713 = vld [vmem:[%s1700 + $0x30] sm:$0xf]
        %v1714 = vld [vmem:[%s1700 + $0x34] sm:$0xf]
        %v1715 = vld [vmem:[%s1700 + $0x38] sm:$0xf]
        %v1716 = vld [vmem:[%s1700 + $0x3c] sm:$0xf]
        %v1717 = vunpack.c.l.b16 %v1671
        %v1718 = vunpack.c.l.b16 %v1675
        %v1719 = vunpack.c.l.b16 %v1679
        %v1720 = vunpack.c.l.b16 %v1683
        %v1721 = vunpack.c.l.b16 %v1687
        %v1722 = vunpack.c.l.b16 %v1691
        %v1723 = vunpack.c.l.b16 %v1695
        %v1724 = vunpack.c.l.b16 %v1699
        %v1725 = vpack.c.b16 %v1718, %v1717
        %v1726 = vpack.c.b16 %v1720, %v1719
        %v1727 = vpack.c.b16 %v1722, %v1721
        %v1728 = vpack.c.b16 %v1724, %v1723
        %v1749 = vunpack.c.l.b16 %v1701
        %v1750 = vunpack.c.l.b16 %v1702
        %v1751 = vunpack.c.l.b16 %v1703
        %v1752 = vunpack.c.l.b16 %v1704
        %v1753 = vunpack.c.l.b16 %v1705
        %v1754 = vunpack.c.l.b16 %v1706
        %v1755 = vunpack.c.l.b16 %v1707
        %v1756 = vunpack.c.l.b16 %v1708
        %v1757 = vunpack.c.l.b16 %v1709
        %v1758 = vunpack.c.l.b16 %v1710
        %v1759 = vunpack.c.l.b16 %v1711
        %v1760 = vunpack.c.l.b16 %v1712
        %v1761 = vunpack.c.l.b16 %v1713
        %v1762 = vunpack.c.l.b16 %v1714
        %v1763 = vunpack.c.l.b16 %v1715
        %v1764 = vunpack.c.l.b16 %v1716
        %v1765 = vpack.c.b16 %v1750, %v1749
        %v1766 = vpack.c.b16 %v1752, %v1751
        %v1767 = vpack.c.b16 %v1754, %v1753
        %v1768 = vpack.c.b16 %v1756, %v1755
        %v1769 = vpack.c.b16 %v1758, %v1757
        %v1770 = vpack.c.b16 %v1760, %v1759
        %v1771 = vpack.c.b16 %v1762, %v1761
        %v1772 = vpack.c.b16 %v1764, %v1763
        %1781 = vmatprep.subr.bf16.mxu0 0
        %1782 = vmatpush1.bf16.msra.mxu0 %v1765
        %1783 = vmatprep.subr.bf16.mxu0 0
        %1784 = vmatpush1.bf16.msra.mxu0 %v1766
        %1785 = vmatprep.subr.bf16.mxu0 0
        %1786 = vmatpush1.bf16.msra.mxu0 %v1767
        %1787 = vmatprep.subr.bf16.mxu0 0
        %1788 = vmatpush1.bf16.msra.mxu0 %v1768
        %1789 = vmatprep.subr.bf16.mxu0 0
        %1790 = vmatpush1.bf16.msra.mxu0 %v1769
        %1791 = vmatprep.subr.bf16.mxu0 0
        %1792 = vmatpush1.bf16.msra.mxu0 %v1770
        %1793 = vmatprep.subr.bf16.mxu0 0
        %1794 = vmatpush1.bf16.msra.mxu0 %v1771
        %1795 = vmatprep.subr.bf16.mxu0 0
        %1796 = vmatpush1.bf16.msra.mxu0 %v1772
        %1797 = vmatprep.subr.bf16.mxu0 0
        %1798 = vmatpush1.bf16.msra.mxu0 0
        %1799 = vmatprep.subr.bf16.mxu0 0
        %1800 = vmatpush1.bf16.msra.mxu0 0
        %1801 = vmatprep.subr.bf16.mxu0 0
        %1802 = vmatpush1.bf16.msra.mxu0 0
        %1803 = vmatprep.subr.bf16.mxu0 0
        %1804 = vmatpush1.bf16.msra.mxu0 0
        %1805 = vmatprep.subr.bf16.mxu0 0
        %1806 = vmatpush1.bf16.msra.mxu0 0
        %1807 = vmatprep.subr.bf16.mxu0 0
        %1808 = vmatpush1.bf16.msra.mxu0 0
        %1809 = vmatprep.subr.bf16.mxu0 0
        %1810 = vmatpush1.bf16.msra.mxu0 0
        %1811 = vmatprep.subr.bf16.mxu0 0
        %1812 = vmatpush1.bf16.msra.mxu0 0
        %1813 = vmatprep.mubr.bf16.mxu0 0
        %1814 = vmatmul.mubr.bf16.gmra.mrb[0].mxu0 %v1725
        %v1815 = vpop.f32.mrb[0].mxu0
        %v1816 = vadd.f32 0.0, %v1815
        %v1817 = vpop.f32.mrb[0].mxu0
        %v1818 = vpop.f32.mrb[0].mxu0
        %v1819 = vadd.f32 0.0, %v1818
        %v1820 = vpop.f32.mrb[0].mxu0
        %1821 = vmatprep.mubr.bf16.mxu0 0
        %1822 = vmatmul.mubr.bf16.gmra.mrb[0].mxu0 %v1726
        %v1823 = vpop.f32.mrb[0].mxu0
        %v1824 = vadd.f32 0.0, %v1823
        %v1825 = vpop.f32.mrb[0].mxu0
        %v1826 = vpop.f32.mrb[0].mxu0
        %v1827 = vadd.f32 0.0, %v1826
        %v1828 = vpop.f32.mrb[0].mxu0
        %1829 = vmatprep.mubr.bf16.mxu0 0
        %1830 = vmatmul.mubr.bf16.gmra.mrb[0].mxu0 %v1727
        %v1831 = vpop.f32.mrb[0].mxu0
        %v1832 = vadd.f32 0.0, %v1831
        %v1833 = vpop.f32.mrb[0].mxu0
        %v1834 = vpop.f32.mrb[0].mxu0
        %v1835 = vadd.f32 0.0, %v1834
        %v1836 = vpop.f32.mrb[0].mxu0
        %1837 = vmatprep.mubr.bf16.mxu0 0
        %1838 = vmatmul.mubr.bf16.gmra.mrb[0].mxu0 %v1728
        %v1839 = vpop.f32.mrb[0].mxu0
        %v1840 = vadd.f32 0.0, %v1839
        %v1841 = vpop.f32.mrb[0].mxu0
        %v1842 = vpop.f32.mrb[0].mxu0
        %v1843 = vadd.f32 0.0, %v1842
        %v1844 = vpop.f32.mrb[0].mxu0
        %1845 = vdwg.mxu0
        %v1846 = vld [vmem:[#allocation2] sm:$0xff]
        %v1847 = vld [vmem:[#allocation2 + $0x8] sm:$0xff]
        %v1848 = vld [vmem:[#allocation2 + $0x10] sm:$0xff]
        %v1849 = vld [vmem:[#allocation2 + $0x18] sm:$0xff]
        %v1850 = vld [vmem:[#allocation2 + $0x20] sm:$0xff]
        %v1851 = vld [vmem:[#allocation2 + $0x28] sm:$0xff]
        %v1852 = vld [vmem:[#allocation2 + $0x30] sm:$0xff]
        %v1853 = vld [vmem:[#allocation2 + $0x38] sm:$0xff]
        %v1854 = vadd.f32 %v1846, %v1816
        %v1855 = vadd.f32 %v1847, %v1819
        %v1856 = vadd.f32 %v1848, %v1824
        %v1857 = vadd.f32 %v1849, %v1827
        %v1858 = vadd.f32 %v1850, %v1832
        %v1859 = vadd.f32 %v1851, %v1835
        %v1860 = vadd.f32 %v1852, %v1840
        %v1861 = vadd.f32 %v1853, %v1843
        %1862 = vst [vmem:[#allocation2] sm:$0xff] %v1854
        %1863 = vst [vmem:[#allocation2 + $0x8] sm:$0xff] %v1855
        %1864 = vst [vmem:[#allocation2 + $0x10] sm:$0xff] %v1856
        %1865 = vst [vmem:[#allocation2 + $0x18] sm:$0xff] %v1857
        %1866 = vst [vmem:[#allocation2 + $0x20] sm:$0xff] %v1858
        %1867 = vst [vmem:[#allocation2 + $0x28] sm:$0xff] %v1859
        %1868 = vst [vmem:[#allocation2 + $0x30] sm:$0xff] %v1860
        %1869 = vst [vmem:[#allocation2 + $0x38] sm:$0xff] %v1861
        %s1870 = scalar_lea.vmem %s372, 16 [#allocation4]
        %v1871 = vld [vmem:[%s1870] sm:$0xf]
        %v1872 = vld [vmem:[%s1870 + $0x8] sm:$0xf]
        %v1873 = vld [vmem:[%s1870 + $0x10] sm:$0xf]
        %v1874 = vld [vmem:[%s1870 + $0x18] sm:$0xf]
        %v1875 = vld [vmem:[%s1870 + $0x20] sm:$0xf]
        %v1876 = vld [vmem:[%s1870 + $0x28] sm:$0xf]
        %v1877 = vld [vmem:[%s1870 + $0x30] sm:$0xf]
        %v1878 = vld [vmem:[%s1870 + $0x38] sm:$0xf]
        %s1879 = scalar_lea.vmem [#allocation9], 384
        %v1880 = vld [vmem:[%s1879] sm:$0xf]
        %v1881 = vld [vmem:[%s1879 + $0x4] sm:$0xf]
        %v1882 = vld [vmem:[%s1879 + $0x8] sm:$0xf]
        %v1883 = vld [vmem:[%s1879 + $0xc] sm:$0xf]
        %v1884 = vld [vmem:[%s1879 + $0x10] sm:$0xf]
        %v1885 = vld [vmem:[%s1879 + $0x14] sm:$0xf]
        %v1886 = vld [vmem:[%s1879 + $0x18] sm:$0xf]
        %v1887 = vld [vmem:[%s1879 + $0x1c] sm:$0xf]
        %v1888 = vld [vmem:[%s1879 + $0x20] sm:$0xf]
        %v1889 = vld [vmem:[%s1879 + $0x24] sm:$0xf]
        %v1890 = vld [vmem:[%s1879 + $0x28] sm:$0xf]
        %v1891 = vld [vmem:[%s1879 + $0x2c] sm:$0xf]
        %v1892 = vld [vmem:[%s1879 + $0x30] sm:$0xf]
        %v1893 = vld [vmem:[%s1879 + $0x34] sm:$0xf]
        %v1894 = vld [vmem:[%s1879 + $0x38] sm:$0xf]
        %v1895 = vld [vmem:[%s1879 + $0x3c] sm:$0xf]
        %v1904 = vunpack.c.l.b16 %v1871
        %v1905 = vunpack.c.l.b16 %v1872
        %v1906 = vunpack.c.l.b16 %v1873
        %v1907 = vunpack.c.l.b16 %v1874
        %v1908 = vunpack.c.l.b16 %v1875
        %v1909 = vunpack.c.l.b16 %v1876
        %v1910 = vunpack.c.l.b16 %v1877
        %v1911 = vunpack.c.l.b16 %v1878
        %v1912 = vpack.c.b16 %v1905, %v1904
        %v1913 = vpack.c.b16 %v1907, %v1906
        %v1914 = vpack.c.b16 %v1909, %v1908
        %v1915 = vpack.c.b16 %v1911, %v1910
        %v1936 = vunpack.c.l.b16 %v1880
        %v1937 = vunpack.c.l.b16 %v1881
        %v1938 = vunpack.c.l.b16 %v1882
        %v1939 = vunpack.c.l.b16 %v1883
        %v1940 = vunpack.c.l.b16 %v1884
        %v1941 = vunpack.c.l.b16 %v1885
        %v1942 = vunpack.c.l.b16 %v1886
        %v1943 = vunpack.c.l.b16 %v1887
        %v1944 = vunpack.c.l.b16 %v1888
        %v1945 = vunpack.c.l.b16 %v1889
        %v1946 = vunpack.c.l.b16 %v1890
        %v1947 = vunpack.c.l.b16 %v1891
        %v1948 = vunpack.c.l.b16 %v1892
        %v1949 = vunpack.c.l.b16 %v1893
        %v1950 = vunpack.c.l.b16 %v1894
        %v1951 = vunpack.c.l.b16 %v1895
        %v1952 = vpack.c.b16 %v1937, %v1936
        %v1953 = vpack.c.b16 %v1939, %v1938
        %v1954 = vpack.c.b16 %v1941, %v1940
        %v1955 = vpack.c.b16 %v1943, %v1942
        %v1956 = vpack.c.b16 %v1945, %v1944
        %v1957 = vpack.c.b16 %v1947, %v1946
        %v1958 = vpack.c.b16 %v1949, %v1948
        %v1959 = vpack.c.b16 %v1951, %v1950
        %1968 = vmatprep.subr.bf16.mxu0 0
        %1969 = vmatpush1.bf16.msra.mxu0 %v1952
        %1970 = vmatprep.subr.bf16.mxu0 0
        %1971 = vmatpush1.bf16.msra.mxu0 %v1953
        %1972 = vmatprep.subr.bf16.mxu0 0
        %1973 = vmatpush1.bf16.msra.mxu0 %v1954
        %1974 = vmatprep.subr.bf16.mxu0 0
        %1975 = vmatpush1.bf16.msra.mxu0 %v1955
        %1976 = vmatprep.subr.bf16.mxu0 0
        %1977 = vmatpush1.bf16.msra.mxu0 %v1956
        %1978 = vmatprep.subr.bf16.mxu0 0
        %1979 = vmatpush1.bf16.msra.mxu0 %v1957
        %1980 = vmatprep.subr.bf16.mxu0 0
        %1981 = vmatpush1.bf16.msra.mxu0 %v1958
        %1982 = vmatprep.subr.bf16.mxu0 0
        %1983 = vmatpush1.bf16.msra.mxu0 %v1959
        %1984 = vmatprep.subr.bf16.mxu0 0
        %1985 = vmatpush1.bf16.msra.mxu0 0
        %1986 = vmatprep.subr.bf16.mxu0 0
        %1987 = vmatpush1.bf16.msra.mxu0 0
        %1988 = vmatprep.subr.bf16.mxu0 0
        %1989 = vmatpush1.bf16.msra.mxu0 0
        %1990 = vmatprep.subr.bf16.mxu0 0
        %1991 = vmatpush1.bf16.msra.mxu0 0
        %1992 = vmatprep.subr.bf16.mxu0 0
        %1993 = vmatpush1.bf16.msra.mxu0 0
        %1994 = vmatprep.subr.bf16.mxu0 0
        %1995 = vmatpush1.bf16.msra.mxu0 0
        %1996 = vmatprep.subr.bf16.mxu0 0
        %1997 = vmatpush1.bf16.msra.mxu0 0
        %1998 = vmatprep.subr.bf16.mxu0 0
        %1999 = vmatpush1.bf16.msra.mxu0 0
        %2000 = vmatprep.mubr.bf16.mxu0 0
        %2001 = vmatmul.mubr.bf16.gmra.mrb[0].mxu0 %v1912
        %v2002 = vpop.f32.mrb[0].mxu0
        %v2003 = vadd.f32 0.0, %v2002
        %v2004 = vpop.f32.mrb[0].mxu0
        %v2005 = vpop.f32.mrb[0].mxu0
        %v2006 = vadd.f32 0.0, %v2005
        %v2007 = vpop.f32.mrb[0].mxu0
        %2008 = vmatprep.mubr.bf16.mxu0 0
        %2009 = vmatmul.mubr.bf16.gmra.mrb[0].mxu0 %v1913
        %v2010 = vpop.f32.mrb[0].mxu0
        %v2011 = vadd.f32 0.0, %v2010
        %v2012 = vpop.f32.mrb[0].mxu0
        %v2013 = vpop.f32.mrb[0].mxu0
        %v2014 = vadd.f32 0.0, %v2013
        %v2015 = vpop.f32.mrb[0].mxu0
        %2016 = vmatprep.mubr.bf16.mxu0 0
        %2017 = vmatmul.mubr.bf16.gmra.mrb[0].mxu0 %v1914
        %v2018 = vpop.f32.mrb[0].mxu0
        %v2019 = vadd.f32 0.0, %v2018
        %v2020 = vpop.f32.mrb[0].mxu0
        %v2021 = vpop.f32.mrb[0].mxu0
        %v2022 = vadd.f32 0.0, %v2021
        %v2023 = vpop.f32.mrb[0].mxu0
        %2024 = vmatprep.mubr.bf16.mxu0 0
        %2025 = vmatmul.mubr.bf16.gmra.mrb[0].mxu0 %v1915
        %v2026 = vpop.f32.mrb[0].mxu0
        %v2027 = vadd.f32 0.0, %v2026
        %v2028 = vpop.f32.mrb[0].mxu0
        %v2029 = vpop.f32.mrb[0].mxu0
        %v2030 = vadd.f32 0.0, %v2029
        %v2031 = vpop.f32.mrb[0].mxu0
        %2032 = vdwg.mxu0
        %v2033 = vld [vmem:[#allocation2] sm:$0xff]
        %v2034 = vld [vmem:[#allocation2 + $0x8] sm:$0xff]
        %v2035 = vld [vmem:[#allocation2 + $0x10] sm:$0xff]
        %v2036 = vld [vmem:[#allocation2 + $0x18] sm:$0xff]
        %v2037 = vld [vmem:[#allocation2 + $0x20] sm:$0xff]
        %v2038 = vld [vmem:[#allocation2 + $0x28] sm:$0xff]
        %v2039 = vld [vmem:[#allocation2 + $0x30] sm:$0xff]
        %v2040 = vld [vmem:[#allocation2 + $0x38] sm:$0xff]
        %v2041 = vadd.f32 %v2033, %v2003
        %v2042 = vadd.f32 %v2034, %v2006
        %v2043 = vadd.f32 %v2035, %v2011
        %v2044 = vadd.f32 %v2036, %v2014
        %v2045 = vadd.f32 %v2037, %v2019
        %v2046 = vadd.f32 %v2038, %v2022
        %v2047 = vadd.f32 %v2039, %v2027
        %v2048 = vadd.f32 %v2040, %v2030
        %2049 = vst [vmem:[#allocation2] sm:$0xff] %v2041
        %2050 = vst [vmem:[#allocation2 + $0x8] sm:$0xff] %v2042
        %2051 = vst [vmem:[#allocation2 + $0x10] sm:$0xff] %v2043
        %2052 = vst [vmem:[#allocation2 + $0x18] sm:$0xff] %v2044
        %2053 = vst [vmem:[#allocation2 + $0x20] sm:$0xff] %v2045
        %2054 = vst [vmem:[#allocation2 + $0x28] sm:$0xff] %v2046
        %2055 = vst [vmem:[#allocation2 + $0x30] sm:$0xff] %v2047
        %2056 = vst [vmem:[#allocation2 + $0x38] sm:$0xff] %v2048
        %v2057 = vld [vmem:[%s1870] sm:$0xf]
        %v2058 = vld [vmem:[%s1870 + $0x4] sm:$0x1]
        %v2059 = vld [vmem:[%s1870 + $0x8] sm:$0xf]
        %v2060 = vld [vmem:[%s1870 + $0xc] sm:$0x1]
        %v2061 = vld [vmem:[%s1870 + $0x10] sm:$0xf]
        %v2062 = vld [vmem:[%s1870 + $0x14] sm:$0x1]
        %v2063 = vld [vmem:[%s1870 + $0x18] sm:$0xf]
        %v2064 = vld [vmem:[%s1870 + $0x1c] sm:$0x1]
        %v2065 = vld [vmem:[%s1870 + $0x20] sm:$0xf]
        %v2066 = vld [vmem:[%s1870 + $0x24] sm:$0x1]
        %v2067 = vld [vmem:[%s1870 + $0x28] sm:$0xf]
        %v2068 = vld [vmem:[%s1870 + $0x2c] sm:$0x1]
        %v2069 = vld [vmem:[%s1870 + $0x30] sm:$0xf]
        %v2070 = vld [vmem:[%s1870 + $0x34] sm:$0x1]
        %v2071 = vld [vmem:[%s1870 + $0x38] sm:$0xf]
        %v2072 = vld [vmem:[%s1870 + $0x3c] sm:$0x1]
        %v2074 = vshrl.u32 %v2057, 16
        %v2076 = vrot.slane %v2074, 4
        %v2077 = vshll.u32 %v2057, 16
        %v2079 = vrot.slane %v2077, 5
        %v2080 = vor.u32 %v2076, %v2079
        %v2081 = vrot.slane %v2080, 4
        %v2083 = vshll.u32 %v2058, 16
        %v2085 = vrot.slane %v2083, 5
        %v2086 = vsel %vm631, %v2081, %v2085
        %v2088 = vshrl.u32 %v2059, 16
        %v2090 = vrot.slane %v2088, 4
        %v2091 = vshll.u32 %v2059, 16
        %v2093 = vrot.slane %v2091, 5
        %v2094 = vor.u32 %v2090, %v2093
        %v2095 = vrot.slane %v2094, 4
        %v2097 = vshll.u32 %v2060, 16
        %v2099 = vrot.slane %v2097, 5
        %v2100 = vsel %vm631, %v2095, %v2099
        %v2102 = vshrl.u32 %v2061, 16
        %v2104 = vrot.slane %v2102, 4
        %v2105 = vshll.u32 %v2061, 16
        %v2107 = vrot.slane %v2105, 5
        %v2108 = vor.u32 %v2104, %v2107
        %v2109 = vrot.slane %v2108, 4
        %v2111 = vshll.u32 %v2062, 16
        %v2113 = vrot.slane %v2111, 5
        %v2114 = vsel %vm631, %v2109, %v2113
        %v2116 = vshrl.u32 %v2063, 16
        %v2118 = vrot.slane %v2116, 4
        %v2119 = vshll.u32 %v2063, 16
        %v2121 = vrot.slane %v2119, 5
        %v2122 = vor.u32 %v2118, %v2121
        %v2123 = vrot.slane %v2122, 4
        %v2125 = vshll.u32 %v2064, 16
        %v2127 = vrot.slane %v2125, 5
        %v2128 = vsel %vm631, %v2123, %v2127
        %v2130 = vshrl.u32 %v2065, 16
        %v2132 = vrot.slane %v2130, 4
        %v2133 = vshll.u32 %v2065, 16
        %v2135 = vrot.slane %v2133, 5
        %v2136 = vor.u32 %v2132, %v2135
        %v2137 = vrot.slane %v2136, 4
        %v2139 = vshll.u32 %v2066, 16
        %v2141 = vrot.slane %v2139, 5
        %v2142 = vsel %vm631, %v2137, %v2141
        %v2144 = vshrl.u32 %v2067, 16
        %v2146 = vrot.slane %v2144, 4
        %v2147 = vshll.u32 %v2067, 16
        %v2149 = vrot.slane %v2147, 5
        %v2150 = vor.u32 %v2146, %v2149
        %v2151 = vrot.slane %v2150, 4
        %v2153 = vshll.u32 %v2068, 16
        %v2155 = vrot.slane %v2153, 5
        %v2156 = vsel %vm631, %v2151, %v2155
        %v2158 = vshrl.u32 %v2069, 16
        %v2160 = vrot.slane %v2158, 4
        %v2161 = vshll.u32 %v2069, 16
        %v2163 = vrot.slane %v2161, 5
        %v2164 = vor.u32 %v2160, %v2163
        %v2165 = vrot.slane %v2164, 4
        %v2167 = vshll.u32 %v2070, 16
        %v2169 = vrot.slane %v2167, 5
        %v2170 = vsel %vm631, %v2165, %v2169
        %v2172 = vshrl.u32 %v2071, 16
        %v2174 = vrot.slane %v2172, 4
        %v2175 = vshll.u32 %v2071, 16
        %v2177 = vrot.slane %v2175, 5
        %v2178 = vor.u32 %v2174, %v2177
        %v2179 = vrot.slane %v2178, 4
        %v2181 = vshll.u32 %v2072, 16
        %v2183 = vrot.slane %v2181, 5
        %v2184 = vsel %vm631, %v2179, %v2183
        %s2185 = scalar_lea.vmem [#allocation9], 448
        %v2186 = vld [vmem:[%s2185] sm:$0xf]
        %v2187 = vld [vmem:[%s2185 + $0x4] sm:$0xf]
        %v2188 = vld [vmem:[%s2185 + $0x8] sm:$0xf]
        %v2189 = vld [vmem:[%s2185 + $0xc] sm:$0xf]
        %v2190 = vld [vmem:[%s2185 + $0x10] sm:$0xf]
        %v2191 = vld [vmem:[%s2185 + $0x14] sm:$0xf]
        %v2192 = vld [vmem:[%s2185 + $0x18] sm:$0xf]
        %v2193 = vld [vmem:[%s2185 + $0x1c] sm:$0xf]
        %v2194 = vld [vmem:[%s2185 + $0x20] sm:$0xf]
        %v2195 = vld [vmem:[%s2185 + $0x24] sm:$0xf]
        %v2196 = vld [vmem:[%s2185 + $0x28] sm:$0xf]
        %v2197 = vld [vmem:[%s2185 + $0x2c] sm:$0xf]
        %v2198 = vld [vmem:[%s2185 + $0x30] sm:$0xf]
        %v2199 = vld [vmem:[%s2185 + $0x34] sm:$0xf]
        %v2200 = vld [vmem:[%s2185 + $0x38] sm:$0xf]
        %v2201 = vld [vmem:[%s2185 + $0x3c] sm:$0xf]
        %v2202 = vunpack.c.l.b16 %v2086
        %v2203 = vunpack.c.l.b16 %v2100
        %v2204 = vunpack.c.l.b16 %v2114
        %v2205 = vunpack.c.l.b16 %v2128
        %v2206 = vunpack.c.l.b16 %v2142
        %v2207 = vunpack.c.l.b16 %v2156
        %v2208 = vunpack.c.l.b16 %v2170
        %v2209 = vunpack.c.l.b16 %v2184
        %v2210 = vpack.c.b16 %v2203, %v2202
        %v2211 = vpack.c.b16 %v2205, %v2204
        %v2212 = vpack.c.b16 %v2207, %v2206
        %v2213 = vpack.c.b16 %v2209, %v2208
        %v2234 = vunpack.c.l.b16 %v2186
        %v2235 = vunpack.c.l.b16 %v2187
        %v2236 = vunpack.c.l.b16 %v2188
        %v2237 = vunpack.c.l.b16 %v2189
        %v2238 = vunpack.c.l.b16 %v2190
        %v2239 = vunpack.c.l.b16 %v2191
        %v2240 = vunpack.c.l.b16 %v2192
        %v2241 = vunpack.c.l.b16 %v2193
        %v2242 = vunpack.c.l.b16 %v2194
        %v2243 = vunpack.c.l.b16 %v2195
        %v2244 = vunpack.c.l.b16 %v2196
        %v2245 = vunpack.c.l.b16 %v2197
        %v2246 = vunpack.c.l.b16 %v2198
        %v2247 = vunpack.c.l.b16 %v2199
        %v2248 = vunpack.c.l.b16 %v2200
        %v2249 = vunpack.c.l.b16 %v2201
        %v2250 = vpack.c.b16 %v2235, %v2234
        %v2251 = vpack.c.b16 %v2237, %v2236
        %v2252 = vpack.c.b16 %v2239, %v2238
        %v2253 = vpack.c.b16 %v2241, %v2240
        %v2254 = vpack.c.b16 %v2243, %v2242
        %v2255 = vpack.c.b16 %v2245, %v2244
        %v2256 = vpack.c.b16 %v2247, %v2246
        %v2257 = vpack.c.b16 %v2249, %v2248
        %2266 = vmatprep.subr.bf16.mxu0 0
        %2267 = vmatpush1.bf16.msra.mxu0 %v2250
        %2268 = vmatprep.subr.bf16.mxu0 0
        %2269 = vmatpush1.bf16.msra.mxu0 %v2251
        %2270 = vmatprep.subr.bf16.mxu0 0
        %2271 = vmatpush1.bf16.msra.mxu0 %v2252
        %2272 = vmatprep.subr.bf16.mxu0 0
        %2273 = vmatpush1.bf16.msra.mxu0 %v2253
        %2274 = vmatprep.subr.bf16.mxu0 0
        %2275 = vmatpush1.bf16.msra.mxu0 %v2254
        %2276 = vmatprep.subr.bf16.mxu0 0
        %2277 = vmatpush1.bf16.msra.mxu0 %v2255
        %2278 = vmatprep.subr.bf16.mxu0 0
        %2279 = vmatpush1.bf16.msra.mxu0 %v2256
        %2280 = vmatprep.subr.bf16.mxu0 0
        %2281 = vmatpush1.bf16.msra.mxu0 %v2257
        %2282 = vmatprep.subr.bf16.mxu0 0
        %2283 = vmatpush1.bf16.msra.mxu0 0
        %2284 = vmatprep.subr.bf16.mxu0 0
        %2285 = vmatpush1.bf16.msra.mxu0 0
        %2286 = vmatprep.subr.bf16.mxu0 0
        %2287 = vmatpush1.bf16.msra.mxu0 0
        %2288 = vmatprep.subr.bf16.mxu0 0
        %2289 = vmatpush1.bf16.msra.mxu0 0
        %2290 = vmatprep.subr.bf16.mxu0 0
        %2291 = vmatpush1.bf16.msra.mxu0 0
        %2292 = vmatprep.subr.bf16.mxu0 0
        %2293 = vmatpush1.bf16.msra.mxu0 0
        %2294 = vmatprep.subr.bf16.mxu0 0
        %2295 = vmatpush1.bf16.msra.mxu0 0
        %2296 = vmatprep.subr.bf16.mxu0 0
        %2297 = vmatpush1.bf16.msra.mxu0 0
        %2298 = vmatprep.mubr.bf16.mxu0 0
        %2299 = vmatmul.mubr.bf16.gmra.mrb[0].mxu0 %v2210
        %v2300 = vpop.f32.mrb[0].mxu0
        %v2301 = vadd.f32 0.0, %v2300
        %v2302 = vpop.f32.mrb[0].mxu0
        %v2303 = vpop.f32.mrb[0].mxu0
        %v2304 = vadd.f32 0.0, %v2303
        %v2305 = vpop.f32.mrb[0].mxu0
        %2306 = vmatprep.mubr.bf16.mxu0 0
        %2307 = vmatmul.mubr.bf16.gmra.mrb[0].mxu0 %v2211
        %v2308 = vpop.f32.mrb[0].mxu0
        %v2309 = vadd.f32 0.0, %v2308
        %v2310 = vpop.f32.mrb[0].mxu0
        %v2311 = vpop.f32.mrb[0].mxu0
        %v2312 = vadd.f32 0.0, %v2311
        %v2313 = vpop.f32.mrb[0].mxu0
        %2314 = vmatprep.mubr.bf16.mxu0 0
        %2315 = vmatmul.mubr.bf16.gmra.mrb[0].mxu0 %v2212
        %v2316 = vpop.f32.mrb[0].mxu0
        %v2317 = vadd.f32 0.0, %v2316
        %v2318 = vpop.f32.mrb[0].mxu0
        %v2319 = vpop.f32.mrb[0].mxu0
        %v2320 = vadd.f32 0.0, %v2319
        %v2321 = vpop.f32.mrb[0].mxu0
        %2322 = vmatprep.mubr.bf16.mxu0 0
        %2323 = vmatmul.mubr.bf16.gmra.mrb[0].mxu0 %v2213
        %v2324 = vpop.f32.mrb[0].mxu0
        %v2325 = vadd.f32 0.0, %v2324
        %v2326 = vpop.f32.mrb[0].mxu0
        %v2327 = vpop.f32.mrb[0].mxu0
        %v2328 = vadd.f32 0.0, %v2327
        %v2329 = vpop.f32.mrb[0].mxu0
        %2330 = vdwg.mxu0
        %v2331 = vld [vmem:[#allocation2] sm:$0xff]
        %v2332 = vld [vmem:[#allocation2 + $0x8] sm:$0xff]
        %v2333 = vld [vmem:[#allocation2 + $0x10] sm:$0xff]
        %v2334 = vld [vmem:[#allocation2 + $0x18] sm:$0xff]
        %v2335 = vld [vmem:[#allocation2 + $0x20] sm:$0xff]
        %v2336 = vld [vmem:[#allocation2 + $0x28] sm:$0xff]
        %v2337 = vld [vmem:[#allocation2 + $0x30] sm:$0xff]
        %v2338 = vld [vmem:[#allocation2 + $0x38] sm:$0xff]
        %v2339 = vadd.f32 %v2331, %v2301
        %v2340 = vadd.f32 %v2332, %v2304
        %v2341 = vadd.f32 %v2333, %v2309
        %v2342 = vadd.f32 %v2334, %v2312
        %v2343 = vadd.f32 %v2335, %v2317
        %v2344 = vadd.f32 %v2336, %v2320
        %v2345 = vadd.f32 %v2337, %v2325
        %v2346 = vadd.f32 %v2338, %v2328
        %2347 = vst [vmem:[#allocation2] sm:$0xff] %v2339
        %2348 = vst [vmem:[#allocation2 + $0x8] sm:$0xff] %v2340
        %2349 = vst [vmem:[#allocation2 + $0x10] sm:$0xff] %v2341
        %2350 = vst [vmem:[#allocation2 + $0x18] sm:$0xff] %v2342
        %2351 = vst [vmem:[#allocation2 + $0x20] sm:$0xff] %v2343
        %2352 = vst [vmem:[#allocation2 + $0x28] sm:$0xff] %v2344
        %2353 = vst [vmem:[#allocation2 + $0x30] sm:$0xff] %v2345
        %2354 = vst [vmem:[#allocation2 + $0x38] sm:$0xff] %v2346
        %v2355 = vld [vmem:[%s1870] sm:$0xe]
        %v2356 = vld [vmem:[%s1870 + $0x4] sm:$0x1]
        %v2357 = vld [vmem:[%s1870 + $0x8] sm:$0xe]
        %v2358 = vld [vmem:[%s1870 + $0xc] sm:$0x1]
        %v2359 = vld [vmem:[%s1870 + $0x10] sm:$0xe]
        %v2360 = vld [vmem:[%s1870 + $0x14] sm:$0x1]
        %v2361 = vld [vmem:[%s1870 + $0x18] sm:$0xe]
        %v2362 = vld [vmem:[%s1870 + $0x1c] sm:$0x1]
        %v2363 = vld [vmem:[%s1870 + $0x20] sm:$0xe]
        %v2364 = vld [vmem:[%s1870 + $0x24] sm:$0x1]
        %v2365 = vld [vmem:[%s1870 + $0x28] sm:$0xe]
        %v2366 = vld [vmem:[%s1870 + $0x2c] sm:$0x1]
        %v2367 = vld [vmem:[%s1870 + $0x30] sm:$0xe]
        %v2368 = vld [vmem:[%s1870 + $0x34] sm:$0x1]
        %v2369 = vld [vmem:[%s1870 + $0x38] sm:$0xe]
        %v2370 = vld [vmem:[%s1870 + $0x3c] sm:$0x1]
        %v2387 = vrot.slane %v2355, 5
        %v2388 = vrot.slane %v2387, 4
        %v2389 = vrot.slane %v2356, 5
        %v2390 = vsel %vm948, %v2388, %v2389
        %v2391 = vrot.slane %v2357, 5
        %v2392 = vrot.slane %v2391, 4
        %v2393 = vrot.slane %v2358, 5
        %v2394 = vsel %vm948, %v2392, %v2393
        %v2395 = vrot.slane %v2359, 5
        %v2396 = vrot.slane %v2395, 4
        %v2397 = vrot.slane %v2360, 5
        %v2398 = vsel %vm948, %v2396, %v2397
        %v2399 = vrot.slane %v2361, 5
        %v2400 = vrot.slane %v2399, 4
        %v2401 = vrot.slane %v2362, 5
        %v2402 = vsel %vm948, %v2400, %v2401
        %v2403 = vrot.slane %v2363, 5
        %v2404 = vrot.slane %v2403, 4
        %v2405 = vrot.slane %v2364, 5
        %v2406 = vsel %vm948, %v2404, %v2405
        %v2407 = vrot.slane %v2365, 5
        %v2408 = vrot.slane %v2407, 4
        %v2409 = vrot.slane %v2366, 5
        %v2410 = vsel %vm948, %v2408, %v2409
        %v2411 = vrot.slane %v2367, 5
        %v2412 = vrot.slane %v2411, 4
        %v2413 = vrot.slane %v2368, 5
        %v2414 = vsel %vm948, %v2412, %v2413
        %v2415 = vrot.slane %v2369, 5
        %v2416 = vrot.slane %v2415, 4
        %v2417 = vrot.slane %v2370, 5
        %v2418 = vsel %vm948, %v2416, %v2417
        %s2419 = scalar_lea.vmem [#allocation9], 512
        %v2420 = vld [vmem:[%s2419] sm:$0xf]
        %v2421 = vld [vmem:[%s2419 + $0x4] sm:$0xf]
        %v2422 = vld [vmem:[%s2419 + $0x8] sm:$0xf]
        %v2423 = vld [vmem:[%s2419 + $0xc] sm:$0xf]
        %v2424 = vld [vmem:[%s2419 + $0x10] sm:$0xf]
        %v2425 = vld [vmem:[%s2419 + $0x14] sm:$0xf]
        %v2426 = vld [vmem:[%s2419 + $0x18] sm:$0xf]
        %v2427 = vld [vmem:[%s2419 + $0x1c] sm:$0xf]
        %v2428 = vld [vmem:[%s2419 + $0x20] sm:$0xf]
        %v2429 = vld [vmem:[%s2419 + $0x24] sm:$0xf]
        %v2430 = vld [vmem:[%s2419 + $0x28] sm:$0xf]
        %v2431 = vld [vmem:[%s2419 + $0x2c] sm:$0xf]
        %v2432 = vld [vmem:[%s2419 + $0x30] sm:$0xf]
        %v2433 = vld [vmem:[%s2419 + $0x34] sm:$0xf]
        %v2434 = vld [vmem:[%s2419 + $0x38] sm:$0xf]
        %v2435 = vld [vmem:[%s2419 + $0x3c] sm:$0xf]
        %v2436 = vunpack.c.l.b16 %v2390
        %v2437 = vunpack.c.l.b16 %v2394
        %v2438 = vunpack.c.l.b16 %v2398
        %v2439 = vunpack.c.l.b16 %v2402
        %v2440 = vunpack.c.l.b16 %v2406
        %v2441 = vunpack.c.l.b16 %v2410
        %v2442 = vunpack.c.l.b16 %v2414
        %v2443 = vunpack.c.l.b16 %v2418
        %v2444 = vpack.c.b16 %v2437, %v2436
        %v2445 = vpack.c.b16 %v2439, %v2438
        %v2446 = vpack.c.b16 %v2441, %v2440
        %v2447 = vpack.c.b16 %v2443, %v2442
        %v2468 = vunpack.c.l.b16 %v2420
        %v2469 = vunpack.c.l.b16 %v2421
        %v2470 = vunpack.c.l.b16 %v2422
        %v2471 = vunpack.c.l.b16 %v2423
        %v2472 = vunpack.c.l.b16 %v2424
        %v2473 = vunpack.c.l.b16 %v2425
        %v2474 = vunpack.c.l.b16 %v2426
        %v2475 = vunpack.c.l.b16 %v2427
        %v2476 = vunpack.c.l.b16 %v2428
        %v2477 = vunpack.c.l.b16 %v2429
        %v2478 = vunpack.c.l.b16 %v2430
        %v2479 = vunpack.c.l.b16 %v2431
        %v2480 = vunpack.c.l.b16 %v2432
        %v2481 = vunpack.c.l.b16 %v2433
        %v2482 = vunpack.c.l.b16 %v2434
        %v2483 = vunpack.c.l.b16 %v2435
        %v2484 = vpack.c.b16 %v2469, %v2468
        %v2485 = vpack.c.b16 %v2471, %v2470
        %v2486 = vpack.c.b16 %v2473, %v2472
        %v2487 = vpack.c.b16 %v2475, %v2474
        %v2488 = vpack.c.b16 %v2477, %v2476
        %v2489 = vpack.c.b16 %v2479, %v2478
        %v2490 = vpack.c.b16 %v2481, %v2480
        %v2491 = vpack.c.b16 %v2483, %v2482
        %2500 = vmatprep.subr.bf16.mxu0 0
        %2501 = vmatpush1.bf16.msra.mxu0 %v2484
        %2502 = vmatprep.subr.bf16.mxu0 0
        %2503 = vmatpush1.bf16.msra.mxu0 %v2485
        %2504 = vmatprep.subr.bf16.mxu0 0
        %2505 = vmatpush1.bf16.msra.mxu0 %v2486
        %2506 = vmatprep.subr.bf16.mxu0 0
        %2507 = vmatpush1.bf16.msra.mxu0 %v2487
        %2508 = vmatprep.subr.bf16.mxu0 0
        %2509 = vmatpush1.bf16.msra.mxu0 %v2488
        %2510 = vmatprep.subr.bf16.mxu0 0
        %2511 = vmatpush1.bf16.msra.mxu0 %v2489
        %2512 = vmatprep.subr.bf16.mxu0 0
        %2513 = vmatpush1.bf16.msra.mxu0 %v2490
        %2514 = vmatprep.subr.bf16.mxu0 0
        %2515 = vmatpush1.bf16.msra.mxu0 %v2491
        %2516 = vmatprep.subr.bf16.mxu0 0
        %2517 = vmatpush1.bf16.msra.mxu0 0
        %2518 = vmatprep.subr.bf16.mxu0 0
        %2519 = vmatpush1.bf16.msra.mxu0 0
        %2520 = vmatprep.subr.bf16.mxu0 0
        %2521 = vmatpush1.bf16.msra.mxu0 0
        %2522 = vmatprep.subr.bf16.mxu0 0
        %2523 = vmatpush1.bf16.msra.mxu0 0
        %2524 = vmatprep.subr.bf16.mxu0 0
        %2525 = vmatpush1.bf16.msra.mxu0 0
        %2526 = vmatprep.subr.bf16.mxu0 0
        %2527 = vmatpush1.bf16.msra.mxu0 0
        %2528 = vmatprep.subr.bf16.mxu0 0
        %2529 = vmatpush1.bf16.msra.mxu0 0
        %2530 = vmatprep.subr.bf16.mxu0 0
        %2531 = vmatpush1.bf16.msra.mxu0 0
        %2532 = vmatprep.mubr.bf16.mxu0 0
        %2533 = vmatmul.mubr.bf16.gmra.mrb[0].mxu0 %v2444
        %v2534 = vpop.f32.mrb[0].mxu0
        %v2535 = vadd.f32 0.0, %v2534
        %v2536 = vpop.f32.mrb[0].mxu0
        %v2537 = vpop.f32.mrb[0].mxu0
        %v2538 = vadd.f32 0.0, %v2537
        %v2539 = vpop.f32.mrb[0].mxu0
        %2540 = vmatprep.mubr.bf16.mxu0 0
        %2541 = vmatmul.mubr.bf16.gmra.mrb[0].mxu0 %v2445
        %v2542 = vpop.f32.mrb[0].mxu0
        %v2543 = vadd.f32 0.0, %v2542
        %v2544 = vpop.f32.mrb[0].mxu0
        %v2545 = vpop.f32.mrb[0].mxu0
        %v2546 = vadd.f32 0.0, %v2545
        %v2547 = vpop.f32.mrb[0].mxu0
        %2548 = vmatprep.mubr.bf16.mxu0 0
        %2549 = vmatmul.mubr.bf16.gmra.mrb[0].mxu0 %v2446
        %v2550 = vpop.f32.mrb[0].mxu0
        %v2551 = vadd.f32 0.0, %v2550
        %v2552 = vpop.f32.mrb[0].mxu0
        %v2553 = vpop.f32.mrb[0].mxu0
        %v2554 = vadd.f32 0.0, %v2553
        %v2555 = vpop.f32.mrb[0].mxu0
        %2556 = vmatprep.mubr.bf16.mxu0 0
        %2557 = vmatmul.mubr.bf16.gmra.mrb[0].mxu0 %v2447
        %v2558 = vpop.f32.mrb[0].mxu0
        %v2559 = vadd.f32 0.0, %v2558
        %v2560 = vpop.f32.mrb[0].mxu0
        %v2561 = vpop.f32.mrb[0].mxu0
        %v2562 = vadd.f32 0.0, %v2561
        %v2563 = vpop.f32.mrb[0].mxu0
        %2564 = vdwg.mxu0
        %v2565 = vld [vmem:[#allocation2] sm:$0xff]
        %v2566 = vld [vmem:[#allocation2 + $0x8] sm:$0xff]
        %v2567 = vld [vmem:[#allocation2 + $0x10] sm:$0xff]
        %v2568 = vld [vmem:[#allocation2 + $0x18] sm:$0xff]
        %v2569 = vld [vmem:[#allocation2 + $0x20] sm:$0xff]
        %v2570 = vld [vmem:[#allocation2 + $0x28] sm:$0xff]
        %v2571 = vld [vmem:[#allocation2 + $0x30] sm:$0xff]
        %v2572 = vld [vmem:[#allocation2 + $0x38] sm:$0xff]
        %v2573 = vadd.f32 %v2565, %v2535
        %v2574 = vadd.f32 %v2566, %v2538
        %v2575 = vadd.f32 %v2567, %v2543
        %v2576 = vadd.f32 %v2568, %v2546
        %v2577 = vadd.f32 %v2569, %v2551
        %v2578 = vadd.f32 %v2570, %v2554
        %v2579 = vadd.f32 %v2571, %v2559
        %v2580 = vadd.f32 %v2572, %v2562
        %2581 = vst [vmem:[#allocation2] sm:$0xff] %v2573
        %2582 = vst [vmem:[#allocation2 + $0x8] sm:$0xff] %v2574
        %2583 = vst [vmem:[#allocation2 + $0x10] sm:$0xff] %v2575
        %2584 = vst [vmem:[#allocation2 + $0x18] sm:$0xff] %v2576
        %2585 = vst [vmem:[#allocation2 + $0x20] sm:$0xff] %v2577
        %2586 = vst [vmem:[#allocation2 + $0x28] sm:$0xff] %v2578
        %2587 = vst [vmem:[#allocation2 + $0x30] sm:$0xff] %v2579
        %2588 = vst [vmem:[#allocation2 + $0x38] sm:$0xff] %v2580
        %v2589 = vld [vmem:[#allocation2] sm:$0xff]
        %v2590 = vld [vmem:[#allocation2 + $0x8] sm:$0xff]
        %v2591 = vld [vmem:[#allocation2 + $0x10] sm:$0xff]
        %v2592 = vld [vmem:[#allocation2 + $0x18] sm:$0xff]
        %v2593 = vld [vmem:[#allocation2 + $0x20] sm:$0xff]
        %v2594 = vld [vmem:[#allocation2 + $0x28] sm:$0xff]
        %v2595 = vld [vmem:[#allocation2 + $0x30] sm:$0xff]
        %v2596 = vld [vmem:[#allocation2 + $0x38] sm:$0xff]
        %v2597 = vld [vmem:[#allocation10] sm:$0x1]
        %v2599 = vlaneseq
        %v2600 = vshrl.u32 %v2599, 7
        %v2601 = vsub.s32 0, %v2600
        %v2602 = vrot.slane %v2597, %v2601
        %v2604 = vmul.f32 %v2589, %v2602
        %v2605 = vmul.f32 %v2590, %v2602
        %v2606 = vmul.f32 %v2591, %v2602
        %v2607 = vmul.f32 %v2592, %v2602
        %v2608 = vmul.f32 %v2593, %v2602
        %v2609 = vmul.f32 %v2594, %v2602
        %v2610 = vmul.f32 %v2595, %v2602
        %v2611 = vmul.f32 %v2596, %v2602
        %v2612 = vld [vmem:[#allocation12] sm:$0x1]
        %v2614 = vlaneseq
        %v2615 = vshrl.u32 %v2614, 7
        %v2616 = vsub.s32 0, %v2615
        %v2617 = vrot.slane %v2612, %v2616
        %v2619 = vadd.f32 %v2604, %v2617
        %v2620 = vadd.f32 %v2605, %v2617
        %v2621 = vadd.f32 %v2606, %v2617
        %v2622 = vadd.f32 %v2607, %v2617
        %v2623 = vadd.f32 %v2608, %v2617
        %v2624 = vadd.f32 %v2609, %v2617
        %v2625 = vadd.f32 %v2610, %v2617
        %v2626 = vadd.f32 %v2611, %v2617
        %v2627 = vmax.f32 %v2619, 0.0
        %v2628 = vmax.f32 %v2620, 0.0
        %v2629 = vmax.f32 %v2621, 0.0
        %v2630 = vmax.f32 %v2622, 0.0
        %v2631 = vmax.f32 %v2623, 0.0
        %v2632 = vmax.f32 %v2624, 0.0
        %v2633 = vmax.f32 %v2625, 0.0
        %v2634 = vmax.f32 %v2626, 0.0
        %2635 = vst [vmem:[#allocation3] sm:$0xf] 0
        %2636 = vst [vmem:[#allocation3 + $0x4] sm:$0x1] 0
        %s2637 = scalar_lea.vmem [#allocation3], 72
        %2638 = vst [vmem:[%s2637] sm:$0xf] 0
        %2639 = vst [vmem:[%s2637 + $0x4] sm:$0x1] 0
        %vm2640 = vcmask 1040384
        %vm2641 = vsmask.f32 256
        %vm2642 = vmand %vm2640, %vm2641
        %v2643 = vld [vmem:[#allocation3] sm:$0x1]
        %v2644 = vsel %vm2642, 0, %v2643
        %2645 = vst [vmem:[#allocation3] sm:$0x1] %v2644
        %v2646 = vld [vmem:[#allocation3 + $0x8] sm:$0x1]
        %v2647 = vsel %vm2642, 0, %v2646
        %2648 = vst [vmem:[#allocation3 + $0x8] sm:$0x1] %v2647
        %v2649 = vld [vmem:[#allocation3 + $0x10] sm:$0x1]
        %v2650 = vsel %vm2642, 0, %v2649
        %2651 = vst [vmem:[#allocation3 + $0x10] sm:$0x1] %v2650
        %v2652 = vld [vmem:[#allocation3 + $0x18] sm:$0x1]
        %v2653 = vsel %vm2642, 0, %v2652
        %2654 = vst [vmem:[#allocation3 + $0x18] sm:$0x1] %v2653
        %v2655 = vld [vmem:[#allocation3 + $0x20] sm:$0x1]
        %v2656 = vsel %vm2642, 0, %v2655
        %2657 = vst [vmem:[#allocation3 + $0x20] sm:$0x1] %v2656
        %v2658 = vld [vmem:[#allocation3 + $0x28] sm:$0x1]
        %v2659 = vsel %vm2642, 0, %v2658
        %2660 = vst [vmem:[#allocation3 + $0x28] sm:$0x1] %v2659
        %v2661 = vld [vmem:[#allocation3 + $0x30] sm:$0x1]
        %v2662 = vsel %vm2642, 0, %v2661
        %2663 = vst [vmem:[#allocation3 + $0x30] sm:$0x1] %v2662
        %v2664 = vld [vmem:[#allocation3 + $0x38] sm:$0x1]
        %v2665 = vsel %vm2642, 0, %v2664
        %2666 = vst [vmem:[#allocation3 + $0x38] sm:$0x1] %v2665
        %v2667 = vld [vmem:[#allocation3 + $0x40] sm:$0x1]
        %v2668 = vsel %vm2642, 0, %v2667
        %2669 = vst [vmem:[#allocation3 + $0x40] sm:$0x1] %v2668
        %v2670 = vld [vmem:[#allocation3 + $0x48] sm:$0x1]
        %v2671 = vsel %vm2642, 0, %v2670
        %2672 = vst [vmem:[#allocation3 + $0x48] sm:$0x1] %v2671
        %vm2673 = vsmask.f32 7938
        %vm2674 = vmand %vm2640, %vm2673
        %v2675 = vld [vmem:[#allocation3 + $0x4] sm:$0x1]
        %v2676 = vsel %vm2674, 0, %v2675
        %2677 = vst [vmem:[#allocation3 + $0x4] sm:$0x1] %v2676
        %v2678 = vld [vmem:[#allocation3 + $0xc] sm:$0x1]
        %v2679 = vsel %vm2674, 0, %v2678
        %2680 = vst [vmem:[#allocation3 + $0xc] sm:$0x1] %v2679
        %v2681 = vld [vmem:[#allocation3 + $0x14] sm:$0x1]
        %v2682 = vsel %vm2674, 0, %v2681
        %2683 = vst [vmem:[#allocation3 + $0x14] sm:$0x1] %v2682
        %v2684 = vld [vmem:[#allocation3 + $0x1c] sm:$0x1]
        %v2685 = vsel %vm2674, 0, %v2684
        %2686 = vst [vmem:[#allocation3 + $0x1c] sm:$0x1] %v2685
        %v2687 = vld [vmem:[#allocation3 + $0x24] sm:$0x1]
        %v2688 = vsel %vm2674, 0, %v2687
        %2689 = vst [vmem:[#allocation3 + $0x24] sm:$0x1] %v2688
        %v2690 = vld [vmem:[#allocation3 + $0x2c] sm:$0x1]
        %v2691 = vsel %vm2674, 0, %v2690
        %2692 = vst [vmem:[#allocation3 + $0x2c] sm:$0x1] %v2691
        %v2693 = vld [vmem:[#allocation3 + $0x34] sm:$0x1]
        %v2694 = vsel %vm2674, 0, %v2693
        %2695 = vst [vmem:[#allocation3 + $0x34] sm:$0x1] %v2694
        %v2696 = vld [vmem:[#allocation3 + $0x3c] sm:$0x1]
        %v2697 = vsel %vm2674, 0, %v2696
        %2698 = vst [vmem:[#allocation3 + $0x3c] sm:$0x1] %v2697
        %v2699 = vld [vmem:[#allocation3 + $0x44] sm:$0x1]
        %v2700 = vsel %vm2674, 0, %v2699
        %2701 = vst [vmem:[#allocation3 + $0x44] sm:$0x1] %v2700
        %v2702 = vld [vmem:[#allocation3 + $0x4c] sm:$0x1]
        %v2703 = vsel %vm2674, 0, %v2702
        %2704 = vst [vmem:[#allocation3 + $0x4c] sm:$0x1] %v2703
        %v2705 = vpack.c.bf16 %v2627, %v2627
        %v2706 = vpack.c.bf16 %v2628, %v2628
        %v2707 = vpack.c.bf16 %v2629, %v2629
        %v2708 = vpack.c.bf16 %v2630, %v2630
        %v2709 = vpack.c.bf16 %v2631, %v2631
        %v2710 = vpack.c.bf16 %v2632, %v2632
        %v2711 = vpack.c.bf16 %v2633, %v2633
        %v2712 = vpack.c.bf16 %v2634, %v2634
        %v2721 = vunpack.c.l.b16 %v2705
        %v2722 = vunpack.c.l.b16 %v2706
        %v2723 = vunpack.c.l.b16 %v2707
        %v2724 = vunpack.c.l.b16 %v2708
        %v2725 = vunpack.c.l.b16 %v2709
        %v2726 = vunpack.c.l.b16 %v2710
        %v2727 = vunpack.c.l.b16 %v2711
        %v2728 = vunpack.c.l.b16 %v2712
        %v2729 = vpack.c.b16 %v2721, %v2721
        %v2730 = vpack.c.b16 %v2722, %v2722
        %v2731 = vpack.c.b16 %v2723, %v2723
        %v2732 = vpack.c.b16 %v2724, %v2724
        %v2733 = vpack.c.b16 %v2725, %v2725
        %v2734 = vpack.c.b16 %v2726, %v2726
        %v2735 = vpack.c.b16 %v2727, %v2727
        %v2736 = vpack.c.b16 %v2728, %v2728
        %v2738 = vshrl.u32 %v2729, 16
        %v2740 = vrot.slane %v2738, 7
        %v2741 = vshll.u32 %v2729, 16
        %v2743 = vor.u32 %v2740, %v2741
        %v2744 = vrot.slane %v2740, 4
        %v2746 = vshrl.u32 %v2730, 16
        %v2748 = vrot.slane %v2746, 7
        %v2749 = vshll.u32 %v2730, 16
        %v2751 = vor.u32 %v2748, %v2749
        %v2752 = vrot.slane %v2748, 4
        %v2754 = vshrl.u32 %v2731, 16
        %v2756 = vrot.slane %v2754, 7
        %v2757 = vshll.u32 %v2731, 16
        %v2759 = vor.u32 %v2756, %v2757
        %v2760 = vrot.slane %v2756, 4
        %v2762 = vshrl.u32 %v2732, 16
        %v2764 = vrot.slane %v2762, 7
        %v2765 = vshll.u32 %v2732, 16
        %v2767 = vor.u32 %v2764, %v2765
        %v2768 = vrot.slane %v2764, 4
        %v2770 = vshrl.u32 %v2733, 16
        %v2772 = vrot.slane %v2770, 7
        %v2773 = vshll.u32 %v2733, 16
        %v2775 = vor.u32 %v2772, %v2773
        %v2776 = vrot.slane %v2772, 4
        %v2778 = vshrl.u32 %v2734, 16
        %v2780 = vrot.slane %v2778, 7
        %v2781 = vshll.u32 %v2734, 16
        %v2783 = vor.u32 %v2780, %v2781
        %v2784 = vrot.slane %v2780, 4
        %v2786 = vshrl.u32 %v2735, 16
        %v2788 = vrot.slane %v2786, 7
        %v2789 = vshll.u32 %v2735, 16
        %v2791 = vor.u32 %v2788, %v2789
        %v2792 = vrot.slane %v2788, 4
        %v2794 = vshrl.u32 %v2736, 16
        %v2796 = vrot.slane %v2794, 7
        %v2797 = vshll.u32 %v2736, 16
        %v2799 = vor.u32 %v2796, %v2797
        %v2800 = vrot.slane %v2796, 4
        %s2817 = scalar_lea.vmem [#allocation3], 8
        %vm2818 = vcmask 1043456
        %vm2819 = vmand %vm2818, %vm2673
        %v2820 = vld [vmem:[%s2817] sm:$0xf]
        %v2821 = vsel %vm2819, %v2743, %v2820
        %2822 = vst [vmem:[%s2817] sm:$0xf] %v2821
        %v2823 = vld [vmem:[%s2817 + $0x4] sm:$0x1]
        %v2824 = vsel %vm2642, %v2744, %v2823
        %2825 = vst [vmem:[%s2817 + $0x4] sm:$0x1] %v2824
        %v2826 = vld [vmem:[%s2817 + $0x8] sm:$0xf]
        %v2827 = vsel %vm2819, %v2751, %v2826
        %2828 = vst [vmem:[%s2817 + $0x8] sm:$0xf] %v2827
        %v2829 = vld [vmem:[%s2817 + $0xc] sm:$0x1]
        %v2830 = vsel %vm2642, %v2752, %v2829
        %2831 = vst [vmem:[%s2817 + $0xc] sm:$0x1] %v2830
        %v2832 = vld [vmem:[%s2817 + $0x10] sm:$0xf]
        %v2833 = vsel %vm2819, %v2759, %v2832
        %2834 = vst [vmem:[%s2817 + $0x10] sm:$0xf] %v2833
        %v2835 = vld [vmem:[%s2817 + $0x14] sm:$0x1]
        %v2836 = vsel %vm2642, %v2760, %v2835
        %2837 = vst [vmem:[%s2817 + $0x14] sm:$0x1] %v2836
        %v2838 = vld [vmem:[%s2817 + $0x18] sm:$0xf]
        %v2839 = vsel %vm2819, %v2767, %v2838
        %2840 = vst [vmem:[%s2817 + $0x18] sm:$0xf] %v2839
        %v2841 = vld [vmem:[%s2817 + $0x1c] sm:$0x1]
        %v2842 = vsel %vm2642, %v2768, %v2841
        %2843 = vst [vmem:[%s2817 + $0x1c] sm:$0x1] %v2842
        %v2844 = vld [vmem:[%s2817 + $0x20] sm:$0xf]
        %v2845 = vsel %vm2819, %v2775, %v2844
        %2846 = vst [vmem:[%s2817 + $0x20] sm:$0xf] %v2845
        %v2847 = vld [vmem:[%s2817 + $0x24] sm:$0x1]
        %v2848 = vsel %vm2642, %v2776, %v2847
        %2849 = vst [vmem:[%s2817 + $0x24] sm:$0x1] %v2848
        %v2850 = vld [vmem:[%s2817 + $0x28] sm:$0xf]
        %v2851 = vsel %vm2819, %v2783, %v2850
        %2852 = vst [vmem:[%s2817 + $0x28] sm:$0xf] %v2851
        %v2853 = vld [vmem:[%s2817 + $0x2c] sm:$0x1]
        %v2854 = vsel %vm2642, %v2784, %v2853
        %2855 = vst [vmem:[%s2817 + $0x2c] sm:$0x1] %v2854
        %v2856 = vld [vmem:[%s2817 + $0x30] sm:$0xf]
        %v2857 = vsel %vm2819, %v2791, %v2856
        %2858 = vst [vmem:[%s2817 + $0x30] sm:$0xf] %v2857
        %v2859 = vld [vmem:[%s2817 + $0x34] sm:$0x1]
        %v2860 = vsel %vm2642, %v2792, %v2859
        %2861 = vst [vmem:[%s2817 + $0x34] sm:$0x1] %v2860
        %v2862 = vld [vmem:[%s2817 + $0x38] sm:$0xf]
        %v2863 = vsel %vm2819, %v2799, %v2862
        %2864 = vst [vmem:[%s2817 + $0x38] sm:$0xf] %v2863
        %v2865 = vld [vmem:[%s2817 + $0x3c] sm:$0x1]
        %v2866 = vsel %vm2642, %v2800, %v2865
        %2867 = vst [vmem:[%s2817 + $0x3c] sm:$0x1] %v2866
        %v2868 = vld [vmem:[#allocation3] sm:$0xf]
        %v2869 = vld [vmem:[#allocation3 + $0x8] sm:$0xf]
        %v2870 = vld [vmem:[#allocation3 + $0x10] sm:$0xf]
        %v2871 = vld [vmem:[#allocation3 + $0x18] sm:$0xf]
        %v2872 = vld [vmem:[#allocation3 + $0x20] sm:$0xf]
        %v2873 = vld [vmem:[#allocation3 + $0x28] sm:$0xf]
        %v2874 = vld [vmem:[#allocation3 + $0x30] sm:$0xf]
        %v2875 = vld [vmem:[#allocation3 + $0x38] sm:$0xf]
        %v2876 = vld [vmem:[#allocation13] sm:$0xf]
        %v2877 = vld [vmem:[#allocation13 + $0x4] sm:$0xf]
        %v2878 = vld [vmem:[#allocation13 + $0x8] sm:$0xf]
        %v2879 = vld [vmem:[#allocation13 + $0xc] sm:$0xf]
        %v2880 = vld [vmem:[#allocation13 + $0x10] sm:$0xf]
        %v2881 = vld [vmem:[#allocation13 + $0x14] sm:$0xf]
        %v2882 = vld [vmem:[#allocation13 + $0x18] sm:$0xf]
        %v2883 = vld [vmem:[#allocation13 + $0x1c] sm:$0xf]
        %v2884 = vld [vmem:[#allocation13 + $0x20] sm:$0xf]
        %v2885 = vld [vmem:[#allocation13 + $0x24] sm:$0xf]
        %v2886 = vld [vmem:[#allocation13 + $0x28] sm:$0xf]
        %v2887 = vld [vmem:[#allocation13 + $0x2c] sm:$0xf]
        %v2888 = vld [vmem:[#allocation13 + $0x30] sm:$0xf]
        %v2889 = vld [vmem:[#allocation13 + $0x34] sm:$0xf]
        %v2890 = vld [vmem:[#allocation13 + $0x38] sm:$0xf]
        %v2891 = vld [vmem:[#allocation13 + $0x3c] sm:$0xf]
        %v2900 = vunpack.c.l.b16 %v2868
        %v2901 = vunpack.c.l.b16 %v2869
        %v2902 = vunpack.c.l.b16 %v2870
        %v2903 = vunpack.c.l.b16 %v2871
        %v2904 = vunpack.c.l.b16 %v2872
        %v2905 = vunpack.c.l.b16 %v2873
        %v2906 = vunpack.c.l.b16 %v2874
        %v2907 = vunpack.c.l.b16 %v2875
        %v2908 = vpack.c.b16 %v2901, %v2900
        %v2909 = vpack.c.b16 %v2903, %v2902
        %v2910 = vpack.c.b16 %v2905, %v2904
        %v2911 = vpack.c.b16 %v2907, %v2906
        %v2932 = vunpack.c.l.b16 %v2876
        %v2933 = vunpack.c.l.b16 %v2877
        %v2934 = vunpack.c.l.b16 %v2878
        %v2935 = vunpack.c.l.b16 %v2879
        %v2936 = vunpack.c.l.b16 %v2880
        %v2937 = vunpack.c.l.b16 %v2881
        %v2938 = vunpack.c.l.b16 %v2882
        %v2939 = vunpack.c.l.b16 %v2883
        %v2940 = vunpack.c.l.b16 %v2884
        %v2941 = vunpack.c.l.b16 %v2885
        %v2942 = vunpack.c.l.b16 %v2886
        %v2943 = vunpack.c.l.b16 %v2887
        %v2944 = vunpack.c.l.b16 %v2888
        %v2945 = vunpack.c.l.b16 %v2889
        %v2946 = vunpack.c.l.b16 %v2890
        %v2947 = vunpack.c.l.b16 %v2891
        %v2948 = vpack.c.b16 %v2933, %v2932
        %v2949 = vpack.c.b16 %v2935, %v2934
        %v2950 = vpack.c.b16 %v2937, %v2936
        %v2951 = vpack.c.b16 %v2939, %v2938
        %v2952 = vpack.c.b16 %v2941, %v2940
        %v2953 = vpack.c.b16 %v2943, %v2942
        %v2954 = vpack.c.b16 %v2945, %v2944
        %v2955 = vpack.c.b16 %v2947, %v2946
        %2964 = vmatprep.subr.bf16.mxu0 0
        %2965 = vmatpush1.bf16.msra.mxu0 %v2948
        %2966 = vmatprep.subr.bf16.mxu0 0
        %2967 = vmatpush1.bf16.msra.mxu0 %v2949
        %2968 = vmatprep.subr.bf16.mxu0 0
        %2969 = vmatpush1.bf16.msra.mxu0 %v2950
        %2970 = vmatprep.subr.bf16.mxu0 0
        %2971 = vmatpush1.bf16.msra.mxu0 %v2951
        %2972 = vmatprep.subr.bf16.mxu0 0
        %2973 = vmatpush1.bf16.msra.mxu0 %v2952
        %2974 = vmatprep.subr.bf16.mxu0 0
        %2975 = vmatpush1.bf16.msra.mxu0 %v2953
        %2976 = vmatprep.subr.bf16.mxu0 0
        %2977 = vmatpush1.bf16.msra.mxu0 %v2954
        %2978 = vmatprep.subr.bf16.mxu0 0
        %2979 = vmatpush1.bf16.msra.mxu0 %v2955
        %2980 = vmatprep.subr.bf16.mxu0 0
        %2981 = vmatpush1.bf16.msra.mxu0 0
        %2982 = vmatprep.subr.bf16.mxu0 0
        %2983 = vmatpush1.bf16.msra.mxu0 0
        %2984 = vmatprep.subr.bf16.mxu0 0
        %2985 = vmatpush1.bf16.msra.mxu0 0
        %2986 = vmatprep.subr.bf16.mxu0 0
        %2987 = vmatpush1.bf16.msra.mxu0 0
        %2988 = vmatprep.subr.bf16.mxu0 0
        %2989 = vmatpush1.bf16.msra.mxu0 0
        %2990 = vmatprep.subr.bf16.mxu0 0
        %2991 = vmatpush1.bf16.msra.mxu0 0
        %2992 = vmatprep.subr.bf16.mxu0 0
        %2993 = vmatpush1.bf16.msra.mxu0 0
        %2994 = vmatprep.subr.bf16.mxu0 0
        %2995 = vmatpush1.bf16.msra.mxu0 0
        %2996 = vmatprep.mubr.bf16.mxu0 0
        %2997 = vmatmul.mubr.bf16.gmra.mrb[0].mxu0 %v2908
        %v2998 = vpop.f32.mrb[0].mxu0
        %v2999 = vadd.f32 0.0, %v2998
        %v3000 = vpop.f32.mrb[0].mxu0
        %v3001 = vpop.f32.mrb[0].mxu0
        %v3002 = vadd.f32 0.0, %v3001
        %v3003 = vpop.f32.mrb[0].mxu0
        %3004 = vmatprep.mubr.bf16.mxu0 0
        %3005 = vmatmul.mubr.bf16.gmra.mrb[0].mxu0 %v2909
        %v3006 = vpop.f32.mrb[0].mxu0
        %v3007 = vadd.f32 0.0, %v3006
        %v3008 = vpop.f32.mrb[0].mxu0
        %v3009 = vpop.f32.mrb[0].mxu0
        %v3010 = vadd.f32 0.0, %v3009
        %v3011 = vpop.f32.mrb[0].mxu0
        %3012 = vmatprep.mubr.bf16.mxu0 0
        %3013 = vmatmul.mubr.bf16.gmra.mrb[0].mxu0 %v2910
        %v3014 = vpop.f32.mrb[0].mxu0
        %v3015 = vadd.f32 0.0, %v3014
        %v3016 = vpop.f32.mrb[0].mxu0
        %v3017 = vpop.f32.mrb[0].mxu0
        %v3018 = vadd.f32 0.0, %v3017
        %v3019 = vpop.f32.mrb[0].mxu0
        %3020 = vmatprep.mubr.bf16.mxu0 0
        %3021 = vmatmul.mubr.bf16.gmra.mrb[0].mxu0 %v2911
        %v3022 = vpop.f32.mrb[0].mxu0
        %v3023 = vadd.f32 0.0, %v3022
        %v3024 = vpop.f32.mrb[0].mxu0
        %v3025 = vpop.f32.mrb[0].mxu0
        %v3026 = vadd.f32 0.0, %v3025
        %v3027 = vpop.f32.mrb[0].mxu0
        %3028 = vdwg.mxu0
        %3029 = vst [vmem:[#allocation2] sm:$0xff] %v2999
        %3030 = vst [vmem:[#allocation2 + $0x8] sm:$0xff] %v3002
        %3031 = vst [vmem:[#allocation2 + $0x10] sm:$0xff] %v3007
        %3032 = vst [vmem:[#allocation2 + $0x18] sm:$0xff] %v3010
        %3033 = vst [vmem:[#allocation2 + $0x20] sm:$0xff] %v3015
        %3034 = vst [vmem:[#allocation2 + $0x28] sm:$0xff] %v3018
        %3035 = vst [vmem:[#allocation2 + $0x30] sm:$0xff] %v3023
        %3036 = vst [vmem:[#allocation2 + $0x38] sm:$0xff] %v3026
        %v3037 = vld [vmem:[#allocation3] sm:$0xf]
        %v3038 = vld [vmem:[#allocation3 + $0x4] sm:$0x1]
        %v3039 = vld [vmem:[#allocation3 + $0x8] sm:$0xf]
        %v3040 = vld [vmem:[#allocation3 + $0xc] sm:$0x1]
        %v3041 = vld [vmem:[#allocation3 + $0x10] sm:$0xf]
        %v3042 = vld [vmem:[#allocation3 + $0x14] sm:$0x1]
        %v3043 = vld [vmem:[#allocation3 + $0x18] sm:$0xf]
        %v3044 = vld [vmem:[#allocation3 + $0x1c] sm:$0x1]
        %v3045 = vld [vmem:[#allocation3 + $0x20] sm:$0xf]
        %v3046 = vld [vmem:[#allocation3 + $0x24] sm:$0x1]
        %v3047 = vld [vmem:[#allocation3 + $0x28] sm:$0xf]
        %v3048 = vld [vmem:[#allocation3 + $0x2c] sm:$0x1]
        %v3049 = vld [vmem:[#allocation3 + $0x30] sm:$0xf]
        %v3050 = vld [vmem:[#allocation3 + $0x34] sm:$0x1]
        %v3051 = vld [vmem:[#allocation3 + $0x38] sm:$0xf]
        %v3052 = vld [vmem:[#allocation3 + $0x3c] sm:$0x1]
        %v3054 = vshrl.u32 %v3037, 16
        %v3056 = vrot.slane %v3054, 4
        %v3057 = vshll.u32 %v3037, 16
        %v3059 = vrot.slane %v3057, 5
        %v3060 = vor.u32 %v3056, %v3059
        %v3061 = vrot.slane %v3060, 4
        %v3063 = vshll.u32 %v3038, 16
        %v3065 = vrot.slane %v3063, 5
        %v3066 = vsel %vm631, %v3061, %v3065
        %v3068 = vshrl.u32 %v3039, 16
        %v3070 = vrot.slane %v3068, 4
        %v3071 = vshll.u32 %v3039, 16
        %v3073 = vrot.slane %v3071, 5
        %v3074 = vor.u32 %v3070, %v3073
        %v3075 = vrot.slane %v3074, 4
        %v3077 = vshll.u32 %v3040, 16
        %v3079 = vrot.slane %v3077, 5
        %v3080 = vsel %vm631, %v3075, %v3079
        %v3082 = vshrl.u32 %v3041, 16
        %v3084 = vrot.slane %v3082, 4
        %v3085 = vshll.u32 %v3041, 16
        %v3087 = vrot.slane %v3085, 5
        %v3088 = vor.u32 %v3084, %v3087
        %v3089 = vrot.slane %v3088, 4
        %v3091 = vshll.u32 %v3042, 16
        %v3093 = vrot.slane %v3091, 5
        %v3094 = vsel %vm631, %v3089, %v3093
        %v3096 = vshrl.u32 %v3043, 16
        %v3098 = vrot.slane %v3096, 4
        %v3099 = vshll.u32 %v3043, 16
        %v3101 = vrot.slane %v3099, 5
        %v3102 = vor.u32 %v3098, %v3101
        %v3103 = vrot.slane %v3102, 4
        %v3105 = vshll.u32 %v3044, 16
        %v3107 = vrot.slane %v3105, 5
        %v3108 = vsel %vm631, %v3103, %v3107
        %v3110 = vshrl.u32 %v3045, 16
        %v3112 = vrot.slane %v3110, 4
        %v3113 = vshll.u32 %v3045, 16
        %v3115 = vrot.slane %v3113, 5
        %v3116 = vor.u32 %v3112, %v3115
        %v3117 = vrot.slane %v3116, 4
        %v3119 = vshll.u32 %v3046, 16
        %v3121 = vrot.slane %v3119, 5
        %v3122 = vsel %vm631, %v3117, %v3121
        %v3124 = vshrl.u32 %v3047, 16
        %v3126 = vrot.slane %v3124, 4
        %v3127 = vshll.u32 %v3047, 16
        %v3129 = vrot.slane %v3127, 5
        %v3130 = vor.u32 %v3126, %v3129
        %v3131 = vrot.slane %v3130, 4
        %v3133 = vshll.u32 %v3048, 16
        %v3135 = vrot.slane %v3133, 5
        %v3136 = vsel %vm631, %v3131, %v3135
        %v3138 = vshrl.u32 %v3049, 16
        %v3140 = vrot.slane %v3138, 4
        %v3141 = vshll.u32 %v3049, 16
        %v3143 = vrot.slane %v3141, 5
        %v3144 = vor.u32 %v3140, %v3143
        %v3145 = vrot.slane %v3144, 4
        %v3147 = vshll.u32 %v3050, 16
        %v3149 = vrot.slane %v3147, 5
        %v3150 = vsel %vm631, %v3145, %v3149
        %v3152 = vshrl.u32 %v3051, 16
        %v3154 = vrot.slane %v3152, 4
        %v3155 = vshll.u32 %v3051, 16
        %v3157 = vrot.slane %v3155, 5
        %v3158 = vor.u32 %v3154, %v3157
        %v3159 = vrot.slane %v3158, 4
        %v3161 = vshll.u32 %v3052, 16
        %v3163 = vrot.slane %v3161, 5
        %v3164 = vsel %vm631, %v3159, %v3163
        %s3165 = scalar_lea.vmem [#allocation13], 64
        %v3166 = vld [vmem:[%s3165] sm:$0xf]
        %v3167 = vld [vmem:[%s3165 + $0x4] sm:$0xf]
        %v3168 = vld [vmem:[%s3165 + $0x8] sm:$0xf]
        %v3169 = vld [vmem:[%s3165 + $0xc] sm:$0xf]
        %v3170 = vld [vmem:[%s3165 + $0x10] sm:$0xf]
        %v3171 = vld [vmem:[%s3165 + $0x14] sm:$0xf]
        %v3172 = vld [vmem:[%s3165 + $0x18] sm:$0xf]
        %v3173 = vld [vmem:[%s3165 + $0x1c] sm:$0xf]
        %v3174 = vld [vmem:[%s3165 + $0x20] sm:$0xf]
        %v3175 = vld [vmem:[%s3165 + $0x24] sm:$0xf]
        %v3176 = vld [vmem:[%s3165 + $0x28] sm:$0xf]
        %v3177 = vld [vmem:[%s3165 + $0x2c] sm:$0xf]
        %v3178 = vld [vmem:[%s3165 + $0x30] sm:$0xf]
        %v3179 = vld [vmem:[%s3165 + $0x34] sm:$0xf]
        %v3180 = vld [vmem:[%s3165 + $0x38] sm:$0xf]
        %v3181 = vld [vmem:[%s3165 + $0x3c] sm:$0xf]
        %v3182 = vunpack.c.l.b16 %v3066
        %v3183 = vunpack.c.l.b16 %v3080
        %v3184 = vunpack.c.l.b16 %v3094
        %v3185 = vunpack.c.l.b16 %v3108
        %v3186 = vunpack.c.l.b16 %v3122
        %v3187 = vunpack.c.l.b16 %v3136
        %v3188 = vunpack.c.l.b16 %v3150
        %v3189 = vunpack.c.l.b16 %v3164
        %v3190 = vpack.c.b16 %v3183, %v3182
        %v3191 = vpack.c.b16 %v3185, %v3184
        %v3192 = vpack.c.b16 %v3187, %v3186
        %v3193 = vpack.c.b16 %v3189, %v3188
        %v3214 = vunpack.c.l.b16 %v3166
        %v3215 = vunpack.c.l.b16 %v3167
        %v3216 = vunpack.c.l.b16 %v3168
        %v3217 = vunpack.c.l.b16 %v3169
        %v3218 = vunpack.c.l.b16 %v3170
        %v3219 = vunpack.c.l.b16 %v3171
        %v3220 = vunpack.c.l.b16 %v3172
        %v3221 = vunpack.c.l.b16 %v3173
        %v3222 = vunpack.c.l.b16 %v3174
        %v3223 = vunpack.c.l.b16 %v3175
        %v3224 = vunpack.c.l.b16 %v3176
        %v3225 = vunpack.c.l.b16 %v3177
        %v3226 = vunpack.c.l.b16 %v3178
        %v3227 = vunpack.c.l.b16 %v3179
        %v3228 = vunpack.c.l.b16 %v3180
        %v3229 = vunpack.c.l.b16 %v3181
        %v3230 = vpack.c.b16 %v3215, %v3214
        %v3231 = vpack.c.b16 %v3217, %v3216
        %v3232 = vpack.c.b16 %v3219, %v3218
        %v3233 = vpack.c.b16 %v3221, %v3220
        %v3234 = vpack.c.b16 %v3223, %v3222
        %v3235 = vpack.c.b16 %v3225, %v3224
        %v3236 = vpack.c.b16 %v3227, %v3226
        %v3237 = vpack.c.b16 %v3229, %v3228
        %3246 = vmatprep.subr.bf16.mxu0 0
        %3247 = vmatpush1.bf16.msra.mxu0 %v3230
        %3248 = vmatprep.subr.bf16.mxu0 0
        %3249 = vmatpush1.bf16.msra.mxu0 %v3231
        %3250 = vmatprep.subr.bf16.mxu0 0
        %3251 = vmatpush1.bf16.msra.mxu0 %v3232
        %3252 = vmatprep.subr.bf16.mxu0 0
        %3253 = vmatpush1.bf16.msra.mxu0 %v3233
        %3254 = vmatprep.subr.bf16.mxu0 0
        %3255 = vmatpush1.bf16.msra.mxu0 %v3234
        %3256 = vmatprep.subr.bf16.mxu0 0
        %3257 = vmatpush1.bf16.msra.mxu0 %v3235
        %3258 = vmatprep.subr.bf16.mxu0 0
        %3259 = vmatpush1.bf16.msra.mxu0 %v3236
        %3260 = vmatprep.subr.bf16.mxu0 0
        %3261 = vmatpush1.bf16.msra.mxu0 %v3237
        %3262 = vmatprep.subr.bf16.mxu0 0
        %3263 = vmatpush1.bf16.msra.mxu0 0
        %3264 = vmatprep.subr.bf16.mxu0 0
        %3265 = vmatpush1.bf16.msra.mxu0 0
        %3266 = vmatprep.subr.bf16.mxu0 0
        %3267 = vmatpush1.bf16.msra.mxu0 0
        %3268 = vmatprep.subr.bf16.mxu0 0
        %3269 = vmatpush1.bf16.msra.mxu0 0
        %3270 = vmatprep.subr.bf16.mxu0 0
        %3271 = vmatpush1.bf16.msra.mxu0 0
        %3272 = vmatprep.subr.bf16.mxu0 0
        %3273 = vmatpush1.bf16.msra.mxu0 0
        %3274 = vmatprep.subr.bf16.mxu0 0
        %3275 = vmatpush1.bf16.msra.mxu0 0
        %3276 = vmatprep.subr.bf16.mxu0 0
        %3277 = vmatpush1.bf16.msra.mxu0 0
        %3278 = vmatprep.mubr.bf16.mxu0 0
        %3279 = vmatmul.mubr.bf16.gmra.mrb[0].mxu0 %v3190
        %v3280 = vpop.f32.mrb[0].mxu0
        %v3281 = vadd.f32 0.0, %v3280
        %v3282 = vpop.f32.mrb[0].mxu0
        %v3283 = vpop.f32.mrb[0].mxu0
        %v3284 = vadd.f32 0.0, %v3283
        %v3285 = vpop.f32.mrb[0].mxu0
        %3286 = vmatprep.mubr.bf16.mxu0 0
        %3287 = vmatmul.mubr.bf16.gmra.mrb[0].mxu0 %v3191
        %v3288 = vpop.f32.mrb[0].mxu0
        %v3289 = vadd.f32 0.0, %v3288
        %v3290 = vpop.f32.mrb[0].mxu0
        %v3291 = vpop.f32.mrb[0].mxu0
        %v3292 = vadd.f32 0.0, %v3291
        %v3293 = vpop.f32.mrb[0].mxu0
        %3294 = vmatprep.mubr.bf16.mxu0 0
        %3295 = vmatmul.mubr.bf16.gmra.mrb[0].mxu0 %v3192
        %v3296 = vpop.f32.mrb[0].mxu0
        %v3297 = vadd.f32 0.0, %v3296
        %v3298 = vpop.f32.mrb[0].mxu0
        %v3299 = vpop.f32.mrb[0].mxu0
        %v3300 = vadd.f32 0.0, %v3299
        %v3301 = vpop.f32.mrb[0].mxu0
        %3302 = vmatprep.mubr.bf16.mxu0 0
        %3303 = vmatmul.mubr.bf16.gmra.mrb[0].mxu0 %v3193
        %v3304 = vpop.f32.mrb[0].mxu0
        %v3305 = vadd.f32 0.0, %v3304
        %v3306 = vpop.f32.mrb[0].mxu0
        %v3307 = vpop.f32.mrb[0].mxu0
        %v3308 = vadd.f32 0.0, %v3307
        %v3309 = vpop.f32.mrb[0].mxu0
        %3310 = vdwg.mxu0
        %v3311 = vld [vmem:[#allocation2] sm:$0xff]
        %v3312 = vld [vmem:[#allocation2 + $0x8] sm:$0xff]
        %v3313 = vld [vmem:[#allocation2 + $0x10] sm:$0xff]
        %v3314 = vld [vmem:[#allocation2 + $0x18] sm:$0xff]
        %v3315 = vld [vmem:[#allocation2 + $0x20] sm:$0xff]
        %v3316 = vld [vmem:[#allocation2 + $0x28] sm:$0xff]
        %v3317 = vld [vmem:[#allocation2 + $0x30] sm:$0xff]
        %v3318 = vld [vmem:[#allocation2 + $0x38] sm:$0xff]
        %v3319 = vadd.f32 %v3311, %v3281
        %v3320 = vadd.f32 %v3312, %v3284
        %v3321 = vadd.f32 %v3313, %v3289
        %v3322 = vadd.f32 %v3314, %v3292
        %v3323 = vadd.f32 %v3315, %v3297
        %v3324 = vadd.f32 %v3316, %v3300
        %v3325 = vadd.f32 %v3317, %v3305
        %v3326 = vadd.f32 %v3318, %v3308
        %3327 = vst [vmem:[#allocation2] sm:$0xff] %v3319
        %3328 = vst [vmem:[#allocation2 + $0x8] sm:$0xff] %v3320
        %3329 = vst [vmem:[#allocation2 + $0x10] sm:$0xff] %v3321
        %3330 = vst [vmem:[#allocation2 + $0x18] sm:$0xff] %v3322
        %3331 = vst [vmem:[#allocation2 + $0x20] sm:$0xff] %v3323
        %3332 = vst [vmem:[#allocation2 + $0x28] sm:$0xff] %v3324
        %3333 = vst [vmem:[#allocation2 + $0x30] sm:$0xff] %v3325
        %3334 = vst [vmem:[#allocation2 + $0x38] sm:$0xff] %v3326
        %v3335 = vld [vmem:[#allocation3] sm:$0xe]
        %v3336 = vld [vmem:[#allocation3 + $0x4] sm:$0x1]
        %v3337 = vld [vmem:[#allocation3 + $0x8] sm:$0xe]
        %v3338 = vld [vmem:[#allocation3 + $0xc] sm:$0x1]
        %v3339 = vld [vmem:[#allocation3 + $0x10] sm:$0xe]
        %v3340 = vld [vmem:[#allocation3 + $0x14] sm:$0x1]
        %v3341 = vld [vmem:[#allocation3 + $0x18] sm:$0xe]
        %v3342 = vld [vmem:[#allocation3 + $0x1c] sm:$0x1]
        %v3343 = vld [vmem:[#allocation3 + $0x20] sm:$0xe]
        %v3344 = vld [vmem:[#allocation3 + $0x24] sm:$0x1]
        %v3345 = vld [vmem:[#allocation3 + $0x28] sm:$0xe]
        %v3346 = vld [vmem:[#allocation3 + $0x2c] sm:$0x1]
        %v3347 = vld [vmem:[#allocation3 + $0x30] sm:$0xe]
        %v3348 = vld [vmem:[#allocation3 + $0x34] sm:$0x1]
        %v3349 = vld [vmem:[#allocation3 + $0x38] sm:$0xe]
        %v3350 = vld [vmem:[#allocation3 + $0x3c] sm:$0x1]
        %v3367 = vrot.slane %v3335, 5
        %v3368 = vrot.slane %v3367, 4
        %v3369 = vrot.slane %v3336, 5
        %v3370 = vsel %vm948, %v3368, %v3369
        %v3371 = vrot.slane %v3337, 5
        %v3372 = vrot.slane %v3371, 4
        %v3373 = vrot.slane %v3338, 5
        %v3374 = vsel %vm948, %v3372, %v3373
        %v3375 = vrot.slane %v3339, 5
        %v3376 = vrot.slane %v3375, 4
        %v3377 = vrot.slane %v3340, 5
        %v3378 = vsel %vm948, %v3376, %v3377
        %v3379 = vrot.slane %v3341, 5
        %v3380 = vrot.slane %v3379, 4
        %v3381 = vrot.slane %v3342, 5
        %v3382 = vsel %vm948, %v3380, %v3381
        %v3383 = vrot.slane %v3343, 5
        %v3384 = vrot.slane %v3383, 4
        %v3385 = vrot.slane %v3344, 5
        %v3386 = vsel %vm948, %v3384, %v3385
        %v3387 = vrot.slane %v3345, 5
        %v3388 = vrot.slane %v3387, 4
        %v3389 = vrot.slane %v3346, 5
        %v3390 = vsel %vm948, %v3388, %v3389
        %v3391 = vrot.slane %v3347, 5
        %v3392 = vrot.slane %v3391, 4
        %v3393 = vrot.slane %v3348, 5
        %v3394 = vsel %vm948, %v3392, %v3393
        %v3395 = vrot.slane %v3349, 5
        %v3396 = vrot.slane %v3395, 4
        %v3397 = vrot.slane %v3350, 5
        %v3398 = vsel %vm948, %v3396, %v3397
        %s3399 = scalar_lea.vmem [#allocation13], 128
        %v3400 = vld [vmem:[%s3399] sm:$0xf]
        %v3401 = vld [vmem:[%s3399 + $0x4] sm:$0xf]
        %v3402 = vld [vmem:[%s3399 + $0x8] sm:$0xf]
        %v3403 = vld [vmem:[%s3399 + $0xc] sm:$0xf]
        %v3404 = vld [vmem:[%s3399 + $0x10] sm:$0xf]
        %v3405 = vld [vmem:[%s3399 + $0x14] sm:$0xf]
        %v3406 = vld [vmem:[%s3399 + $0x18] sm:$0xf]
        %v3407 = vld [vmem:[%s3399 + $0x1c] sm:$0xf]
        %v3408 = vld [vmem:[%s3399 + $0x20] sm:$0xf]
        %v3409 = vld [vmem:[%s3399 + $0x24] sm:$0xf]
        %v3410 = vld [vmem:[%s3399 + $0x28] sm:$0xf]
        %v3411 = vld [vmem:[%s3399 + $0x2c] sm:$0xf]
        %v3412 = vld [vmem:[%s3399 + $0x30] sm:$0xf]
        %v3413 = vld [vmem:[%s3399 + $0x34] sm:$0xf]
        %v3414 = vld [vmem:[%s3399 + $0x38] sm:$0xf]
        %v3415 = vld [vmem:[%s3399 + $0x3c] sm:$0xf]
        %v3416 = vunpack.c.l.b16 %v3370
        %v3417 = vunpack.c.l.b16 %v3374
        %v3418 = vunpack.c.l.b16 %v3378
        %v3419 = vunpack.c.l.b16 %v3382
        %v3420 = vunpack.c.l.b16 %v3386
        %v3421 = vunpack.c.l.b16 %v3390
        %v3422 = vunpack.c.l.b16 %v3394
        %v3423 = vunpack.c.l.b16 %v3398
        %v3424 = vpack.c.b16 %v3417, %v3416
        %v3425 = vpack.c.b16 %v3419, %v3418
        %v3426 = vpack.c.b16 %v3421, %v3420
        %v3427 = vpack.c.b16 %v3423, %v3422
        %v3448 = vunpack.c.l.b16 %v3400
        %v3449 = vunpack.c.l.b16 %v3401
        %v3450 = vunpack.c.l.b16 %v3402
        %v3451 = vunpack.c.l.b16 %v3403
        %v3452 = vunpack.c.l.b16 %v3404
        %v3453 = vunpack.c.l.b16 %v3405
        %v3454 = vunpack.c.l.b16 %v3406
        %v3455 = vunpack.c.l.b16 %v3407
        %v3456 = vunpack.c.l.b16 %v3408
        %v3457 = vunpack.c.l.b16 %v3409
        %v3458 = vunpack.c.l.b16 %v3410
        %v3459 = vunpack.c.l.b16 %v3411
        %v3460 = vunpack.c.l.b16 %v3412
        %v3461 = vunpack.c.l.b16 %v3413
        %v3462 = vunpack.c.l.b16 %v3414
        %v3463 = vunpack.c.l.b16 %v3415
        %v3464 = vpack.c.b16 %v3449, %v3448
        %v3465 = vpack.c.b16 %v3451, %v3450
        %v3466 = vpack.c.b16 %v3453, %v3452
        %v3467 = vpack.c.b16 %v3455, %v3454
        %v3468 = vpack.c.b16 %v3457, %v3456
        %v3469 = vpack.c.b16 %v3459, %v3458
        %v3470 = vpack.c.b16 %v3461, %v3460
        %v3471 = vpack.c.b16 %v3463, %v3462
        %3480 = vmatprep.subr.bf16.mxu0 0
        %3481 = vmatpush1.bf16.msra.mxu0 %v3464
        %3482 = vmatprep.subr.bf16.mxu0 0
        %3483 = vmatpush1.bf16.msra.mxu0 %v3465
        %3484 = vmatprep.subr.bf16.mxu0 0
        %3485 = vmatpush1.bf16.msra.mxu0 %v3466
        %3486 = vmatprep.subr.bf16.mxu0 0
        %3487 = vmatpush1.bf16.msra.mxu0 %v3467
        %3488 = vmatprep.subr.bf16.mxu0 0
        %3489 = vmatpush1.bf16.msra.mxu0 %v3468
        %3490 = vmatprep.subr.bf16.mxu0 0
        %3491 = vmatpush1.bf16.msra.mxu0 %v3469
        %3492 = vmatprep.subr.bf16.mxu0 0
        %3493 = vmatpush1.bf16.msra.mxu0 %v3470
        %3494 = vmatprep.subr.bf16.mxu0 0
        %3495 = vmatpush1.bf16.msra.mxu0 %v3471
        %3496 = vmatprep.subr.bf16.mxu0 0
        %3497 = vmatpush1.bf16.msra.mxu0 0
        %3498 = vmatprep.subr.bf16.mxu0 0
        %3499 = vmatpush1.bf16.msra.mxu0 0
        %3500 = vmatprep.subr.bf16.mxu0 0
        %3501 = vmatpush1.bf16.msra.mxu0 0
        %3502 = vmatprep.subr.bf16.mxu0 0
        %3503 = vmatpush1.bf16.msra.mxu0 0
        %3504 = vmatprep.subr.bf16.mxu0 0
        %3505 = vmatpush1.bf16.msra.mxu0 0
        %3506 = vmatprep.subr.bf16.mxu0 0
        %3507 = vmatpush1.bf16.msra.mxu0 0
        %3508 = vmatprep.subr.bf16.mxu0 0
        %3509 = vmatpush1.bf16.msra.mxu0 0
        %3510 = vmatprep.subr.bf16.mxu0 0
        %3511 = vmatpush1.bf16.msra.mxu0 0
        %3512 = vmatprep.mubr.bf16.mxu0 0
        %3513 = vmatmul.mubr.bf16.gmra.mrb[0].mxu0 %v3424
        %v3514 = vpop.f32.mrb[0].mxu0
        %v3515 = vadd.f32 0.0, %v3514
        %v3516 = vpop.f32.mrb[0].mxu0
        %v3517 = vpop.f32.mrb[0].mxu0
        %v3518 = vadd.f32 0.0, %v3517
        %v3519 = vpop.f32.mrb[0].mxu0
        %3520 = vmatprep.mubr.bf16.mxu0 0
        %3521 = vmatmul.mubr.bf16.gmra.mrb[0].mxu0 %v3425
        %v3522 = vpop.f32.mrb[0].mxu0
        %v3523 = vadd.f32 0.0, %v3522
        %v3524 = vpop.f32.mrb[0].mxu0
        %v3525 = vpop.f32.mrb[0].mxu0
        %v3526 = vadd.f32 0.0, %v3525
        %v3527 = vpop.f32.mrb[0].mxu0
        %3528 = vmatprep.mubr.bf16.mxu0 0
        %3529 = vmatmul.mubr.bf16.gmra.mrb[0].mxu0 %v3426
        %v3530 = vpop.f32.mrb[0].mxu0
        %v3531 = vadd.f32 0.0, %v3530
        %v3532 = vpop.f32.mrb[0].mxu0
        %v3533 = vpop.f32.mrb[0].mxu0
        %v3534 = vadd.f32 0.0, %v3533
        %v3535 = vpop.f32.mrb[0].mxu0
        %3536 = vmatprep.mubr.bf16.mxu0 0
        %3537 = vmatmul.mubr.bf16.gmra.mrb[0].mxu0 %v3427
        %v3538 = vpop.f32.mrb[0].mxu0
        %v3539 = vadd.f32 0.0, %v3538
        %v3540 = vpop.f32.mrb[0].mxu0
        %v3541 = vpop.f32.mrb[0].mxu0
        %v3542 = vadd.f32 0.0, %v3541
        %v3543 = vpop.f32.mrb[0].mxu0
        %3544 = vdwg.mxu0
        %v3545 = vld [vmem:[#allocation2] sm:$0xff]
        %v3546 = vld [vmem:[#allocation2 + $0x8] sm:$0xff]
        %v3547 = vld [vmem:[#allocation2 + $0x10] sm:$0xff]
        %v3548 = vld [vmem:[#allocation2 + $0x18] sm:$0xff]
        %v3549 = vld [vmem:[#allocation2 + $0x20] sm:$0xff]
        %v3550 = vld [vmem:[#allocation2 + $0x28] sm:$0xff]
        %v3551 = vld [vmem:[#allocation2 + $0x30] sm:$0xff]
        %v3552 = vld [vmem:[#allocation2 + $0x38] sm:$0xff]
        %v3553 = vadd.f32 %v3545, %v3515
        %v3554 = vadd.f32 %v3546, %v3518
        %v3555 = vadd.f32 %v3547, %v3523
        %v3556 = vadd.f32 %v3548, %v3526
        %v3557 = vadd.f32 %v3549, %v3531
        %v3558 = vadd.f32 %v3550, %v3534
        %v3559 = vadd.f32 %v3551, %v3539
        %v3560 = vadd.f32 %v3552, %v3542
        %3561 = vst [vmem:[#allocation2] sm:$0xff] %v3553
        %3562 = vst [vmem:[#allocation2 + $0x8] sm:$0xff] %v3554
        %3563 = vst [vmem:[#allocation2 + $0x10] sm:$0xff] %v3555
        %3564 = vst [vmem:[#allocation2 + $0x18] sm:$0xff] %v3556
        %3565 = vst [vmem:[#allocation2 + $0x20] sm:$0xff] %v3557
        %3566 = vst [vmem:[#allocation2 + $0x28] sm:$0xff] %v3558
        %3567 = vst [vmem:[#allocation2 + $0x30] sm:$0xff] %v3559
        %3568 = vst [vmem:[#allocation2 + $0x38] sm:$0xff] %v3560
        %v3569 = vld [vmem:[%s2817] sm:$0xf]
        %v3570 = vld [vmem:[%s2817 + $0x8] sm:$0xf]
        %v3571 = vld [vmem:[%s2817 + $0x10] sm:$0xf]
        %v3572 = vld [vmem:[%s2817 + $0x18] sm:$0xf]
        %v3573 = vld [vmem:[%s2817 + $0x20] sm:$0xf]
        %v3574 = vld [vmem:[%s2817 + $0x28] sm:$0xf]
        %v3575 = vld [vmem:[%s2817 + $0x30] sm:$0xf]
        %v3576 = vld [vmem:[%s2817 + $0x38] sm:$0xf]
        %s3577 = scalar_lea.vmem [#allocation13], 192
        %v3578 = vld [vmem:[%s3577] sm:$0xf]
        %v3579 = vld [vmem:[%s3577 + $0x4] sm:$0xf]
        %v3580 = vld [vmem:[%s3577 + $0x8] sm:$0xf]
        %v3581 = vld [vmem:[%s3577 + $0xc] sm:$0xf]
        %v3582 = vld [vmem:[%s3577 + $0x10] sm:$0xf]
        %v3583 = vld [vmem:[%s3577 + $0x14] sm:$0xf]
        %v3584 = vld [vmem:[%s3577 + $0x18] sm:$0xf]
        %v3585 = vld [vmem:[%s3577 + $0x1c] sm:$0xf]
        %v3586 = vld [vmem:[%s3577 + $0x20] sm:$0xf]
        %v3587 = vld [vmem:[%s3577 + $0x24] sm:$0xf]
        %v3588 = vld [vmem:[%s3577 + $0x28] sm:$0xf]
        %v3589 = vld [vmem:[%s3577 + $0x2c] sm:$0xf]
        %v3590 = vld [vmem:[%s3577 + $0x30] sm:$0xf]
        %v3591 = vld [vmem:[%s3577 + $0x34] sm:$0xf]
        %v3592 = vld [vmem:[%s3577 + $0x38] sm:$0xf]
        %v3593 = vld [vmem:[%s3577 + $0x3c] sm:$0xf]
        %v3602 = vunpack.c.l.b16 %v3569
        %v3603 = vunpack.c.l.b16 %v3570
        %v3604 = vunpack.c.l.b16 %v3571
        %v3605 = vunpack.c.l.b16 %v3572
        %v3606 = vunpack.c.l.b16 %v3573
        %v3607 = vunpack.c.l.b16 %v3574
        %v3608 = vunpack.c.l.b16 %v3575
        %v3609 = vunpack.c.l.b16 %v3576
        %v3610 = vpack.c.b16 %v3603, %v3602
        %v3611 = vpack.c.b16 %v3605, %v3604
        %v3612 = vpack.c.b16 %v3607, %v3606
        %v3613 = vpack.c.b16 %v3609, %v3608
        %v3634 = vunpack.c.l.b16 %v3578
        %v3635 = vunpack.c.l.b16 %v3579
        %v3636 = vunpack.c.l.b16 %v3580
        %v3637 = vunpack.c.l.b16 %v3581
        %v3638 = vunpack.c.l.b16 %v3582
        %v3639 = vunpack.c.l.b16 %v3583
        %v3640 = vunpack.c.l.b16 %v3584
        %v3641 = vunpack.c.l.b16 %v3585
        %v3642 = vunpack.c.l.b16 %v3586
        %v3643 = vunpack.c.l.b16 %v3587
        %v3644 = vunpack.c.l.b16 %v3588
        %v3645 = vunpack.c.l.b16 %v3589
        %v3646 = vunpack.c.l.b16 %v3590
        %v3647 = vunpack.c.l.b16 %v3591
        %v3648 = vunpack.c.l.b16 %v3592
        %v3649 = vunpack.c.l.b16 %v3593
        %v3650 = vpack.c.b16 %v3635, %v3634
        %v3651 = vpack.c.b16 %v3637, %v3636
        %v3652 = vpack.c.b16 %v3639, %v3638
        %v3653 = vpack.c.b16 %v3641, %v3640
        %v3654 = vpack.c.b16 %v3643, %v3642
        %v3655 = vpack.c.b16 %v3645, %v3644
        %v3656 = vpack.c.b16 %v3647, %v3646
        %v3657 = vpack.c.b16 %v3649, %v3648
        %3666 = vmatprep.subr.bf16.mxu0 0
        %3667 = vmatpush1.bf16.msra.mxu0 %v3650
        %3668 = vmatprep.subr.bf16.mxu0 0
        %3669 = vmatpush1.bf16.msra.mxu0 %v3651
        %3670 = vmatprep.subr.bf16.mxu0 0
        %3671 = vmatpush1.bf16.msra.mxu0 %v3652
        %3672 = vmatprep.subr.bf16.mxu0 0
        %3673 = vmatpush1.bf16.msra.mxu0 %v3653
        %3674 = vmatprep.subr.bf16.mxu0 0
        %3675 = vmatpush1.bf16.msra.mxu0 %v3654
        %3676 = vmatprep.subr.bf16.mxu0 0
        %3677 = vmatpush1.bf16.msra.mxu0 %v3655
        %3678 = vmatprep.subr.bf16.mxu0 0
        %3679 = vmatpush1.bf16.msra.mxu0 %v3656
        %3680 = vmatprep.subr.bf16.mxu0 0
        %3681 = vmatpush1.bf16.msra.mxu0 %v3657
        %3682 = vmatprep.subr.bf16.mxu0 0
        %3683 = vmatpush1.bf16.msra.mxu0 0
        %3684 = vmatprep.subr.bf16.mxu0 0
        %3685 = vmatpush1.bf16.msra.mxu0 0
        %3686 = vmatprep.subr.bf16.mxu0 0
        %3687 = vmatpush1.bf16.msra.mxu0 0
        %3688 = vmatprep.subr.bf16.mxu0 0
        %3689 = vmatpush1.bf16.msra.mxu0 0
        %3690 = vmatprep.subr.bf16.mxu0 0
        %3691 = vmatpush1.bf16.msra.mxu0 0
        %3692 = vmatprep.subr.bf16.mxu0 0
        %3693 = vmatpush1.bf16.msra.mxu0 0
        %3694 = vmatprep.subr.bf16.mxu0 0
        %3695 = vmatpush1.bf16.msra.mxu0 0
        %3696 = vmatprep.subr.bf16.mxu0 0
        %3697 = vmatpush1.bf16.msra.mxu0 0
        %3698 = vmatprep.mubr.bf16.mxu0 0
        %3699 = vmatmul.mubr.bf16.gmra.mrb[0].mxu0 %v3610
        %v3700 = vpop.f32.mrb[0].mxu0
        %v3701 = vadd.f32 0.0, %v3700
        %v3702 = vpop.f32.mrb[0].mxu0
        %v3703 = vpop.f32.mrb[0].mxu0
        %v3704 = vadd.f32 0.0, %v3703
        %v3705 = vpop.f32.mrb[0].mxu0
        %3706 = vmatprep.mubr.bf16.mxu0 0
        %3707 = vmatmul.mubr.bf16.gmra.mrb[0].mxu0 %v3611
        %v3708 = vpop.f32.mrb[0].mxu0
        %v3709 = vadd.f32 0.0, %v3708
        %v3710 = vpop.f32.mrb[0].mxu0
        %v3711 = vpop.f32.mrb[0].mxu0
        %v3712 = vadd.f32 0.0, %v3711
        %v3713 = vpop.f32.mrb[0].mxu0
        %3714 = vmatprep.mubr.bf16.mxu0 0
        %3715 = vmatmul.mubr.bf16.gmra.mrb[0].mxu0 %v3612
        %v3716 = vpop.f32.mrb[0].mxu0
        %v3717 = vadd.f32 0.0, %v3716
        %v3718 = vpop.f32.mrb[0].mxu0
        %v3719 = vpop.f32.mrb[0].mxu0
        %v3720 = vadd.f32 0.0, %v3719
        %v3721 = vpop.f32.mrb[0].mxu0
        %3722 = vmatprep.mubr.bf16.mxu0 0
        %3723 = vmatmul.mubr.bf16.gmra.mrb[0].mxu0 %v3613
        %v3724 = vpop.f32.mrb[0].mxu0
        %v3725 = vadd.f32 0.0, %v3724
        %v3726 = vpop.f32.mrb[0].mxu0
        %v3727 = vpop.f32.mrb[0].mxu0
        %v3728 = vadd.f32 0.0, %v3727
        %v3729 = vpop.f32.mrb[0].mxu0
        %3730 = vdwg.mxu0
        %v3731 = vld [vmem:[#allocation2] sm:$0xff]
        %v3732 = vld [vmem:[#allocation2 + $0x8] sm:$0xff]
        %v3733 = vld [vmem:[#allocation2 + $0x10] sm:$0xff]
        %v3734 = vld [vmem:[#allocation2 + $0x18] sm:$0xff]
        %v3735 = vld [vmem:[#allocation2 + $0x20] sm:$0xff]
        %v3736 = vld [vmem:[#allocation2 + $0x28] sm:$0xff]
        %v3737 = vld [vmem:[#allocation2 + $0x30] sm:$0xff]
        %v3738 = vld [vmem:[#allocation2 + $0x38] sm:$0xff]
        %v3739 = vadd.f32 %v3731, %v3701
        %v3740 = vadd.f32 %v3732, %v3704
        %v3741 = vadd.f32 %v3733, %v3709
        %v3742 = vadd.f32 %v3734, %v3712
        %v3743 = vadd.f32 %v3735, %v3717
        %v3744 = vadd.f32 %v3736, %v3720
        %v3745 = vadd.f32 %v3737, %v3725
        %v3746 = vadd.f32 %v3738, %v3728
        %3747 = vst [vmem:[#allocation2] sm:$0xff] %v3739
        %3748 = vst [vmem:[#allocation2 + $0x8] sm:$0xff] %v3740
        %3749 = vst [vmem:[#allocation2 + $0x10] sm:$0xff] %v3741
        %3750 = vst [vmem:[#allocation2 + $0x18] sm:$0xff] %v3742
        %3751 = vst [vmem:[#allocation2 + $0x20] sm:$0xff] %v3743
        %3752 = vst [vmem:[#allocation2 + $0x28] sm:$0xff] %v3744
        %3753 = vst [vmem:[#allocation2 + $0x30] sm:$0xff] %v3745
        %3754 = vst [vmem:[#allocation2 + $0x38] sm:$0xff] %v3746
        %v3755 = vld [vmem:[%s2817] sm:$0xf]
        %v3756 = vld [vmem:[%s2817 + $0x4] sm:$0x1]
        %v3757 = vld [vmem:[%s2817 + $0x8] sm:$0xf]
        %v3758 = vld [vmem:[%s2817 + $0xc] sm:$0x1]
        %v3759 = vld [vmem:[%s2817 + $0x10] sm:$0xf]
        %v3760 = vld [vmem:[%s2817 + $0x14] sm:$0x1]
        %v3761 = vld [vmem:[%s2817 + $0x18] sm:$0xf]
        %v3762 = vld [vmem:[%s2817 + $0x1c] sm:$0x1]
        %v3763 = vld [vmem:[%s2817 + $0x20] sm:$0xf]
        %v3764 = vld [vmem:[%s2817 + $0x24] sm:$0x1]
        %v3765 = vld [vmem:[%s2817 + $0x28] sm:$0xf]
        %v3766 = vld [vmem:[%s2817 + $0x2c] sm:$0x1]
        %v3767 = vld [vmem:[%s2817 + $0x30] sm:$0xf]
        %v3768 = vld [vmem:[%s2817 + $0x34] sm:$0x1]
        %v3769 = vld [vmem:[%s2817 + $0x38] sm:$0xf]
        %v3770 = vld [vmem:[%s2817 + $0x3c] sm:$0x1]
        %v3772 = vshrl.u32 %v3755, 16
        %v3774 = vrot.slane %v3772, 4
        %v3775 = vshll.u32 %v3755, 16
        %v3777 = vrot.slane %v3775, 5
        %v3778 = vor.u32 %v3774, %v3777
        %v3779 = vrot.slane %v3778, 4
        %v3781 = vshll.u32 %v3756, 16
        %v3783 = vrot.slane %v3781, 5
        %v3784 = vsel %vm631, %v3779, %v3783
        %v3786 = vshrl.u32 %v3757, 16
        %v3788 = vrot.slane %v3786, 4
        %v3789 = vshll.u32 %v3757, 16
        %v3791 = vrot.slane %v3789, 5
        %v3792 = vor.u32 %v3788, %v3791
        %v3793 = vrot.slane %v3792, 4
        %v3795 = vshll.u32 %v3758, 16
        %v3797 = vrot.slane %v3795, 5
        %v3798 = vsel %vm631, %v3793, %v3797
        %v3800 = vshrl.u32 %v3759, 16
        %v3802 = vrot.slane %v3800, 4
        %v3803 = vshll.u32 %v3759, 16
        %v3805 = vrot.slane %v3803, 5
        %v3806 = vor.u32 %v3802, %v3805
        %v3807 = vrot.slane %v3806, 4
        %v3809 = vshll.u32 %v3760, 16
        %v3811 = vrot.slane %v3809, 5
        %v3812 = vsel %vm631, %v3807, %v3811
        %v3814 = vshrl.u32 %v3761, 16
        %v3816 = vrot.slane %v3814, 4
        %v3817 = vshll.u32 %v3761, 16
        %v3819 = vrot.slane %v3817, 5
        %v3820 = vor.u32 %v3816, %v3819
        %v3821 = vrot.slane %v3820, 4
        %v3823 = vshll.u32 %v3762, 16
        %v3825 = vrot.slane %v3823, 5
        %v3826 = vsel %vm631, %v3821, %v3825
        %v3828 = vshrl.u32 %v3763, 16
        %v3830 = vrot.slane %v3828, 4
        %v3831 = vshll.u32 %v3763, 16
        %v3833 = vrot.slane %v3831, 5
        %v3834 = vor.u32 %v3830, %v3833
        %v3835 = vrot.slane %v3834, 4
        %v3837 = vshll.u32 %v3764, 16
        %v3839 = vrot.slane %v3837, 5
        %v3840 = vsel %vm631, %v3835, %v3839
        %v3842 = vshrl.u32 %v3765, 16
        %v3844 = vrot.slane %v3842, 4
        %v3845 = vshll.u32 %v3765, 16
        %v3847 = vrot.slane %v3845, 5
        %v3848 = vor.u32 %v3844, %v3847
        %v3849 = vrot.slane %v3848, 4
        %v3851 = vshll.u32 %v3766, 16
        %v3853 = vrot.slane %v3851, 5
        %v3854 = vsel %vm631, %v3849, %v3853
        %v3856 = vshrl.u32 %v3767, 16
        %v3858 = vrot.slane %v3856, 4
        %v3859 = vshll.u32 %v3767, 16
        %v3861 = vrot.slane %v3859, 5
        %v3862 = vor.u32 %v3858, %v3861
        %v3863 = vrot.slane %v3862, 4
        %v3865 = vshll.u32 %v3768, 16
        %v3867 = vrot.slane %v3865, 5
        %v3868 = vsel %vm631, %v3863, %v3867
        %v3870 = vshrl.u32 %v3769, 16
        %v3872 = vrot.slane %v3870, 4
        %v3873 = vshll.u32 %v3769, 16
        %v3875 = vrot.slane %v3873, 5
        %v3876 = vor.u32 %v3872, %v3875
        %v3877 = vrot.slane %v3876, 4
        %v3879 = vshll.u32 %v3770, 16
        %v3881 = vrot.slane %v3879, 5
        %v3882 = vsel %vm631, %v3877, %v3881
        %s3883 = scalar_lea.vmem [#allocation13], 256
        %v3884 = vld [vmem:[%s3883] sm:$0xf]
        %v3885 = vld [vmem:[%s3883 + $0x4] sm:$0xf]
        %v3886 = vld [vmem:[%s3883 + $0x8] sm:$0xf]
        %v3887 = vld [vmem:[%s3883 + $0xc] sm:$0xf]
        %v3888 = vld [vmem:[%s3883 + $0x10] sm:$0xf]
        %v3889 = vld [vmem:[%s3883 + $0x14] sm:$0xf]
        %v3890 = vld [vmem:[%s3883 + $0x18] sm:$0xf]
        %v3891 = vld [vmem:[%s3883 + $0x1c] sm:$0xf]
        %v3892 = vld [vmem:[%s3883 + $0x20] sm:$0xf]
        %v3893 = vld [vmem:[%s3883 + $0x24] sm:$0xf]
        %v3894 = vld [vmem:[%s3883 + $0x28] sm:$0xf]
        %v3895 = vld [vmem:[%s3883 + $0x2c] sm:$0xf]
        %v3896 = vld [vmem:[%s3883 + $0x30] sm:$0xf]
        %v3897 = vld [vmem:[%s3883 + $0x34] sm:$0xf]
        %v3898 = vld [vmem:[%s3883 + $0x38] sm:$0xf]
        %v3899 = vld [vmem:[%s3883 + $0x3c] sm:$0xf]
        %v3900 = vunpack.c.l.b16 %v3784
        %v3901 = vunpack.c.l.b16 %v3798
        %v3902 = vunpack.c.l.b16 %v3812
        %v3903 = vunpack.c.l.b16 %v3826
        %v3904 = vunpack.c.l.b16 %v3840
        %v3905 = vunpack.c.l.b16 %v3854
        %v3906 = vunpack.c.l.b16 %v3868
        %v3907 = vunpack.c.l.b16 %v3882
        %v3908 = vpack.c.b16 %v3901, %v3900
        %v3909 = vpack.c.b16 %v3903, %v3902
        %v3910 = vpack.c.b16 %v3905, %v3904
        %v3911 = vpack.c.b16 %v3907, %v3906
        %v3932 = vunpack.c.l.b16 %v3884
        %v3933 = vunpack.c.l.b16 %v3885
        %v3934 = vunpack.c.l.b16 %v3886
        %v3935 = vunpack.c.l.b16 %v3887
        %v3936 = vunpack.c.l.b16 %v3888
        %v3937 = vunpack.c.l.b16 %v3889
        %v3938 = vunpack.c.l.b16 %v3890
        %v3939 = vunpack.c.l.b16 %v3891
        %v3940 = vunpack.c.l.b16 %v3892
        %v3941 = vunpack.c.l.b16 %v3893
        %v3942 = vunpack.c.l.b16 %v3894
        %v3943 = vunpack.c.l.b16 %v3895
        %v3944 = vunpack.c.l.b16 %v3896
        %v3945 = vunpack.c.l.b16 %v3897
        %v3946 = vunpack.c.l.b16 %v3898
        %v3947 = vunpack.c.l.b16 %v3899
        %v3948 = vpack.c.b16 %v3933, %v3932
        %v3949 = vpack.c.b16 %v3935, %v3934
        %v3950 = vpack.c.b16 %v3937, %v3936
        %v3951 = vpack.c.b16 %v3939, %v3938
        %v3952 = vpack.c.b16 %v3941, %v3940
        %v3953 = vpack.c.b16 %v3943, %v3942
        %v3954 = vpack.c.b16 %v3945, %v3944
        %v3955 = vpack.c.b16 %v3947, %v3946
        %3964 = vmatprep.subr.bf16.mxu0 0
        %3965 = vmatpush1.bf16.msra.mxu0 %v3948
        %3966 = vmatprep.subr.bf16.mxu0 0
        %3967 = vmatpush1.bf16.msra.mxu0 %v3949
        %3968 = vmatprep.subr.bf16.mxu0 0
        %3969 = vmatpush1.bf16.msra.mxu0 %v3950
        %3970 = vmatprep.subr.bf16.mxu0 0
        %3971 = vmatpush1.bf16.msra.mxu0 %v3951
        %3972 = vmatprep.subr.bf16.mxu0 0
        %3973 = vmatpush1.bf16.msra.mxu0 %v3952
        %3974 = vmatprep.subr.bf16.mxu0 0
        %3975 = vmatpush1.bf16.msra.mxu0 %v3953
        %3976 = vmatprep.subr.bf16.mxu0 0
        %3977 = vmatpush1.bf16.msra.mxu0 %v3954
        %3978 = vmatprep.subr.bf16.mxu0 0
        %3979 = vmatpush1.bf16.msra.mxu0 %v3955
        %3980 = vmatprep.subr.bf16.mxu0 0
        %3981 = vmatpush1.bf16.msra.mxu0 0
        %3982 = vmatprep.subr.bf16.mxu0 0
        %3983 = vmatpush1.bf16.msra.mxu0 0
        %3984 = vmatprep.subr.bf16.mxu0 0
        %3985 = vmatpush1.bf16.msra.mxu0 0
        %3986 = vmatprep.subr.bf16.mxu0 0
        %3987 = vmatpush1.bf16.msra.mxu0 0
        %3988 = vmatprep.subr.bf16.mxu0 0
        %3989 = vmatpush1.bf16.msra.mxu0 0
        %3990 = vmatprep.subr.bf16.mxu0 0
        %3991 = vmatpush1.bf16.msra.mxu0 0
        %3992 = vmatprep.subr.bf16.mxu0 0
        %3993 = vmatpush1.bf16.msra.mxu0 0
        %3994 = vmatprep.subr.bf16.mxu0 0
        %3995 = vmatpush1.bf16.msra.mxu0 0
        %3996 = vmatprep.mubr.bf16.mxu0 0
        %3997 = vmatmul.mubr.bf16.gmra.mrb[0].mxu0 %v3908
        %v3998 = vpop.f32.mrb[0].mxu0
        %v3999 = vadd.f32 0.0, %v3998
        %v4000 = vpop.f32.mrb[0].mxu0
        %v4001 = vpop.f32.mrb[0].mxu0
        %v4002 = vadd.f32 0.0, %v4001
        %v4003 = vpop.f32.mrb[0].mxu0
        %4004 = vmatprep.mubr.bf16.mxu0 0
        %4005 = vmatmul.mubr.bf16.gmra.mrb[0].mxu0 %v3909
        %v4006 = vpop.f32.mrb[0].mxu0
        %v4007 = vadd.f32 0.0, %v4006
        %v4008 = vpop.f32.mrb[0].mxu0
        %v4009 = vpop.f32.mrb[0].mxu0
        %v4010 = vadd.f32 0.0, %v4009
        %v4011 = vpop.f32.mrb[0].mxu0
        %4012 = vmatprep.mubr.bf16.mxu0 0
        %4013 = vmatmul.mubr.bf16.gmra.mrb[0].mxu0 %v3910
        %v4014 = vpop.f32.mrb[0].mxu0
        %v4015 = vadd.f32 0.0, %v4014
        %v4016 = vpop.f32.mrb[0].mxu0
        %v4017 = vpop.f32.mrb[0].mxu0
        %v4018 = vadd.f32 0.0, %v4017
        %v4019 = vpop.f32.mrb[0].mxu0
        %4020 = vmatprep.mubr.bf16.mxu0 0
        %4021 = vmatmul.mubr.bf16.gmra.mrb[0].mxu0 %v3911
        %v4022 = vpop.f32.mrb[0].mxu0
        %v4023 = vadd.f32 0.0, %v4022
        %v4024 = vpop.f32.mrb[0].mxu0
        %v4025 = vpop.f32.mrb[0].mxu0
        %v4026 = vadd.f32 0.0, %v4025
        %v4027 = vpop.f32.mrb[0].mxu0
        %4028 = vdwg.mxu0
        %v4029 = vld [vmem:[#allocation2] sm:$0xff]
        %v4030 = vld [vmem:[#allocation2 + $0x8] sm:$0xff]
        %v4031 = vld [vmem:[#allocation2 + $0x10] sm:$0xff]
        %v4032 = vld [vmem:[#allocation2 + $0x18] sm:$0xff]
        %v4033 = vld [vmem:[#allocation2 + $0x20] sm:$0xff]
        %v4034 = vld [vmem:[#allocation2 + $0x28] sm:$0xff]
        %v4035 = vld [vmem:[#allocation2 + $0x30] sm:$0xff]
        %v4036 = vld [vmem:[#allocation2 + $0x38] sm:$0xff]
        %v4037 = vadd.f32 %v4029, %v3999
        %v4038 = vadd.f32 %v4030, %v4002
        %v4039 = vadd.f32 %v4031, %v4007
        %v4040 = vadd.f32 %v4032, %v4010
        %v4041 = vadd.f32 %v4033, %v4015
        %v4042 = vadd.f32 %v4034, %v4018
        %v4043 = vadd.f32 %v4035, %v4023
        %v4044 = vadd.f32 %v4036, %v4026
        %4045 = vst [vmem:[#allocation2] sm:$0xff] %v4037
        %4046 = vst [vmem:[#allocation2 + $0x8] sm:$0xff] %v4038
        %4047 = vst [vmem:[#allocation2 + $0x10] sm:$0xff] %v4039
        %4048 = vst [vmem:[#allocation2 + $0x18] sm:$0xff] %v4040
        %4049 = vst [vmem:[#allocation2 + $0x20] sm:$0xff] %v4041
        %4050 = vst [vmem:[#allocation2 + $0x28] sm:$0xff] %v4042
        %4051 = vst [vmem:[#allocation2 + $0x30] sm:$0xff] %v4043
        %4052 = vst [vmem:[#allocation2 + $0x38] sm:$0xff] %v4044
        %v4053 = vld [vmem:[%s2817] sm:$0xe]
        %v4054 = vld [vmem:[%s2817 + $0x4] sm:$0x1]
        %v4055 = vld [vmem:[%s2817 + $0x8] sm:$0xe]
        %v4056 = vld [vmem:[%s2817 + $0xc] sm:$0x1]
        %v4057 = vld [vmem:[%s2817 + $0x10] sm:$0xe]
        %v4058 = vld [vmem:[%s2817 + $0x14] sm:$0x1]
        %v4059 = vld [vmem:[%s2817 + $0x18] sm:$0xe]
        %v4060 = vld [vmem:[%s2817 + $0x1c] sm:$0x1]
        %v4061 = vld [vmem:[%s2817 + $0x20] sm:$0xe]
        %v4062 = vld [vmem:[%s2817 + $0x24] sm:$0x1]
        %v4063 = vld [vmem:[%s2817 + $0x28] sm:$0xe]
        %v4064 = vld [vmem:[%s2817 + $0x2c] sm:$0x1]
        %v4065 = vld [vmem:[%s2817 + $0x30] sm:$0xe]
        %v4066 = vld [vmem:[%s2817 + $0x34] sm:$0x1]
        %v4067 = vld [vmem:[%s2817 + $0x38] sm:$0xe]
        %v4068 = vld [vmem:[%s2817 + $0x3c] sm:$0x1]
        %v4085 = vrot.slane %v4053, 5
        %v4086 = vrot.slane %v4085, 4
        %v4087 = vrot.slane %v4054, 5
        %v4088 = vsel %vm948, %v4086, %v4087
        %v4089 = vrot.slane %v4055, 5
        %v4090 = vrot.slane %v4089, 4
        %v4091 = vrot.slane %v4056, 5
        %v4092 = vsel %vm948, %v4090, %v4091
        %v4093 = vrot.slane %v4057, 5
        %v4094 = vrot.slane %v4093, 4
        %v4095 = vrot.slane %v4058, 5
        %v4096 = vsel %vm948, %v4094, %v4095
        %v4097 = vrot.slane %v4059, 5
        %v4098 = vrot.slane %v4097, 4
        %v4099 = vrot.slane %v4060, 5
        %v4100 = vsel %vm948, %v4098, %v4099
        %v4101 = vrot.slane %v4061, 5
        %v4102 = vrot.slane %v4101, 4
        %v4103 = vrot.slane %v4062, 5
        %v4104 = vsel %vm948, %v4102, %v4103
        %v4105 = vrot.slane %v4063, 5
        %v4106 = vrot.slane %v4105, 4
        %v4107 = vrot.slane %v4064, 5
        %v4108 = vsel %vm948, %v4106, %v4107
        %v4109 = vrot.slane %v4065, 5
        %v4110 = vrot.slane %v4109, 4
        %v4111 = vrot.slane %v4066, 5
        %v4112 = vsel %vm948, %v4110, %v4111
        %v4113 = vrot.slane %v4067, 5
        %v4114 = vrot.slane %v4113, 4
        %v4115 = vrot.slane %v4068, 5
        %v4116 = vsel %vm948, %v4114, %v4115
        %s4117 = scalar_lea.vmem [#allocation13], 320
        %v4118 = vld [vmem:[%s4117] sm:$0xf]
        %v4119 = vld [vmem:[%s4117 + $0x4] sm:$0xf]
        %v4120 = vld [vmem:[%s4117 + $0x8] sm:$0xf]
        %v4121 = vld [vmem:[%s4117 + $0xc] sm:$0xf]
        %v4122 = vld [vmem:[%s4117 + $0x10] sm:$0xf]
        %v4123 = vld [vmem:[%s4117 + $0x14] sm:$0xf]
        %v4124 = vld [vmem:[%s4117 + $0x18] sm:$0xf]
        %v4125 = vld [vmem:[%s4117 + $0x1c] sm:$0xf]
        %v4126 = vld [vmem:[%s4117 + $0x20] sm:$0xf]
        %v4127 = vld [vmem:[%s4117 + $0x24] sm:$0xf]
        %v4128 = vld [vmem:[%s4117 + $0x28] sm:$0xf]
        %v4129 = vld [vmem:[%s4117 + $0x2c] sm:$0xf]
        %v4130 = vld [vmem:[%s4117 + $0x30] sm:$0xf]
        %v4131 = vld [vmem:[%s4117 + $0x34] sm:$0xf]
        %v4132 = vld [vmem:[%s4117 + $0x38] sm:$0xf]
        %v4133 = vld [vmem:[%s4117 + $0x3c] sm:$0xf]
        %v4134 = vunpack.c.l.b16 %v4088
        %v4135 = vunpack.c.l.b16 %v4092
        %v4136 = vunpack.c.l.b16 %v4096
        %v4137 = vunpack.c.l.b16 %v4100
        %v4138 = vunpack.c.l.b16 %v4104
        %v4139 = vunpack.c.l.b16 %v4108
        %v4140 = vunpack.c.l.b16 %v4112
        %v4141 = vunpack.c.l.b16 %v4116
        %v4142 = vpack.c.b16 %v4135, %v4134
        %v4143 = vpack.c.b16 %v4137, %v4136
        %v4144 = vpack.c.b16 %v4139, %v4138
        %v4145 = vpack.c.b16 %v4141, %v4140
        %v4166 = vunpack.c.l.b16 %v4118
        %v4167 = vunpack.c.l.b16 %v4119
        %v4168 = vunpack.c.l.b16 %v4120
        %v4169 = vunpack.c.l.b16 %v4121
        %v4170 = vunpack.c.l.b16 %v4122
        %v4171 = vunpack.c.l.b16 %v4123
        %v4172 = vunpack.c.l.b16 %v4124
        %v4173 = vunpack.c.l.b16 %v4125
        %v4174 = vunpack.c.l.b16 %v4126
        %v4175 = vunpack.c.l.b16 %v4127
        %v4176 = vunpack.c.l.b16 %v4128
        %v4177 = vunpack.c.l.b16 %v4129
        %v4178 = vunpack.c.l.b16 %v4130
        %v4179 = vunpack.c.l.b16 %v4131
        %v4180 = vunpack.c.l.b16 %v4132
        %v4181 = vunpack.c.l.b16 %v4133
        %v4182 = vpack.c.b16 %v4167, %v4166
        %v4183 = vpack.c.b16 %v4169, %v4168
        %v4184 = vpack.c.b16 %v4171, %v4170
        %v4185 = vpack.c.b16 %v4173, %v4172
        %v4186 = vpack.c.b16 %v4175, %v4174
        %v4187 = vpack.c.b16 %v4177, %v4176
        %v4188 = vpack.c.b16 %v4179, %v4178
        %v4189 = vpack.c.b16 %v4181, %v4180
        %4198 = vmatprep.subr.bf16.mxu0 0
        %4199 = vmatpush1.bf16.msra.mxu0 %v4182
        %4200 = vmatprep.subr.bf16.mxu0 0
        %4201 = vmatpush1.bf16.msra.mxu0 %v4183
        %4202 = vmatprep.subr.bf16.mxu0 0
        %4203 = vmatpush1.bf16.msra.mxu0 %v4184
        %4204 = vmatprep.subr.bf16.mxu0 0
        %4205 = vmatpush1.bf16.msra.mxu0 %v4185
        %4206 = vmatprep.subr.bf16.mxu0 0
        %4207 = vmatpush1.bf16.msra.mxu0 %v4186
        %4208 = vmatprep.subr.bf16.mxu0 0
        %4209 = vmatpush1.bf16.msra.mxu0 %v4187
        %4210 = vmatprep.subr.bf16.mxu0 0
        %4211 = vmatpush1.bf16.msra.mxu0 %v4188
        %4212 = vmatprep.subr.bf16.mxu0 0
        %4213 = vmatpush1.bf16.msra.mxu0 %v4189
        %4214 = vmatprep.subr.bf16.mxu0 0
        %4215 = vmatpush1.bf16.msra.mxu0 0
        %4216 = vmatprep.subr.bf16.mxu0 0
        %4217 = vmatpush1.bf16.msra.mxu0 0
        %4218 = vmatprep.subr.bf16.mxu0 0
        %4219 = vmatpush1.bf16.msra.mxu0 0
        %4220 = vmatprep.subr.bf16.mxu0 0
        %4221 = vmatpush1.bf16.msra.mxu0 0
        %4222 = vmatprep.subr.bf16.mxu0 0
        %4223 = vmatpush1.bf16.msra.mxu0 0
        %4224 = vmatprep.subr.bf16.mxu0 0
        %4225 = vmatpush1.bf16.msra.mxu0 0
        %4226 = vmatprep.subr.bf16.mxu0 0
        %4227 = vmatpush1.bf16.msra.mxu0 0
        %4228 = vmatprep.subr.bf16.mxu0 0
        %4229 = vmatpush1.bf16.msra.mxu0 0
        %4230 = vmatprep.mubr.bf16.mxu0 0
        %4231 = vmatmul.mubr.bf16.gmra.mrb[0].mxu0 %v4142
        %v4232 = vpop.f32.mrb[0].mxu0
        %v4233 = vadd.f32 0.0, %v4232
        %v4234 = vpop.f32.mrb[0].mxu0
        %v4235 = vpop.f32.mrb[0].mxu0
        %v4236 = vadd.f32 0.0, %v4235
        %v4237 = vpop.f32.mrb[0].mxu0
        %4238 = vmatprep.mubr.bf16.mxu0 0
        %4239 = vmatmul.mubr.bf16.gmra.mrb[0].mxu0 %v4143
        %v4240 = vpop.f32.mrb[0].mxu0
        %v4241 = vadd.f32 0.0, %v4240
        %v4242 = vpop.f32.mrb[0].mxu0
        %v4243 = vpop.f32.mrb[0].mxu0
        %v4244 = vadd.f32 0.0, %v4243
        %v4245 = vpop.f32.mrb[0].mxu0
        %4246 = vmatprep.mubr.bf16.mxu0 0
        %4247 = vmatmul.mubr.bf16.gmra.mrb[0].mxu0 %v4144
        %v4248 = vpop.f32.mrb[0].mxu0
        %v4249 = vadd.f32 0.0, %v4248
        %v4250 = vpop.f32.mrb[0].mxu0
        %v4251 = vpop.f32.mrb[0].mxu0
        %v4252 = vadd.f32 0.0, %v4251
        %v4253 = vpop.f32.mrb[0].mxu0
        %4254 = vmatprep.mubr.bf16.mxu0 0
        %4255 = vmatmul.mubr.bf16.gmra.mrb[0].mxu0 %v4145
        %v4256 = vpop.f32.mrb[0].mxu0
        %v4257 = vadd.f32 0.0, %v4256
        %v4258 = vpop.f32.mrb[0].mxu0
        %v4259 = vpop.f32.mrb[0].mxu0
        %v4260 = vadd.f32 0.0, %v4259
        %v4261 = vpop.f32.mrb[0].mxu0
        %4262 = vdwg.mxu0
        %v4263 = vld [vmem:[#allocation2] sm:$0xff]
        %v4264 = vld [vmem:[#allocation2 + $0x8] sm:$0xff]
        %v4265 = vld [vmem:[#allocation2 + $0x10] sm:$0xff]
        %v4266 = vld [vmem:[#allocation2 + $0x18] sm:$0xff]
        %v4267 = vld [vmem:[#allocation2 + $0x20] sm:$0xff]
        %v4268 = vld [vmem:[#allocation2 + $0x28] sm:$0xff]
        %v4269 = vld [vmem:[#allocation2 + $0x30] sm:$0xff]
        %v4270 = vld [vmem:[#allocation2 + $0x38] sm:$0xff]
        %v4271 = vadd.f32 %v4263, %v4233
        %v4272 = vadd.f32 %v4264, %v4236
        %v4273 = vadd.f32 %v4265, %v4241
        %v4274 = vadd.f32 %v4266, %v4244
        %v4275 = vadd.f32 %v4267, %v4249
        %v4276 = vadd.f32 %v4268, %v4252
        %v4277 = vadd.f32 %v4269, %v4257
        %v4278 = vadd.f32 %v4270, %v4260
        %4279 = vst [vmem:[#allocation2] sm:$0xff] %v4271
        %4280 = vst [vmem:[#allocation2 + $0x8] sm:$0xff] %v4272
        %4281 = vst [vmem:[#allocation2 + $0x10] sm:$0xff] %v4273
        %4282 = vst [vmem:[#allocation2 + $0x18] sm:$0xff] %v4274
        %4283 = vst [vmem:[#allocation2 + $0x20] sm:$0xff] %v4275
        %4284 = vst [vmem:[#allocation2 + $0x28] sm:$0xff] %v4276
        %4285 = vst [vmem:[#allocation2 + $0x30] sm:$0xff] %v4277
        %4286 = vst [vmem:[#allocation2 + $0x38] sm:$0xff] %v4278
        %s4287 = scalar_lea.vmem [#allocation3], 16
        %v4288 = vld [vmem:[%s4287] sm:$0xf]
        %v4289 = vld [vmem:[%s4287 + $0x8] sm:$0xf]
        %v4290 = vld [vmem:[%s4287 + $0x10] sm:$0xf]
        %v4291 = vld [vmem:[%s4287 + $0x18] sm:$0xf]
        %v4292 = vld [vmem:[%s4287 + $0x20] sm:$0xf]
        %v4293 = vld [vmem:[%s4287 + $0x28] sm:$0xf]
        %v4294 = vld [vmem:[%s4287 + $0x30] sm:$0xf]
        %v4295 = vld [vmem:[%s4287 + $0x38] sm:$0xf]
        %s4296 = scalar_lea.vmem [#allocation13], 384
        %v4297 = vld [vmem:[%s4296] sm:$0xf]
        %v4298 = vld [vmem:[%s4296 + $0x4] sm:$0xf]
        %v4299 = vld [vmem:[%s4296 + $0x8] sm:$0xf]
        %v4300 = vld [vmem:[%s4296 + $0xc] sm:$0xf]
        %v4301 = vld [vmem:[%s4296 + $0x10] sm:$0xf]
        %v4302 = vld [vmem:[%s4296 + $0x14] sm:$0xf]
        %v4303 = vld [vmem:[%s4296 + $0x18] sm:$0xf]
        %v4304 = vld [vmem:[%s4296 + $0x1c] sm:$0xf]
        %v4305 = vld [vmem:[%s4296 + $0x20] sm:$0xf]
        %v4306 = vld [vmem:[%s4296 + $0x24] sm:$0xf]
        %v4307 = vld [vmem:[%s4296 + $0x28] sm:$0xf]
        %v4308 = vld [vmem:[%s4296 + $0x2c] sm:$0xf]
        %v4309 = vld [vmem:[%s4296 + $0x30] sm:$0xf]
        %v4310 = vld [vmem:[%s4296 + $0x34] sm:$0xf]
        %v4311 = vld [vmem:[%s4296 + $0x38] sm:$0xf]
        %v4312 = vld [vmem:[%s4296 + $0x3c] sm:$0xf]
        %v4321 = vunpack.c.l.b16 %v4288
        %v4322 = vunpack.c.l.b16 %v4289
        %v4323 = vunpack.c.l.b16 %v4290
        %v4324 = vunpack.c.l.b16 %v4291
        %v4325 = vunpack.c.l.b16 %v4292
        %v4326 = vunpack.c.l.b16 %v4293
        %v4327 = vunpack.c.l.b16 %v4294
        %v4328 = vunpack.c.l.b16 %v4295
        %v4329 = vpack.c.b16 %v4322, %v4321
        %v4330 = vpack.c.b16 %v4324, %v4323
        %v4331 = vpack.c.b16 %v4326, %v4325
        %v4332 = vpack.c.b16 %v4328, %v4327
        %v4353 = vunpack.c.l.b16 %v4297
        %v4354 = vunpack.c.l.b16 %v4298
        %v4355 = vunpack.c.l.b16 %v4299
        %v4356 = vunpack.c.l.b16 %v4300
        %v4357 = vunpack.c.l.b16 %v4301
        %v4358 = vunpack.c.l.b16 %v4302
        %v4359 = vunpack.c.l.b16 %v4303
        %v4360 = vunpack.c.l.b16 %v4304
        %v4361 = vunpack.c.l.b16 %v4305
        %v4362 = vunpack.c.l.b16 %v4306
        %v4363 = vunpack.c.l.b16 %v4307
        %v4364 = vunpack.c.l.b16 %v4308
        %v4365 = vunpack.c.l.b16 %v4309
        %v4366 = vunpack.c.l.b16 %v4310
        %v4367 = vunpack.c.l.b16 %v4311
        %v4368 = vunpack.c.l.b16 %v4312
        %v4369 = vpack.c.b16 %v4354, %v4353
        %v4370 = vpack.c.b16 %v4356, %v4355
        %v4371 = vpack.c.b16 %v4358, %v4357
        %v4372 = vpack.c.b16 %v4360, %v4359
        %v4373 = vpack.c.b16 %v4362, %v4361
        %v4374 = vpack.c.b16 %v4364, %v4363
        %v4375 = vpack.c.b16 %v4366, %v4365
        %v4376 = vpack.c.b16 %v4368, %v4367
        %4385 = vmatprep.subr.bf16.mxu0 0
        %4386 = vmatpush1.bf16.msra.mxu0 %v4369
        %4387 = vmatprep.subr.bf16.mxu0 0
        %4388 = vmatpush1.bf16.msra.mxu0 %v4370
        %4389 = vmatprep.subr.bf16.mxu0 0
        %4390 = vmatpush1.bf16.msra.mxu0 %v4371
        %4391 = vmatprep.subr.bf16.mxu0 0
        %4392 = vmatpush1.bf16.msra.mxu0 %v4372
        %4393 = vmatprep.subr.bf16.mxu0 0
        %4394 = vmatpush1.bf16.msra.mxu0 %v4373
        %4395 = vmatprep.subr.bf16.mxu0 0
        %4396 = vmatpush1.bf16.msra.mxu0 %v4374
        %4397 = vmatprep.subr.bf16.mxu0 0
        %4398 = vmatpush1.bf16.msra.mxu0 %v4375
        %4399 = vmatprep.subr.bf16.mxu0 0
        %4400 = vmatpush1.bf16.msra.mxu0 %v4376
        %4401 = vmatprep.subr.bf16.mxu0 0
        %4402 = vmatpush1.bf16.msra.mxu0 0
        %4403 = vmatprep.subr.bf16.mxu0 0
        %4404 = vmatpush1.bf16.msra.mxu0 0
        %4405 = vmatprep.subr.bf16.mxu0 0
        %4406 = vmatpush1.bf16.msra.mxu0 0
        %4407 = vmatprep.subr.bf16.mxu0 0
        %4408 = vmatpush1.bf16.msra.mxu0 0
        %4409 = vmatprep.subr.bf16.mxu0 0
        %4410 = vmatpush1.bf16.msra.mxu0 0
        %4411 = vmatprep.subr.bf16.mxu0 0
        %4412 = vmatpush1.bf16.msra.mxu0 0
        %4413 = vmatprep.subr.bf16.mxu0 0
        %4414 = vmatpush1.bf16.msra.mxu0 0
        %4415 = vmatprep.subr.bf16.mxu0 0
        %4416 = vmatpush1.bf16.msra.mxu0 0
        %4417 = vmatprep.mubr.bf16.mxu0 0
        %4418 = vmatmul.mubr.bf16.gmra.mrb[0].mxu0 %v4329
        %v4419 = vpop.f32.mrb[0].mxu0
        %v4420 = vadd.f32 0.0, %v4419
        %v4421 = vpop.f32.mrb[0].mxu0
        %v4422 = vpop.f32.mrb[0].mxu0
        %v4423 = vadd.f32 0.0, %v4422
        %v4424 = vpop.f32.mrb[0].mxu0
        %4425 = vmatprep.mubr.bf16.mxu0 0
        %4426 = vmatmul.mubr.bf16.gmra.mrb[0].mxu0 %v4330
        %v4427 = vpop.f32.mrb[0].mxu0
        %v4428 = vadd.f32 0.0, %v4427
        %v4429 = vpop.f32.mrb[0].mxu0
        %v4430 = vpop.f32.mrb[0].mxu0
        %v4431 = vadd.f32 0.0, %v4430
        %v4432 = vpop.f32.mrb[0].mxu0
        %4433 = vmatprep.mubr.bf16.mxu0 0
        %4434 = vmatmul.mubr.bf16.gmra.mrb[0].mxu0 %v4331
        %v4435 = vpop.f32.mrb[0].mxu0
        %v4436 = vadd.f32 0.0, %v4435
        %v4437 = vpop.f32.mrb[0].mxu0
        %v4438 = vpop.f32.mrb[0].mxu0
        %v4439 = vadd.f32 0.0, %v4438
        %v4440 = vpop.f32.mrb[0].mxu0
        %4441 = vmatprep.mubr.bf16.mxu0 0
        %4442 = vmatmul.mubr.bf16.gmra.mrb[0].mxu0 %v4332
        %v4443 = vpop.f32.mrb[0].mxu0
        %v4444 = vadd.f32 0.0, %v4443
        %v4445 = vpop.f32.mrb[0].mxu0
        %v4446 = vpop.f32.mrb[0].mxu0
        %v4447 = vadd.f32 0.0, %v4446
        %v4448 = vpop.f32.mrb[0].mxu0
        %4449 = vdwg.mxu0
        %v4450 = vld [vmem:[#allocation2] sm:$0xff]
        %v4451 = vld [vmem:[#allocation2 + $0x8] sm:$0xff]
        %v4452 = vld [vmem:[#allocation2 + $0x10] sm:$0xff]
        %v4453 = vld [vmem:[#allocation2 + $0x18] sm:$0xff]
        %v4454 = vld [vmem:[#allocation2 + $0x20] sm:$0xff]
        %v4455 = vld [vmem:[#allocation2 + $0x28] sm:$0xff]
        %v4456 = vld [vmem:[#allocation2 + $0x30] sm:$0xff]
        %v4457 = vld [vmem:[#allocation2 + $0x38] sm:$0xff]
        %v4458 = vadd.f32 %v4450, %v4420
        %v4459 = vadd.f32 %v4451, %v4423
        %v4460 = vadd.f32 %v4452, %v4428
        %v4461 = vadd.f32 %v4453, %v4431
        %v4462 = vadd.f32 %v4454, %v4436
        %v4463 = vadd.f32 %v4455, %v4439
        %v4464 = vadd.f32 %v4456, %v4444
        %v4465 = vadd.f32 %v4457, %v4447
        %4466 = vst [vmem:[#allocation2] sm:$0xff] %v4458
        %4467 = vst [vmem:[#allocation2 + $0x8] sm:$0xff] %v4459
        %4468 = vst [vmem:[#allocation2 + $0x10] sm:$0xff] %v4460
        %4469 = vst [vmem:[#allocation2 + $0x18] sm:$0xff] %v4461
        %4470 = vst [vmem:[#allocation2 + $0x20] sm:$0xff] %v4462
        %4471 = vst [vmem:[#allocation2 + $0x28] sm:$0xff] %v4463
        %4472 = vst [vmem:[#allocation2 + $0x30] sm:$0xff] %v4464
        %4473 = vst [vmem:[#allocation2 + $0x38] sm:$0xff] %v4465
        %v4474 = vld [vmem:[%s4287] sm:$0xf]
        %v4475 = vld [vmem:[%s4287 + $0x4] sm:$0x1]
        %v4476 = vld [vmem:[%s4287 + $0x8] sm:$0xf]
        %v4477 = vld [vmem:[%s4287 + $0xc] sm:$0x1]
        %v4478 = vld [vmem:[%s4287 + $0x10] sm:$0xf]
        %v4479 = vld [vmem:[%s4287 + $0x14] sm:$0x1]
        %v4480 = vld [vmem:[%s4287 + $0x18] sm:$0xf]
        %v4481 = vld [vmem:[%s4287 + $0x1c] sm:$0x1]
        %v4482 = vld [vmem:[%s4287 + $0x20] sm:$0xf]
        %v4483 = vld [vmem:[%s4287 + $0x24] sm:$0x1]
        %v4484 = vld [vmem:[%s4287 + $0x28] sm:$0xf]
        %v4485 = vld [vmem:[%s4287 + $0x2c] sm:$0x1]
        %v4486 = vld [vmem:[%s4287 + $0x30] sm:$0xf]
        %v4487 = vld [vmem:[%s4287 + $0x34] sm:$0x1]
        %v4488 = vld [vmem:[%s4287 + $0x38] sm:$0xf]
        %v4489 = vld [vmem:[%s4287 + $0x3c] sm:$0x1]
        %v4491 = vshrl.u32 %v4474, 16
        %v4493 = vrot.slane %v4491, 4
        %v4494 = vshll.u32 %v4474, 16
        %v4496 = vrot.slane %v4494, 5
        %v4497 = vor.u32 %v4493, %v4496
        %v4498 = vrot.slane %v4497, 4
        %v4500 = vshll.u32 %v4475, 16
        %v4502 = vrot.slane %v4500, 5
        %v4503 = vsel %vm631, %v4498, %v4502
        %v4505 = vshrl.u32 %v4476, 16
        %v4507 = vrot.slane %v4505, 4
        %v4508 = vshll.u32 %v4476, 16
        %v4510 = vrot.slane %v4508, 5
        %v4511 = vor.u32 %v4507, %v4510
        %v4512 = vrot.slane %v4511, 4
        %v4514 = vshll.u32 %v4477, 16
        %v4516 = vrot.slane %v4514, 5
        %v4517 = vsel %vm631, %v4512, %v4516
        %v4519 = vshrl.u32 %v4478, 16
        %v4521 = vrot.slane %v4519, 4
        %v4522 = vshll.u32 %v4478, 16
        %v4524 = vrot.slane %v4522, 5
        %v4525 = vor.u32 %v4521, %v4524
        %v4526 = vrot.slane %v4525, 4
        %v4528 = vshll.u32 %v4479, 16
        %v4530 = vrot.slane %v4528, 5
        %v4531 = vsel %vm631, %v4526, %v4530
        %v4533 = vshrl.u32 %v4480, 16
        %v4535 = vrot.slane %v4533, 4
        %v4536 = vshll.u32 %v4480, 16
        %v4538 = vrot.slane %v4536, 5
        %v4539 = vor.u32 %v4535, %v4538
        %v4540 = vrot.slane %v4539, 4
        %v4542 = vshll.u32 %v4481, 16
        %v4544 = vrot.slane %v4542, 5
        %v4545 = vsel %vm631, %v4540, %v4544
        %v4547 = vshrl.u32 %v4482, 16
        %v4549 = vrot.slane %v4547, 4
        %v4550 = vshll.u32 %v4482, 16
        %v4552 = vrot.slane %v4550, 5
        %v4553 = vor.u32 %v4549, %v4552
        %v4554 = vrot.slane %v4553, 4
        %v4556 = vshll.u32 %v4483, 16
        %v4558 = vrot.slane %v4556, 5
        %v4559 = vsel %vm631, %v4554, %v4558
        %v4561 = vshrl.u32 %v4484, 16
        %v4563 = vrot.slane %v4561, 4
        %v4564 = vshll.u32 %v4484, 16
        %v4566 = vrot.slane %v4564, 5
        %v4567 = vor.u32 %v4563, %v4566
        %v4568 = vrot.slane %v4567, 4
        %v4570 = vshll.u32 %v4485, 16
        %v4572 = vrot.slane %v4570, 5
        %v4573 = vsel %vm631, %v4568, %v4572
        %v4575 = vshrl.u32 %v4486, 16
        %v4577 = vrot.slane %v4575, 4
        %v4578 = vshll.u32 %v4486, 16
        %v4580 = vrot.slane %v4578, 5
        %v4581 = vor.u32 %v4577, %v4580
        %v4582 = vrot.slane %v4581, 4
        %v4584 = vshll.u32 %v4487, 16
        %v4586 = vrot.slane %v4584, 5
        %v4587 = vsel %vm631, %v4582, %v4586
        %v4589 = vshrl.u32 %v4488, 16
        %v4591 = vrot.slane %v4589, 4
        %v4592 = vshll.u32 %v4488, 16
        %v4594 = vrot.slane %v4592, 5
        %v4595 = vor.u32 %v4591, %v4594
        %v4596 = vrot.slane %v4595, 4
        %v4598 = vshll.u32 %v4489, 16
        %v4600 = vrot.slane %v4598, 5
        %v4601 = vsel %vm631, %v4596, %v4600
        %s4602 = scalar_lea.vmem [#allocation13], 448
        %v4603 = vld [vmem:[%s4602] sm:$0xf]
        %v4604 = vld [vmem:[%s4602 + $0x4] sm:$0xf]
        %v4605 = vld [vmem:[%s4602 + $0x8] sm:$0xf]
        %v4606 = vld [vmem:[%s4602 + $0xc] sm:$0xf]
        %v4607 = vld [vmem:[%s4602 + $0x10] sm:$0xf]
        %v4608 = vld [vmem:[%s4602 + $0x14] sm:$0xf]
        %v4609 = vld [vmem:[%s4602 + $0x18] sm:$0xf]
        %v4610 = vld [vmem:[%s4602 + $0x1c] sm:$0xf]
        %v4611 = vld [vmem:[%s4602 + $0x20] sm:$0xf]
        %v4612 = vld [vmem:[%s4602 + $0x24] sm:$0xf]
        %v4613 = vld [vmem:[%s4602 + $0x28] sm:$0xf]
        %v4614 = vld [vmem:[%s4602 + $0x2c] sm:$0xf]
        %v4615 = vld [vmem:[%s4602 + $0x30] sm:$0xf]
        %v4616 = vld [vmem:[%s4602 + $0x34] sm:$0xf]
        %v4617 = vld [vmem:[%s4602 + $0x38] sm:$0xf]
        %v4618 = vld [vmem:[%s4602 + $0x3c] sm:$0xf]
        %v4619 = vunpack.c.l.b16 %v4503
        %v4620 = vunpack.c.l.b16 %v4517
        %v4621 = vunpack.c.l.b16 %v4531
        %v4622 = vunpack.c.l.b16 %v4545
        %v4623 = vunpack.c.l.b16 %v4559
        %v4624 = vunpack.c.l.b16 %v4573
        %v4625 = vunpack.c.l.b16 %v4587
        %v4626 = vunpack.c.l.b16 %v4601
        %v4627 = vpack.c.b16 %v4620, %v4619
        %v4628 = vpack.c.b16 %v4622, %v4621
        %v4629 = vpack.c.b16 %v4624, %v4623
        %v4630 = vpack.c.b16 %v4626, %v4625
        %v4651 = vunpack.c.l.b16 %v4603
        %v4652 = vunpack.c.l.b16 %v4604
        %v4653 = vunpack.c.l.b16 %v4605
        %v4654 = vunpack.c.l.b16 %v4606
        %v4655 = vunpack.c.l.b16 %v4607
        %v4656 = vunpack.c.l.b16 %v4608
        %v4657 = vunpack.c.l.b16 %v4609
        %v4658 = vunpack.c.l.b16 %v4610
        %v4659 = vunpack.c.l.b16 %v4611
        %v4660 = vunpack.c.l.b16 %v4612
        %v4661 = vunpack.c.l.b16 %v4613
        %v4662 = vunpack.c.l.b16 %v4614
        %v4663 = vunpack.c.l.b16 %v4615
        %v4664 = vunpack.c.l.b16 %v4616
        %v4665 = vunpack.c.l.b16 %v4617
        %v4666 = vunpack.c.l.b16 %v4618
        %v4667 = vpack.c.b16 %v4652, %v4651
        %v4668 = vpack.c.b16 %v4654, %v4653
        %v4669 = vpack.c.b16 %v4656, %v4655
        %v4670 = vpack.c.b16 %v4658, %v4657
        %v4671 = vpack.c.b16 %v4660, %v4659
        %v4672 = vpack.c.b16 %v4662, %v4661
        %v4673 = vpack.c.b16 %v4664, %v4663
        %v4674 = vpack.c.b16 %v4666, %v4665
        %4683 = vmatprep.subr.bf16.mxu0 0
        %4684 = vmatpush1.bf16.msra.mxu0 %v4667
        %4685 = vmatprep.subr.bf16.mxu0 0
        %4686 = vmatpush1.bf16.msra.mxu0 %v4668
        %4687 = vmatprep.subr.bf16.mxu0 0
        %4688 = vmatpush1.bf16.msra.mxu0 %v4669
        %4689 = vmatprep.subr.bf16.mxu0 0
        %4690 = vmatpush1.bf16.msra.mxu0 %v4670
        %4691 = vmatprep.subr.bf16.mxu0 0
        %4692 = vmatpush1.bf16.msra.mxu0 %v4671
        %4693 = vmatprep.subr.bf16.mxu0 0
        %4694 = vmatpush1.bf16.msra.mxu0 %v4672
        %4695 = vmatprep.subr.bf16.mxu0 0
        %4696 = vmatpush1.bf16.msra.mxu0 %v4673
        %4697 = vmatprep.subr.bf16.mxu0 0
        %4698 = vmatpush1.bf16.msra.mxu0 %v4674
        %4699 = vmatprep.subr.bf16.mxu0 0
        %4700 = vmatpush1.bf16.msra.mxu0 0
        %4701 = vmatprep.subr.bf16.mxu0 0
        %4702 = vmatpush1.bf16.msra.mxu0 0
        %4703 = vmatprep.subr.bf16.mxu0 0
        %4704 = vmatpush1.bf16.msra.mxu0 0
        %4705 = vmatprep.subr.bf16.mxu0 0
        %4706 = vmatpush1.bf16.msra.mxu0 0
        %4707 = vmatprep.subr.bf16.mxu0 0
        %4708 = vmatpush1.bf16.msra.mxu0 0
        %4709 = vmatprep.subr.bf16.mxu0 0
        %4710 = vmatpush1.bf16.msra.mxu0 0
        %4711 = vmatprep.subr.bf16.mxu0 0
        %4712 = vmatpush1.bf16.msra.mxu0 0
        %4713 = vmatprep.subr.bf16.mxu0 0
        %4714 = vmatpush1.bf16.msra.mxu0 0
        %4715 = vmatprep.mubr.bf16.mxu0 0
        %4716 = vmatmul.mubr.bf16.gmra.mrb[0].mxu0 %v4627
        %v4717 = vpop.f32.mrb[0].mxu0
        %v4718 = vadd.f32 0.0, %v4717
        %v4719 = vpop.f32.mrb[0].mxu0
        %v4720 = vpop.f32.mrb[0].mxu0
        %v4721 = vadd.f32 0.0, %v4720
        %v4722 = vpop.f32.mrb[0].mxu0
        %4723 = vmatprep.mubr.bf16.mxu0 0
        %4724 = vmatmul.mubr.bf16.gmra.mrb[0].mxu0 %v4628
        %v4725 = vpop.f32.mrb[0].mxu0
        %v4726 = vadd.f32 0.0, %v4725
        %v4727 = vpop.f32.mrb[0].mxu0
        %v4728 = vpop.f32.mrb[0].mxu0
        %v4729 = vadd.f32 0.0, %v4728
        %v4730 = vpop.f32.mrb[0].mxu0
        %4731 = vmatprep.mubr.bf16.mxu0 0
        %4732 = vmatmul.mubr.bf16.gmra.mrb[0].mxu0 %v4629
        %v4733 = vpop.f32.mrb[0].mxu0
        %v4734 = vadd.f32 0.0, %v4733
        %v4735 = vpop.f32.mrb[0].mxu0
        %v4736 = vpop.f32.mrb[0].mxu0
        %v4737 = vadd.f32 0.0, %v4736
        %v4738 = vpop.f32.mrb[0].mxu0
        %4739 = vmatprep.mubr.bf16.mxu0 0
        %4740 = vmatmul.mubr.bf16.gmra.mrb[0].mxu0 %v4630
        %v4741 = vpop.f32.mrb[0].mxu0
        %v4742 = vadd.f32 0.0, %v4741
        %v4743 = vpop.f32.mrb[0].mxu0
        %v4744 = vpop.f32.mrb[0].mxu0
        %v4745 = vadd.f32 0.0, %v4744
        %v4746 = vpop.f32.mrb[0].mxu0
        %4747 = vdwg.mxu0
        %v4748 = vld [vmem:[#allocation2] sm:$0xff]
        %v4749 = vld [vmem:[#allocation2 + $0x8] sm:$0xff]
        %v4750 = vld [vmem:[#allocation2 + $0x10] sm:$0xff]
        %v4751 = vld [vmem:[#allocation2 + $0x18] sm:$0xff]
        %v4752 = vld [vmem:[#allocation2 + $0x20] sm:$0xff]
        %v4753 = vld [vmem:[#allocation2 + $0x28] sm:$0xff]
        %v4754 = vld [vmem:[#allocation2 + $0x30] sm:$0xff]
        %v4755 = vld [vmem:[#allocation2 + $0x38] sm:$0xff]
        %v4756 = vadd.f32 %v4748, %v4718
        %v4757 = vadd.f32 %v4749, %v4721
        %v4758 = vadd.f32 %v4750, %v4726
        %v4759 = vadd.f32 %v4751, %v4729
        %v4760 = vadd.f32 %v4752, %v4734
        %v4761 = vadd.f32 %v4753, %v4737
        %v4762 = vadd.f32 %v4754, %v4742
        %v4763 = vadd.f32 %v4755, %v4745
        %4764 = vst [vmem:[#allocation2] sm:$0xff] %v4756
        %4765 = vst [vmem:[#allocation2 + $0x8] sm:$0xff] %v4757
        %4766 = vst [vmem:[#allocation2 + $0x10] sm:$0xff] %v4758
        %4767 = vst [vmem:[#allocation2 + $0x18] sm:$0xff] %v4759
        %4768 = vst [vmem:[#allocation2 + $0x20] sm:$0xff] %v4760
        %4769 = vst [vmem:[#allocation2 + $0x28] sm:$0xff] %v4761
        %4770 = vst [vmem:[#allocation2 + $0x30] sm:$0xff] %v4762
        %4771 = vst [vmem:[#allocation2 + $0x38] sm:$0xff] %v4763
        %v4772 = vld [vmem:[%s4287] sm:$0xe]
        %v4773 = vld [vmem:[%s4287 + $0x4] sm:$0x1]
        %v4774 = vld [vmem:[%s4287 + $0x8] sm:$0xe]
        %v4775 = vld [vmem:[%s4287 + $0xc] sm:$0x1]
        %v4776 = vld [vmem:[%s4287 + $0x10] sm:$0xe]
        %v4777 = vld [vmem:[%s4287 + $0x14] sm:$0x1]
        %v4778 = vld [vmem:[%s4287 + $0x18] sm:$0xe]
        %v4779 = vld [vmem:[%s4287 + $0x1c] sm:$0x1]
        %v4780 = vld [vmem:[%s4287 + $0x20] sm:$0xe]
        %v4781 = vld [vmem:[%s4287 + $0x24] sm:$0x1]
        %v4782 = vld [vmem:[%s4287 + $0x28] sm:$0xe]
        %v4783 = vld [vmem:[%s4287 + $0x2c] sm:$0x1]
        %v4784 = vld [vmem:[%s4287 + $0x30] sm:$0xe]
        %v4785 = vld [vmem:[%s4287 + $0x34] sm:$0x1]
        %v4786 = vld [vmem:[%s4287 + $0x38] sm:$0xe]
        %v4787 = vld [vmem:[%s4287 + $0x3c] sm:$0x1]
        %v4804 = vrot.slane %v4772, 5
        %v4805 = vrot.slane %v4804, 4
        %v4806 = vrot.slane %v4773, 5
        %v4807 = vsel %vm948, %v4805, %v4806
        %v4808 = vrot.slane %v4774, 5
        %v4809 = vrot.slane %v4808, 4
        %v4810 = vrot.slane %v4775, 5
        %v4811 = vsel %vm948, %v4809, %v4810
        %v4812 = vrot.slane %v4776, 5
        %v4813 = vrot.slane %v4812, 4
        %v4814 = vrot.slane %v4777, 5
        %v4815 = vsel %vm948, %v4813, %v4814
        %v4816 = vrot.slane %v4778, 5
        %v4817 = vrot.slane %v4816, 4
        %v4818 = vrot.slane %v4779, 5
        %v4819 = vsel %vm948, %v4817, %v4818
        %v4820 = vrot.slane %v4780, 5
        %v4821 = vrot.slane %v4820, 4
        %v4822 = vrot.slane %v4781, 5
        %v4823 = vsel %vm948, %v4821, %v4822
        %v4824 = vrot.slane %v4782, 5
        %v4825 = vrot.slane %v4824, 4
        %v4826 = vrot.slane %v4783, 5
        %v4827 = vsel %vm948, %v4825, %v4826
        %v4828 = vrot.slane %v4784, 5
        %v4829 = vrot.slane %v4828, 4
        %v4830 = vrot.slane %v4785, 5
        %v4831 = vsel %vm948, %v4829, %v4830
        %v4832 = vrot.slane %v4786, 5
        %v4833 = vrot.slane %v4832, 4
        %v4834 = vrot.slane %v4787, 5
        %v4835 = vsel %vm948, %v4833, %v4834
        %s4836 = scalar_lea.vmem [#allocation13], 512
        %v4837 = vld [vmem:[%s4836] sm:$0xf]
        %v4838 = vld [vmem:[%s4836 + $0x4] sm:$0xf]
        %v4839 = vld [vmem:[%s4836 + $0x8] sm:$0xf]
        %v4840 = vld [vmem:[%s4836 + $0xc] sm:$0xf]
        %v4841 = vld [vmem:[%s4836 + $0x10] sm:$0xf]
        %v4842 = vld [vmem:[%s4836 + $0x14] sm:$0xf]
        %v4843 = vld [vmem:[%s4836 + $0x18] sm:$0xf]
        %v4844 = vld [vmem:[%s4836 + $0x1c] sm:$0xf]
        %v4845 = vld [vmem:[%s4836 + $0x20] sm:$0xf]
        %v4846 = vld [vmem:[%s4836 + $0x24] sm:$0xf]
        %v4847 = vld [vmem:[%s4836 + $0x28] sm:$0xf]
        %v4848 = vld [vmem:[%s4836 + $0x2c] sm:$0xf]
        %v4849 = vld [vmem:[%s4836 + $0x30] sm:$0xf]
        %v4850 = vld [vmem:[%s4836 + $0x34] sm:$0xf]
        %v4851 = vld [vmem:[%s4836 + $0x38] sm:$0xf]
        %v4852 = vld [vmem:[%s4836 + $0x3c] sm:$0xf]
        %v4853 = vunpack.c.l.b16 %v4807
        %v4854 = vunpack.c.l.b16 %v4811
        %v4855 = vunpack.c.l.b16 %v4815
        %v4856 = vunpack.c.l.b16 %v4819
        %v4857 = vunpack.c.l.b16 %v4823
        %v4858 = vunpack.c.l.b16 %v4827
        %v4859 = vunpack.c.l.b16 %v4831
        %v4860 = vunpack.c.l.b16 %v4835
        %v4861 = vpack.c.b16 %v4854, %v4853
        %v4862 = vpack.c.b16 %v4856, %v4855
        %v4863 = vpack.c.b16 %v4858, %v4857
        %v4864 = vpack.c.b16 %v4860, %v4859
        %v4885 = vunpack.c.l.b16 %v4837
        %v4886 = vunpack.c.l.b16 %v4838
        %v4887 = vunpack.c.l.b16 %v4839
        %v4888 = vunpack.c.l.b16 %v4840
        %v4889 = vunpack.c.l.b16 %v4841
        %v4890 = vunpack.c.l.b16 %v4842
        %v4891 = vunpack.c.l.b16 %v4843
        %v4892 = vunpack.c.l.b16 %v4844
        %v4893 = vunpack.c.l.b16 %v4845
        %v4894 = vunpack.c.l.b16 %v4846
        %v4895 = vunpack.c.l.b16 %v4847
        %v4896 = vunpack.c.l.b16 %v4848
        %v4897 = vunpack.c.l.b16 %v4849
        %v4898 = vunpack.c.l.b16 %v4850
        %v4899 = vunpack.c.l.b16 %v4851
        %v4900 = vunpack.c.l.b16 %v4852
        %v4901 = vpack.c.b16 %v4886, %v4885
        %v4902 = vpack.c.b16 %v4888, %v4887
        %v4903 = vpack.c.b16 %v4890, %v4889
        %v4904 = vpack.c.b16 %v4892, %v4891
        %v4905 = vpack.c.b16 %v4894, %v4893
        %v4906 = vpack.c.b16 %v4896, %v4895
        %v4907 = vpack.c.b16 %v4898, %v4897
        %v4908 = vpack.c.b16 %v4900, %v4899
        %4917 = vmatprep.subr.bf16.mxu0 0
        %4918 = vmatpush1.bf16.msra.mxu0 %v4901
        %4919 = vmatprep.subr.bf16.mxu0 0
        %4920 = vmatpush1.bf16.msra.mxu0 %v4902
        %4921 = vmatprep.subr.bf16.mxu0 0
        %4922 = vmatpush1.bf16.msra.mxu0 %v4903
        %4923 = vmatprep.subr.bf16.mxu0 0
        %4924 = vmatpush1.bf16.msra.mxu0 %v4904
        %4925 = vmatprep.subr.bf16.mxu0 0
        %4926 = vmatpush1.bf16.msra.mxu0 %v4905
        %4927 = vmatprep.subr.bf16.mxu0 0
        %4928 = vmatpush1.bf16.msra.mxu0 %v4906
        %4929 = vmatprep.subr.bf16.mxu0 0
        %4930 = vmatpush1.bf16.msra.mxu0 %v4907
        %4931 = vmatprep.subr.bf16.mxu0 0
        %4932 = vmatpush1.bf16.msra.mxu0 %v4908
        %4933 = vmatprep.subr.bf16.mxu0 0
        %4934 = vmatpush1.bf16.msra.mxu0 0
        %4935 = vmatprep.subr.bf16.mxu0 0
        %4936 = vmatpush1.bf16.msra.mxu0 0
        %4937 = vmatprep.subr.bf16.mxu0 0
        %4938 = vmatpush1.bf16.msra.mxu0 0
        %4939 = vmatprep.subr.bf16.mxu0 0
        %4940 = vmatpush1.bf16.msra.mxu0 0
        %4941 = vmatprep.subr.bf16.mxu0 0
        %4942 = vmatpush1.bf16.msra.mxu0 0
        %4943 = vmatprep.subr.bf16.mxu0 0
        %4944 = vmatpush1.bf16.msra.mxu0 0
        %4945 = vmatprep.subr.bf16.mxu0 0
        %4946 = vmatpush1.bf16.msra.mxu0 0
        %4947 = vmatprep.subr.bf16.mxu0 0
        %4948 = vmatpush1.bf16.msra.mxu0 0
        %4949 = vmatprep.mubr.bf16.mxu0 0
        %4950 = vmatmul.mubr.bf16.gmra.mrb[0].mxu0 %v4861
        %v4951 = vpop.f32.mrb[0].mxu0
        %v4952 = vadd.f32 0.0, %v4951
        %v4953 = vpop.f32.mrb[0].mxu0
        %v4954 = vpop.f32.mrb[0].mxu0
        %v4955 = vadd.f32 0.0, %v4954
        %v4956 = vpop.f32.mrb[0].mxu0
        %4957 = vmatprep.mubr.bf16.mxu0 0
        %4958 = vmatmul.mubr.bf16.gmra.mrb[0].mxu0 %v4862
        %v4959 = vpop.f32.mrb[0].mxu0
        %v4960 = vadd.f32 0.0, %v4959
        %v4961 = vpop.f32.mrb[0].mxu0
        %v4962 = vpop.f32.mrb[0].mxu0
        %v4963 = vadd.f32 0.0, %v4962
        %v4964 = vpop.f32.mrb[0].mxu0
        %4965 = vmatprep.mubr.bf16.mxu0 0
        %4966 = vmatmul.mubr.bf16.gmra.mrb[0].mxu0 %v4863
        %v4967 = vpop.f32.mrb[0].mxu0
        %v4968 = vadd.f32 0.0, %v4967
        %v4969 = vpop.f32.mrb[0].mxu0
        %v4970 = vpop.f32.mrb[0].mxu0
        %v4971 = vadd.f32 0.0, %v4970
        %v4972 = vpop.f32.mrb[0].mxu0
        %4973 = vmatprep.mubr.bf16.mxu0 0
        %4974 = vmatmul.mubr.bf16.gmra.mrb[0].mxu0 %v4864
        %v4975 = vpop.f32.mrb[0].mxu0
        %v4976 = vadd.f32 0.0, %v4975
        %v4977 = vpop.f32.mrb[0].mxu0
        %v4978 = vpop.f32.mrb[0].mxu0
        %v4979 = vadd.f32 0.0, %v4978
        %v4980 = vpop.f32.mrb[0].mxu0
        %4981 = vdwg.mxu0
        %v4982 = vld [vmem:[#allocation2] sm:$0xff]
        %v4983 = vld [vmem:[#allocation2 + $0x8] sm:$0xff]
        %v4984 = vld [vmem:[#allocation2 + $0x10] sm:$0xff]
        %v4985 = vld [vmem:[#allocation2 + $0x18] sm:$0xff]
        %v4986 = vld [vmem:[#allocation2 + $0x20] sm:$0xff]
        %v4987 = vld [vmem:[#allocation2 + $0x28] sm:$0xff]
        %v4988 = vld [vmem:[#allocation2 + $0x30] sm:$0xff]
        %v4989 = vld [vmem:[#allocation2 + $0x38] sm:$0xff]
        %v4990 = vadd.f32 %v4982, %v4952
        %v4991 = vadd.f32 %v4983, %v4955
        %v4992 = vadd.f32 %v4984, %v4960
        %v4993 = vadd.f32 %v4985, %v4963
        %v4994 = vadd.f32 %v4986, %v4968
        %v4995 = vadd.f32 %v4987, %v4971
        %v4996 = vadd.f32 %v4988, %v4976
        %v4997 = vadd.f32 %v4989, %v4979
        %4998 = vst [vmem:[#allocation2] sm:$0xff] %v4990
        %4999 = vst [vmem:[#allocation2 + $0x8] sm:$0xff] %v4991
        %5000 = vst [vmem:[#allocation2 + $0x10] sm:$0xff] %v4992
        %5001 = vst [vmem:[#allocation2 + $0x18] sm:$0xff] %v4993
        %5002 = vst [vmem:[#allocation2 + $0x20] sm:$0xff] %v4994
        %5003 = vst [vmem:[#allocation2 + $0x28] sm:$0xff] %v4995
        %5004 = vst [vmem:[#allocation2 + $0x30] sm:$0xff] %v4996
        %5005 = vst [vmem:[#allocation2 + $0x38] sm:$0xff] %v4997
        %v5006 = vld [vmem:[#allocation2] sm:$0xff]
        %v5007 = vld [vmem:[#allocation2 + $0x8] sm:$0xff]
        %v5008 = vld [vmem:[#allocation2 + $0x10] sm:$0xff]
        %v5009 = vld [vmem:[#allocation2 + $0x18] sm:$0xff]
        %v5010 = vld [vmem:[#allocation2 + $0x20] sm:$0xff]
        %v5011 = vld [vmem:[#allocation2 + $0x28] sm:$0xff]
        %v5012 = vld [vmem:[#allocation2 + $0x30] sm:$0xff]
        %v5013 = vld [vmem:[#allocation2 + $0x38] sm:$0xff]
        %v5014 = vld [vmem:[#allocation15] sm:$0x1]
        %v5016 = vlaneseq
        %v5017 = vshrl.u32 %v5016, 7
        %v5018 = vsub.s32 0, %v5017
        %v5019 = vrot.slane %v5014, %v5018
        %v5021 = vmul.f32 %v5006, %v5019
        %v5022 = vmul.f32 %v5007, %v5019
        %v5023 = vmul.f32 %v5008, %v5019
        %v5024 = vmul.f32 %v5009, %v5019
        %v5025 = vmul.f32 %v5010, %v5019
        %v5026 = vmul.f32 %v5011, %v5019
        %v5027 = vmul.f32 %v5012, %v5019
        %v5028 = vmul.f32 %v5013, %v5019
        %v5029 = vld [vmem:[#allocation16] sm:$0x1]
        %v5031 = vlaneseq
        %v5032 = vshrl.u32 %v5031, 7
        %v5033 = vsub.s32 0, %v5032
        %v5034 = vrot.slane %v5029, %v5033
        %v5036 = vadd.f32 %v5021, %v5034
        %v5037 = vadd.f32 %v5022, %v5034
        %v5038 = vadd.f32 %v5023, %v5034
        %v5039 = vadd.f32 %v5024, %v5034
        %v5040 = vadd.f32 %v5025, %v5034
        %v5041 = vadd.f32 %v5026, %v5034
        %v5042 = vadd.f32 %v5027, %v5034
        %v5043 = vadd.f32 %v5028, %v5034
        %v5044 = vld [vmem:[%s381] sm:$0xff]
        %v5045 = vld [vmem:[%s381 + $0x8] sm:$0xff]
        %v5046 = vld [vmem:[%s381 + $0x10] sm:$0xff]
        %v5047 = vld [vmem:[%s381 + $0x18] sm:$0xff]
        %v5048 = vld [vmem:[%s381 + $0x20] sm:$0xff]
        %v5049 = vld [vmem:[%s381 + $0x28] sm:$0xff]
        %v5050 = vld [vmem:[%s381 + $0x30] sm:$0xff]
        %v5051 = vld [vmem:[%s381 + $0x38] sm:$0xff]
        %v5052 = vadd.f32 %v5036, %v5044
        %v5053 = vadd.f32 %v5037, %v5045
        %v5054 = vadd.f32 %v5038, %v5046
        %v5055 = vadd.f32 %v5039, %v5047
        %v5056 = vadd.f32 %v5040, %v5048
        %v5057 = vadd.f32 %v5041, %v5049
        %v5058 = vadd.f32 %v5042, %v5050
        %v5059 = vadd.f32 %v5043, %v5051
        %v5060 = vmax.f32 %v5052, 0.0
        %v5061 = vmax.f32 %v5053, 0.0
        %v5062 = vmax.f32 %v5054, 0.0
        %v5063 = vmax.f32 %v5055, 0.0
        %v5064 = vmax.f32 %v5056, 0.0
        %v5065 = vmax.f32 %v5057, 0.0
        %v5066 = vmax.f32 %v5058, 0.0
        %v5067 = vmax.f32 %v5059, 0.0
        %5068 = vst [vmem:[%s442] sm:$0xff] %v5060
        %5069 = vst [vmem:[%s442 + $0x8] sm:$0xff] %v5061
        %5070 = vst [vmem:[%s442 + $0x10] sm:$0xff] %v5062
        %5071 = vst [vmem:[%s442 + $0x18] sm:$0xff] %v5063
        %5072 = vst [vmem:[%s442 + $0x20] sm:$0xff] %v5064
        %5073 = vst [vmem:[%s442 + $0x28] sm:$0xff] %v5065
        %5074 = vst [vmem:[%s442 + $0x30] sm:$0xff] %v5066
        %5075 = vst [vmem:[%s442 + $0x38] sm:$0xff] %v5067
        %s5076 = sand.u32 %s217, 1
        %s5077 = scalar_lea.sflag [#allocation6], %s5076
        %s5078 = sand.u32 %s217, 1
        %s5079 = smul.addr %s5078, 64
        %s5080 = scalar_lea.vmem [#allocation18], %s5079
        // Predicated region
        $region85: #{basic_block3d.1} parent=51 // pred_check
          %p5081 = pneg %p227
        $region86: #{basic_block3d.1} parent=51 // pred_check_branch
          %5083 = sbr.rel (%p5081) target = $region88
        $region87: #{basic_block3d.1} parent=51 // pred_region
          %s5085 = ssub.s32 1024, 1024
          %5086 = vsyncadd %s5077, %s5085
          %s5087 = smul.addr %s31, 8
          %s5088 = smul.addr %s5087, 128
          %s5089 = scalar_lea.hbm %s8, %s5088
          %s5090 = sshll.u32 %s5080, 4
          %s5091 = int_to_ptr.vmem [resolvable:$true] %s5090
          %5096 = dma.vmem_to_hbm [thread:$0]  %s5091, 1024, %s5089, %s5077, 128, 128, 8
        $region88: #{basic_block3d.1} parent=51 // pred_fallthru
          _
      $region52: #{basic_block3d.1} parent=5 // pred_fallthru
        _
      %p5097 = scmp.le.s32.totalorder 2, %s26
      // Predicated region
      $region89: #{basic_block3d.1} parent=5 // pred_check
        %p5098 = pneg %p5097
      $region90: #{basic_block3d.1} parent=5 // pred_check_branch
        %5100 = sbr.rel (%p5098) target = $region92
      $region91: #{basic_block3d.1} parent=5 // pred_region
        %s5101 = ssub.s32 %s26, 2
        // Predicated region
        $region93: #{basic_block3d.1} parent=91 // pred_check
          %p5102 = pneg %p233
        $region94: #{basic_block3d.1} parent=91 // pred_check_branch
          %5104 = sbr.rel (%p5102) target = $region96
        $region95: #{basic_block3d.1} parent=91 // pred_region
          %s5105 = sand.u32 %s218, 1
          %s5106 = scalar_lea.sflag [#allocation6], %s5105
          %s5107 = sand.u32 %s218, 1
          %s5108 = smul.addr %s5107, 64
          %s5109 = scalar_lea.vmem [#allocation18], %s5108
          %5110 = dma.done %s5106, 1024
        $region96: #{basic_block3d.1} parent=91 // pred_fallthru
          _
      $region92: #{basic_block3d.1} parent=5 // pred_fallthru
        _
    $region6: #{basic_block3d.1} parent=1 // loop_footer
      %s30 = sadd.s32 1, %s26
    $region7: #{basic_block3d.1} parent=1 // loop_footer_branch
      %25 = sbr.rel target = $region3
    $region8: #{basic_block3d.1} parent=1 // loop_exit
      _
    %5111 = vsyncpa [#allocation5], 1
    %s5112 = scalar_lea.sflag [#allocation5], 1
    %5113 = vsyncpa %s5112, 1
    %5114 = vsyncpa [#allocation8], 1
    %s5115 = scalar_lea.sflag [#allocation8], 1
    %5116 = vsyncpa %s5115, 1
    %5117 = vsyncpa [#allocation11], 1
    %5118 = vsyncpa [#allocation14], 1
    %5119 = vsyncpa [#allocation17], 1
    %5120 = vsyncpa [#allocation6], 1
    %s5121 = scalar_lea.sflag [#allocation6], 1
    %5122 = vsyncpa %s5121, 1

</llo_original>
